<compile_context>
chip_gen: v7x
topology: tpu7x:2x2x1
jax: 0.10.0
libtpu: 0.0.40
codegen_flags: <defaults>
</compile_context>

<pallas_src>
import functools

import jax
import jax.numpy as jnp
import numpy as np
from jax.experimental import pallas as pl
from jax.experimental.pallas import tpu as pltpu

NEG_SLOPE = 0.1          # nn.LeakyReLU(negative_slope=0.1)
BIG = 1e30               # "minus infinity" for the max-pool border
# Flip to jnp.bfloat16 for ~2x on the memory-bound conv stages (keep f32
# accumulation); loosen the test tolerance if you do.
MXU_DTYPE = jnp.float32


# ----------------------------------------------------------------------------
# Fused FEBlock kernel (one batch element per grid step)
# ----------------------------------------------------------------------------
def _fe_block_kernel(x_ref, wf_ref, bf_ref, wu_ref, bu_ref,
                     wls_ref, wlb_ref, bl_ref,
                     mask_ref, spool_ref, rshuf_ref,
                     o_ref, rhs_ref, base_ref, *, H, W, F):
    Wp2 = W + 2
    Hp, Wq = H // 2, W // 2
    Wq2 = Wq + 2
    L_out = H * Wp2                 # conv-output length (valid at i*Wp2+j, j<W)
    Lq_out = Hp * Wq2

    def lrelu(v):
        return jnp.where(v >= 0, v, NEG_SLOPE * v)

    def conv3x3(padflat, w_ref, cin, row_len, out_len):
        """One MXU matmul with K = 9*cin (im2col built in VMEM scratch)."""
        t = 0
        for dy in range(3):
            for dx in range(3):
                off = dy * row_len + dx
                rhs_ref[t * cin:(t + 1) * cin, 0:out_len] = \
                    padflat[:, off:off + out_len]
                t += 1
        rhs = rhs_ref[0:9 * cin, 0:out_len].astype(w_ref.dtype)
        return jnp.dot(w_ref[...], rhs, preferred_element_type=jnp.float32)

    # ---------------- conv_first (3 -> F) + LeakyReLU -----------------------
    xpf = x_ref[0]                                   # (3, L_pad) zero-padded
    y1 = lrelu(conv3x3(xpf, wf_ref, 3, Wp2, L_out) + bf_ref[...])   # (F, L_out)

    # Re-embed into the zero-padded flat layout (in-kernel padding).
    base_ref[...] = jnp.zeros_like(base_ref)
    base_ref[:, Wp2 + 1:Wp2 + 1 + L_out] = y1
    mask = mask_ref[...]                             # (1, L_pad) interior mask
    base = base_ref[...] * mask                      # (F, L_pad), zero borders

    # ------------- 3x3 / stride-2 max-pool, padding ignored -----------------
    pool_in = base + (mask - 1.0) * BIG              # -BIG outside the image
    m = pool_in[:, 0:L_out]
    for dy in range(3):
        for dx in range(3):
            if dy == 0 and dx == 0:
                continue
            off = dy * Wp2 + dx
            m = jnp.maximum(m, pool_in[:, off:off + L_out])
    # stride-2 subsample + re-pad for conv_up: one 0/1 selection matmul.
    q = jnp.dot(m, spool_ref[...], preferred_element_type=jnp.float32)

    # ---------------- conv_up (F -> 4F) + LeakyReLU --------------------------
    # (conv_up output channels were pre-permuted in the wrapper so that the
    #  pixel-shuffle sub-channel is the slow index: row = s*F + c)
    u = lrelu(conv3x3(q, wu_ref, F, Wq2, Lq_out) + bu_ref[...])     # (4F, Lq_out)

    # -------- PixelShuffle(2): 4 scatter matmuls into the padded layout ------
    shuf = jnp.dot(u[0:F, :], rshuf_ref[0], preferred_element_type=jnp.float32)
    for s in range(1, 4):
        shuf = shuf + jnp.dot(u[s * F:(s + 1) * F, :], rshuf_ref[s],
                              preferred_element_type=jnp.float32)   # (F, L_pad)

    # ------ conv_last on [shuffled ; base] without materializing the concat --
    out = conv3x3(shuf, wls_ref, F, Wp2, L_out)
    out = out + conv3x3(base, wlb_ref, F, Wp2, L_out)
    out = out + bl_ref[...]
    o_ref[0] = out.astype(o_ref.dtype)               # lane-dense (3, L_out)


# ----------------------------------------------------------------------------
# Host-side constant / weight preparation (all tiny)
# ----------------------------------------------------------------------------
def _build_constants(H, W):
    Wp2 = W + 2
    Hp, Wq = H // 2, W // 2
    Wq2 = Wq + 2
    L_out = H * Wp2
    L_pad = (H + 2) * Wp2 + 2          # +2 slack so tap slices stay in range
    Lq_out = Hp * Wq2
    Lq_pad = (Hp + 2) * Wq2 + 2

    # interior mask in the flattened (H+2, W+2) layout
    mask = np.zeros((1, L_pad), np.float32)
    for r in range(H):
        for c in range(W):
            mask[0, (r + 1) * Wp2 + (c + 1)] = 1.0

    # maxpool stride-2 subsample + re-pad:  Q = dense_max @ s_pool
    s_pool = np.zeros((L_out, Lq_pad), np.float32)
    for oi in range(Hp):
        for oj in range(Wq):
            s_pool[2 * oi * Wp2 + 2 * oj, (oi + 1) * Wq2 + (oj + 1)] = 1.0

    # pixel-shuffle scatter: shuffled_padflat = sum_s U[s*F:(s+1)*F] @ r_shuf[s]
    r_shuf = np.zeros((4, Lq_out, L_pad), np.float32)
    for y in range(H):
        for x in range(W):
            s = 2 * (y % 2) + (x % 2)
            r_shuf[s, (y // 2) * Wq2 + (x // 2), (y + 1) * Wp2 + (x + 1)] = 1.0

    return jnp.asarray(mask), jnp.asarray(s_pool), jnp.asarray(r_shuf)


def _prep_params(p, F):
    def fold(w_hwio):   # (3,3,Cin,Cout) -> (Cout, 9*Cin), col = (dy*3+dx)*Cin+cin
        cout = w_hwio.shape[-1]
        return jnp.transpose(w_hwio, (3, 0, 1, 2)).reshape(cout, -1)

    wf = fold(p["w_first"])                                 # (F, 27)
    wu = fold(p["w_up"])                                    # (4F, 9F)
    # permute conv_up output channels: row s*F + c  <-  original row 4c + s
    wu = wu.reshape(F, 4, -1).transpose(1, 0, 2).reshape(4 * F, -1)
    bu = p["b_up"].reshape(F, 4).T.reshape(4 * F, 1)
    wl = fold(p["w_last"]).reshape(3, 9, 2 * F)             # split the concat
    wl_shuf = wl[:, :, :F].reshape(3, 9 * F)
    wl_base = wl[:, :, F:].reshape(3, 9 * F)
    return dict(
        wf=wf.astype(MXU_DTYPE), bf=p["b_first"].reshape(F, 1),
        wu=wu.astype(MXU_DTYPE), bu=bu,
        wls=wl_shuf.astype(MXU_DTYPE), wlb=wl_base.astype(MXU_DTYPE),
        bl=p["b_last"].reshape(3, 1),
    )


# ----------------------------------------------------------------------------
# FEBlock forward (NCHW in / NCHW out, matches the PyTorch module)
# ----------------------------------------------------------------------------
def fe_block_forward(x_nchw, params):
    N, Cin, H, W = x_nchw.shape
    assert Cin == 3 and H % 2 == 0 and W % 2 == 0
    F = params["w_first"].shape[-1]
    Wp2 = W + 2
    L_out = H * Wp2
    L_pad = (H + 2) * Wp2 + 2
    Hp, Wq = H // 2, W // 2
    Lq_out = Hp * (Wq + 2)
    Lq_pad = (Hp + 2) * (Wq + 2) + 2

    mask, s_pool, r_shuf = _build_constants(H, W)
    prep = _prep_params(params, F)

    # Pad the tiny 3-channel network input once and flatten spatially
    # (NCHW -> (N, 3, (H+2)*(W+2)+2) is a free reshape; all other padding is
    #  done inside the kernel, in VMEM).
    xpf = jnp.pad(x_nchw.astype(jnp.float32),
                  ((0, 0), (0, 0), (1, 1), (1, 1))).reshape(N, 3, (H + 2) * Wp2)
    xpf = jnp.pad(xpf, ((0, 0), (0, 0), (0, L_pad - (H + 2) * Wp2)))

    kernel = functools.partial(_fe_block_kernel, H=H, W=W, F=F)
    out_flat = pl.pallas_call(
        kernel,
        out_shape=jax.ShapeDtypeStruct((N, 3, L_out), jnp.float32),
        grid=(N,),
        in_specs=[
            pl.BlockSpec((1, 3, L_pad), lambda n: (n, 0, 0)),
            pl.BlockSpec((F, 9 * 3), lambda n: (0, 0)),
            pl.BlockSpec((F, 1), lambda n: (0, 0)),
            pl.BlockSpec((4 * F, 9 * F), lambda n: (0, 0)),
            pl.BlockSpec((4 * F, 1), lambda n: (0, 0)),
            pl.BlockSpec((3, 9 * F), lambda n: (0, 0)),
            pl.BlockSpec((3, 9 * F), lambda n: (0, 0)),
            pl.BlockSpec((3, 1), lambda n: (0, 0)),
            pl.BlockSpec((1, L_pad), lambda n: (0, 0)),
            pl.BlockSpec((L_out, Lq_pad), lambda n: (0, 0)),
            pl.BlockSpec((4, Lq_out, L_pad), lambda n: (0, 0, 0)),
        ],
        out_specs=pl.BlockSpec((1, 3, L_out), lambda n: (n, 0, 0)),
        scratch_shapes=[
            pltpu.VMEM((9 * max(3, F), L_out), jnp.float32),  # im2col RHS
            pltpu.VMEM((F, L_pad), jnp.float32),              # padded "base"
        ],
        compiler_params=pltpu.CompilerParams(
            dimension_semantics=("parallel",)),
    )(xpf, prep["wf"], prep["bf"], prep["wu"], prep["bu"],
      prep["wls"], prep["wlb"], prep["bl"], mask, s_pool, r_shuf)

    # (N, 3, H*(W+2)) -> (N, 3, H, W): drop the 2 junk columns per row.
    return out_flat.reshape(N, 3, H, Wp2)[:, :, :, :W]


def init_params(num_feat, key):
    ks = jax.random.split(key, 6)

    def w(k, cin, cout):
        return jax.random.normal(k, (3, 3, cin, cout), jnp.float32) * 0.1

    def b(k, cout):
        return jax.random.normal(k, (cout,), jnp.float32) * 0.01

    return {
        "w_first": w(ks[0], 3, num_feat),            "b_first": b(ks[1], num_feat),
        "w_up":    w(ks[2], num_feat, num_feat * 4), "b_up":    b(ks[3], num_feat * 4),
        "w_last":  w(ks[4], 2 * num_feat, 3),        "b_last":  b(ks[5], 3),
    }


# ----------------------------------------------------------------------------
# Pure-JAX reference (NCHW, mirrors the PyTorch forward) for validation.
# ----------------------------------------------------------------------------
def _ref_forward(x, p):
    def conv(t, w_hwio, bias):
        w = jnp.transpose(w_hwio, (3, 2, 0, 1))  # HWIO -> OIHW
        y = jax.lax.conv_general_dilated(
            t, w, window_strides=(1, 1), padding=((1, 1), (1, 1)),
            dimension_numbers=("NCHW", "OIHW", "NCHW"))
        return y + bias[None, :, None, None]

    lrelu = lambda t: jnp.where(t >= 0, t, NEG_SLOPE * t)
    x = lrelu(conv(x, p["w_first"], p["b_first"]))
    base = x
    x = jax.lax.reduce_window(x, -jnp.inf, jax.lax.max,
                              (1, 1, 3, 3), (1, 1, 2, 2),
                              ((0, 0), (0, 0), (1, 1), (1, 1)))
    x = lrelu(conv(x, p["w_up"], p["b_up"]))
    N, C, H, W = x.shape
    r, Co = 2, C // 4
    x = x.reshape(N, Co, r, r, H, W).transpose(0, 1, 4, 2, 5, 3).reshape(
        N, Co, H * r, W * r)
    x = jnp.concatenate([x, base], axis=1)
    return conv(x, p["w_last"], p["b_last"])


if __name__ == "__main__":
    num_feat = 4
    key = jax.random.PRNGKey(0)
    kx, kp = jax.random.split(key)
    x = jax.random.normal(kx, (2, 3, 16, 16), jnp.float32)   # NCHW, RGB input
    params = init_params(num_feat, kp)

    fwd = jax.jit(fe_block_forward)
    out = jax.block_until_ready(fwd(x, params))
    assert out.shape == (2, 3, 16, 16), out.shape

    ref = jax.block_until_ready(_ref_forward(x, params))
    # Tolerance covers MXU pass rounding through the selection/scatter matmuls;
    # structural bugs would show O(0.1+) errors.
    err = float(jnp.max(jnp.abs(out - ref)))
    assert jnp.allclose(out, ref, rtol=1e-2, atol=1e-2), err

    print("KERNEL_OK")
</pallas_src>

<mosaic_0001>
module attributes {stable_mosaic.version = 11 : i64} {
  func.func @_fe_block_kernel(%arg0: i32, %arg1: memref<1x3x326xf32, #tpu.memory_space<vmem>>, %arg2: memref<4x27xf32, #tpu.memory_space<vmem>>, %arg3: memref<4x1xf32, #tpu.memory_space<vmem>>, %arg4: memref<16x36xf32, #tpu.memory_space<vmem>>, %arg5: memref<16x1xf32, #tpu.memory_space<vmem>>, %arg6: memref<3x36xf32, #tpu.memory_space<vmem>>, %arg7: memref<3x36xf32, #tpu.memory_space<vmem>>, %arg8: memref<3x1xf32, #tpu.memory_space<vmem>>, %arg9: memref<1x326xf32, #tpu.memory_space<vmem>>, %arg10: memref<288x102xf32, #tpu.memory_space<vmem>>, %arg11: memref<4x80x326xf32, #tpu.memory_space<vmem>>, %arg12: memref<1x3x288xf32, #tpu.memory_space<vmem>>, %arg13: memref<36x288xf32, #tpu.memory_space<vmem>>, %arg14: memref<4x326xf32, #tpu.memory_space<vmem>>) attributes {dimension_semantics = [#tpu.dimension_semantics<parallel>], iteration_bounds = array<i64: 2>, scalar_prefetch = 0 : i64, scratch_operands = 2 : i64, tpu.core_type = #tpu.core_type<tc>, window_params = [{transform_indices = @transform_0, window_bounds = array<i64: 1, 3, 326>}, {pipeline_mode = #tpu.pipeline_mode<synchronous>, transform_indices = @transform_1, window_bounds = array<i64: 4, 27>}, {pipeline_mode = #tpu.pipeline_mode<synchronous>, transform_indices = @transform_2, window_bounds = array<i64: 4, 1>}, {pipeline_mode = #tpu.pipeline_mode<synchronous>, transform_indices = @transform_3, window_bounds = array<i64: 16, 36>}, {pipeline_mode = #tpu.pipeline_mode<synchronous>, transform_indices = @transform_4, window_bounds = array<i64: 16, 1>}, {pipeline_mode = #tpu.pipeline_mode<synchronous>, transform_indices = @transform_5, window_bounds = array<i64: 3, 36>}, {pipeline_mode = #tpu.pipeline_mode<synchronous>, transform_indices = @transform_6, window_bounds = array<i64: 3, 36>}, {pipeline_mode = #tpu.pipeline_mode<synchronous>, transform_indices = @transform_7, window_bounds = array<i64: 3, 1>}, {pipeline_mode = #tpu.pipeline_mode<synchronous>, transform_indices = @transform_8, window_bounds = array<i64: 1, 326>}, {pipeline_mode = #tpu.pipeline_mode<synchronous>, transform_indices = @transform_9, window_bounds = array<i64: 288, 102>}, {pipeline_mode = #tpu.pipeline_mode<synchronous>, transform_indices = @transform_10, window_bounds = array<i64: 4, 80, 326>}, {transform_indices = @transform_11, window_bounds = array<i64: 1, 3, 288>}]} {
    %c0 = arith.constant 0 : index
    %c0_0 = arith.constant 0 : index
    %c0_1 = arith.constant 0 : index
    %0 = vector.load %arg1[%c0, %c0_0, %c0_1] : memref<1x3x326xf32, #tpu.memory_space<vmem>>, vector<1x3x326xf32>
    %1 = vector.shape_cast %0 : vector<1x3x326xf32> to vector<3x326xf32>
    %2 = vector.extract_strided_slice %1 {offsets = [0, 0], sizes = [3, 288], strides = [1, 1]} : vector<3x326xf32> to vector<3x288xf32>
    %c0_2 = arith.constant 0 : index
    %c0_3 = arith.constant 0 : index
    %3 = vector.load %arg13[%c0_2, %c0_3] : memref<36x288xf32, #tpu.memory_space<vmem>>, vector<3x288xf32>
    tpu.vector_store %arg13[%c0_2, %c0_3], %2 {strides = array<i32>} : memref<36x288xf32, #tpu.memory_space<vmem>>, vector<3x288xf32>,
    %4 = vector.extract_strided_slice %1 {offsets = [0, 1], sizes = [3, 288], strides = [1, 1]} : vector<3x326xf32> to vector<3x288xf32>
    %c3 = arith.constant 3 : index
    %c0_4 = arith.constant 0 : index
    %5 = vector.load %arg13[%c3, %c0_4] : memref<36x288xf32, #tpu.memory_space<vmem>>, vector<3x288xf32>
    tpu.vector_store %arg13[%c3, %c0_4], %4 {strides = array<i32>} : memref<36x288xf32, #tpu.memory_space<vmem>>, vector<3x288xf32>,
    %6 = vector.extract_strided_slice %1 {offsets = [0, 2], sizes = [3, 288], strides = [1, 1]} : vector<3x326xf32> to vector<3x288xf32>
    %c6 = arith.constant 6 : index
    %c0_5 = arith.constant 0 : index
    %7 = vector.load %arg13[%c6, %c0_5] : memref<36x288xf32, #tpu.memory_space<vmem>>, vector<3x288xf32>
    tpu.vector_store %arg13[%c6, %c0_5], %6 {strides = array<i32>} : memref<36x288xf32, #tpu.memory_space<vmem>>, vector<3x288xf32>,
    %8 = vector.extract_strided_slice %1 {offsets = [0, 18], sizes = [3, 288], strides = [1, 1]} : vector<3x326xf32> to vector<3x288xf32>
    %c9 = arith.constant 9 : index
    %c0_6 = arith.constant 0 : index
    %9 = vector.load %arg13[%c9, %c0_6] : memref<36x288xf32, #tpu.memory_space<vmem>>, vector<3x288xf32>
    tpu.vector_store %arg13[%c9, %c0_6], %8 {strides = array<i32>} : memref<36x288xf32, #tpu.memory_space<vmem>>, vector<3x288xf32>,
    %10 = vector.extract_strided_slice %1 {offsets = [0, 19], sizes = [3, 288], strides = [1, 1]} : vector<3x326xf32> to vector<3x288xf32>
    %c12 = arith.constant 12 : index
    %c0_7 = arith.constant 0 : index
    %11 = vector.load %arg13[%c12, %c0_7] : memref<36x288xf32, #tpu.memory_space<vmem>>, vector<3x288xf32>
    tpu.vector_store %arg13[%c12, %c0_7], %10 {strides = array<i32>} : memref<36x288xf32, #tpu.memory_space<vmem>>, vector<3x288xf32>,
    %12 = vector.extract_strided_slice %1 {offsets = [0, 20], sizes = [3, 288], strides = [1, 1]} : vector<3x326xf32> to vector<3x288xf32>
    %c15 = arith.constant 15 : index
    %c0_8 = arith.constant 0 : index
    %13 = vector.load %arg13[%c15, %c0_8] : memref<36x288xf32, #tpu.memory_space<vmem>>, vector<3x288xf32>
    tpu.vector_store %arg13[%c15, %c0_8], %12 {strides = array<i32>} : memref<36x288xf32, #tpu.memory_space<vmem>>, vector<3x288xf32>,
    %14 = vector.extract_strided_slice %1 {offsets = [0, 36], sizes = [3, 288], strides = [1, 1]} : vector<3x326xf32> to vector<3x288xf32>
    %c18 = arith.constant 18 : index
    %c0_9 = arith.constant 0 : index
    %15 = vector.load %arg13[%c18, %c0_9] : memref<36x288xf32, #tpu.memory_space<vmem>>, vector<3x288xf32>
    tpu.vector_store %arg13[%c18, %c0_9], %14 {strides = array<i32>} : memref<36x288xf32, #tpu.memory_space<vmem>>, vector<3x288xf32>,
    %16 = vector.extract_strided_slice %1 {offsets = [0, 37], sizes = [3, 288], strides = [1, 1]} : vector<3x326xf32> to vector<3x288xf32>
    %c21 = arith.constant 21 : index
    %c0_10 = arith.constant 0 : index
    %17 = vector.load %arg13[%c21, %c0_10] : memref<36x288xf32, #tpu.memory_space<vmem>>, vector<3x288xf32>
    tpu.vector_store %arg13[%c21, %c0_10], %16 {strides = array<i32>} : memref<36x288xf32, #tpu.memory_space<vmem>>, vector<3x288xf32>,
    %18 = vector.extract_strided_slice %1 {offsets = [0, 38], sizes = [3, 288], strides = [1, 1]} : vector<3x326xf32> to vector<3x288xf32>
    %c24 = arith.constant 24 : index
    %c0_11 = arith.constant 0 : index
    %19 = vector.load %arg13[%c24, %c0_11] : memref<36x288xf32, #tpu.memory_space<vmem>>, vector<3x288xf32>
    tpu.vector_store %arg13[%c24, %c0_11], %18 {strides = array<i32>} : memref<36x288xf32, #tpu.memory_space<vmem>>, vector<3x288xf32>,
    %c0_12 = arith.constant 0 : index
    %c0_13 = arith.constant 0 : index
    %20 = vector.load %arg13[%c0_12, %c0_13] : memref<36x288xf32, #tpu.memory_space<vmem>>, vector<27x288xf32>
    %c0_14 = arith.constant 0 : index
    %c0_15 = arith.constant 0 : index
    %21 = vector.load %arg2[%c0_14, %c0_15] : memref<4x27xf32, #tpu.memory_space<vmem>>, vector<4x27xf32>
    %cst = arith.constant dense<0.000000e+00> : vector<4x288xf32>
    %22 = tpu.matmul %21, %20, %cst {dimension_numbers = #tpu.dot_dimension_numbers<[1], [0], [0], [1], [0, 0, 1, 1], [], []>} : vector<4x27xf32>, vector<27x288xf32>, vector<4x288xf32> -> vector<4x288xf32>
    %c0_16 = arith.constant 0 : index
    %c0_17 = arith.constant 0 : index
    %23 = vector.load %arg3[%c0_16, %c0_17] : memref<4x1xf32, #tpu.memory_space<vmem>>, vector<4x1xf32>
    %24 = vector.broadcast %23 : vector<4x1xf32> to vector<4x288xf32>
    %25 = arith.addf %22, %24 : vector<4x288xf32>
    %cst_18 = arith.constant 0.000000e+00 : f32
    %26 = vector.broadcast %cst_18 : f32 to vector<4x288xf32>
    %27 = arith.cmpf oge, %25, %26 : vector<4x288xf32>
    %cst_19 = arith.constant 1.000000e-01 : f32
    %28 = vector.broadcast %cst_19 : f32 to vector<4x288xf32>
    %29 = arith.mulf %28, %25 : vector<4x288xf32>
    %30 = arith.select %27, %25, %29 : vector<4x288xi1>, vector<4x288xf32>
    %cst_20 = arith.constant 0.000000e+00 : f32
    %31 = vector.broadcast %cst_20 : f32 to vector<4x326xf32>
    %c0_21 = arith.constant 0 : index
    %c0_22 = arith.constant 0 : index
    %32 = vector.load %arg14[%c0_21, %c0_22] : memref<4x326xf32, #tpu.memory_space<vmem>>, vector<4x326xf32>
    tpu.vector_store %arg14[%c0_21, %c0_22], %31 {strides = array<i32>} : memref<4x326xf32, #tpu.memory_space<vmem>>, vector<4x326xf32>,
    %c0_23 = arith.constant 0 : index
    %c19 = arith.constant 19 : index
    %33 = vector.load %arg14[%c0_23, %c19] : memref<4x326xf32, #tpu.memory_space<vmem>>, vector<4x288xf32>
    tpu.vector_store %arg14[%c0_23, %c19], %30 {strides = array<i32>} : memref<4x326xf32, #tpu.memory_space<vmem>>, vector<4x288xf32>,
    %c0_24 = arith.constant 0 : index
    %c0_25 = arith.constant 0 : index
    %34 = vector.load %arg9[%c0_24, %c0_25] : memref<1x326xf32, #tpu.memory_space<vmem>>, vector<1x326xf32>
    %c0_26 = arith.constant 0 : index
    %c0_27 = arith.constant 0 : index
    %35 = vector.load %arg14[%c0_26, %c0_27] : memref<4x326xf32, #tpu.memory_space<vmem>>, vector<4x326xf32>
    %36 = vector.broadcast %34 : vector<1x326xf32> to vector<4x326xf32>
    %37 = arith.mulf %35, %36 : vector<4x326xf32>
    %cst_28 = arith.constant 1.000000e+00 : f32
    %38 = vector.broadcast %cst_28 : f32 to vector<1x326xf32>
    %39 = arith.subf %34, %38 : vector<1x326xf32>
    %cst_29 = arith.constant 1.000000e+30 : f32
    %40 = vector.broadcast %cst_29 : f32 to vector<1x326xf32>
    %41 = arith.mulf %39, %40 : vector<1x326xf32>
    %42 = vector.broadcast %41 : vector<1x326xf32> to vector<4x326xf32>
    %43 = arith.addf %37, %42 : vector<4x326xf32>
    %44 = vector.extract_strided_slice %43 {offsets = [0, 0], sizes = [4, 288], strides = [1, 1]} : vector<4x326xf32> to vector<4x288xf32>
    %45 = vector.extract_strided_slice %43 {offsets = [0, 1], sizes = [4, 288], strides = [1, 1]} : vector<4x326xf32> to vector<4x288xf32>
    %46 = arith.maximumf %44, %45 : vector<4x288xf32>
    %47 = vector.extract_strided_slice %43 {offsets = [0, 2], sizes = [4, 288], strides = [1, 1]} : vector<4x326xf32> to vector<4x288xf32>
    %48 = arith.maximumf %46, %47 : vector<4x288xf32>
    %49 = vector.extract_strided_slice %43 {offsets = [0, 18], sizes = [4, 288], strides = [1, 1]} : vector<4x326xf32> to vector<4x288xf32>
    %50 = arith.maximumf %48, %49 : vector<4x288xf32>
    %51 = vector.extract_strided_slice %43 {offsets = [0, 19], sizes = [4, 288], strides = [1, 1]} : vector<4x326xf32> to vector<4x288xf32>
    %52 = arith.maximumf %50, %51 : vector<4x288xf32>
    %53 = vector.extract_strided_slice %43 {offsets = [0, 20], sizes = [4, 288], strides = [1, 1]} : vector<4x326xf32> to vector<4x288xf32>
    %54 = arith.maximumf %52, %53 : vector<4x288xf32>
    %55 = vector.extract_strided_slice %43 {offsets = [0, 36], sizes = [4, 288], strides = [1, 1]} : vector<4x326xf32> to vector<4x288xf32>
    %56 = arith.maximumf %54, %55 : vector<4x288xf32>
    %57 = vector.extract_strided_slice %43 {offsets = [0, 37], sizes = [4, 288], strides = [1, 1]} : vector<4x326xf32> to vector<4x288xf32>
    %58 = arith.maximumf %56, %57 : vector<4x288xf32>
    %59 = vector.extract_strided_slice %43 {offsets = [0, 38], sizes = [4, 288], strides = [1, 1]} : vector<4x326xf32> to vector<4x288xf32>
    %60 = arith.maximumf %58, %59 : vector<4x288xf32>
    %c0_30 = arith.constant 0 : index
    %c0_31 = arith.constant 0 : index
    %61 = vector.load %arg10[%c0_30, %c0_31] : memref<288x102xf32, #tpu.memory_space<vmem>>, vector<288x102xf32>
    %cst_32 = arith.constant dense<0.000000e+00> : vector<4x102xf32>
    %62 = tpu.matmul %60, %61, %cst_32 {dimension_numbers = #tpu.dot_dimension_numbers<[1], [0], [0], [1], [0, 0, 1, 1], [], []>} : vector<4x288xf32>, vector<288x102xf32>, vector<4x102xf32> -> vector<4x102xf32>
    %63 = vector.extract_strided_slice %62 {offsets = [0, 0], sizes = [4, 80], strides = [1, 1]} : vector<4x102xf32> to vector<4x80xf32>
    %c0_33 = arith.constant 0 : index
    %c0_34 = arith.constant 0 : index
    %64 = vector.load %arg13[%c0_33, %c0_34] : memref<36x288xf32, #tpu.memory_space<vmem>>, vector<4x80xf32>
    tpu.vector_store %arg13[%c0_33, %c0_34], %63 {strides = array<i32>} : memref<36x288xf32, #tpu.memory_space<vmem>>, vector<4x80xf32>,
    %65 = vector.extract_strided_slice %62 {offsets = [0, 1], sizes = [4, 80], strides = [1, 1]} : vector<4x102xf32> to vector<4x80xf32>
    %c4 = arith.constant 4 : index
    %c0_35 = arith.constant 0 : index
    %66 = vector.load %arg13[%c4, %c0_35] : memref<36x288xf32, #tpu.memory_space<vmem>>, vector<4x80xf32>
    tpu.vector_store %arg13[%c4, %c0_35], %65 {strides = array<i32>} : memref<36x288xf32, #tpu.memory_space<vmem>>, vector<4x80xf32>,
    %67 = vector.extract_strided_slice %62 {offsets = [0, 2], sizes = [4, 80], strides = [1, 1]} : vector<4x102xf32> to vector<4x80xf32>
    %c8 = arith.constant 8 : index
    %c0_36 = arith.constant 0 : index
    %68 = vector.load %arg13[%c8, %c0_36] : memref<36x288xf32, #tpu.memory_space<vmem>>, vector<4x80xf32>
    tpu.vector_store %arg13[%c8, %c0_36], %67 {strides = array<i32>} : memref<36x288xf32, #tpu.memory_space<vmem>>, vector<4x80xf32>,
    %69 = vector.extract_strided_slice %62 {offsets = [0, 10], sizes = [4, 80], strides = [1, 1]} : vector<4x102xf32> to vector<4x80xf32>
    %c12_37 = arith.constant 12 : index
    %c0_38 = arith.constant 0 : index
    %70 = vector.load %arg13[%c12_37, %c0_38] : memref<36x288xf32, #tpu.memory_space<vmem>>, vector<4x80xf32>
    tpu.vector_store %arg13[%c12_37, %c0_38], %69 {strides = array<i32>} : memref<36x288xf32, #tpu.memory_space<vmem>>, vector<4x80xf32>,
    %71 = vector.extract_strided_slice %62 {offsets = [0, 11], sizes = [4, 80], strides = [1, 1]} : vector<4x102xf32> to vector<4x80xf32>
    %c16 = arith.constant 16 : index
    %c0_39 = arith.constant 0 : index
    %72 = vector.load %arg13[%c16, %c0_39] : memref<36x288xf32, #tpu.memory_space<vmem>>, vector<4x80xf32>
    tpu.vector_store %arg13[%c16, %c0_39], %71 {strides = array<i32>} : memref<36x288xf32, #tpu.memory_space<vmem>>, vector<4x80xf32>,
    %73 = vector.extract_strided_slice %62 {offsets = [0, 12], sizes = [4, 80], strides = [1, 1]} : vector<4x102xf32> to vector<4x80xf32>
    %c20 = arith.constant 20 : index
    %c0_40 = arith.constant 0 : index
    %74 = vector.load %arg13[%c20, %c0_40] : memref<36x288xf32, #tpu.memory_space<vmem>>, vector<4x80xf32>
    tpu.vector_store %arg13[%c20, %c0_40], %73 {strides = array<i32>} : memref<36x288xf32, #tpu.memory_space<vmem>>, vector<4x80xf32>,
    %75 = vector.extract_strided_slice %62 {offsets = [0, 20], sizes = [4, 80], strides = [1, 1]} : vector<4x102xf32> to vector<4x80xf32>
    %c24_41 = arith.constant 24 : index
    %c0_42 = arith.constant 0 : index
    %76 = vector.load %arg13[%c24_41, %c0_42] : memref<36x288xf32, #tpu.memory_space<vmem>>, vector<4x80xf32>
    tpu.vector_store %arg13[%c24_41, %c0_42], %75 {strides = array<i32>} : memref<36x288xf32, #tpu.memory_space<vmem>>, vector<4x80xf32>,
    %77 = vector.extract_strided_slice %62 {offsets = [0, 21], sizes = [4, 80], strides = [1, 1]} : vector<4x102xf32> to vector<4x80xf32>
    %c28 = arith.constant 28 : index
    %c0_43 = arith.constant 0 : index
    %78 = vector.load %arg13[%c28, %c0_43] : memref<36x288xf32, #tpu.memory_space<vmem>>, vector<4x80xf32>
    tpu.vector_store %arg13[%c28, %c0_43], %77 {strides = array<i32>} : memref<36x288xf32, #tpu.memory_space<vmem>>, vector<4x80xf32>,
    %79 = vector.extract_strided_slice %62 {offsets = [0, 22], sizes = [4, 80], strides = [1, 1]} : vector<4x102xf32> to vector<4x80xf32>
    %c32 = arith.constant 32 : index
    %c0_44 = arith.constant 0 : index
    %80 = vector.load %arg13[%c32, %c0_44] : memref<36x288xf32, #tpu.memory_space<vmem>>, vector<4x80xf32>
    tpu.vector_store %arg13[%c32, %c0_44], %79 {strides = array<i32>} : memref<36x288xf32, #tpu.memory_space<vmem>>, vector<4x80xf32>,
    %c0_45 = arith.constant 0 : index
    %c0_46 = arith.constant 0 : index
    %81 = vector.load %arg13[%c0_45, %c0_46] : memref<36x288xf32, #tpu.memory_space<vmem>>, vector<36x80xf32>
    %c0_47 = arith.constant 0 : index
    %c0_48 = arith.constant 0 : index
    %82 = vector.load %arg4[%c0_47, %c0_48] : memref<16x36xf32, #tpu.memory_space<vmem>>, vector<16x36xf32>
    %cst_49 = arith.constant dense<0.000000e+00> : vector<16x80xf32>
    %83 = tpu.matmul %82, %81, %cst_49 {dimension_numbers = #tpu.dot_dimension_numbers<[1], [0], [0], [1], [0, 0, 1, 1], [], []>} : vector<16x36xf32>, vector<36x80xf32>, vector<16x80xf32> -> vector<16x80xf32>
    %c0_50 = arith.constant 0 : index
    %c0_51 = arith.constant 0 : index
    %84 = vector.load %arg5[%c0_50, %c0_51] : memref<16x1xf32, #tpu.memory_space<vmem>>, vector<16x1xf32>
    %85 = vector.broadcast %84 : vector<16x1xf32> to vector<16x80xf32>
    %86 = arith.addf %83, %85 : vector<16x80xf32>
    %cst_52 = arith.constant 0.000000e+00 : f32
    %87 = vector.broadcast %cst_52 : f32 to vector<16x80xf32>
    %88 = arith.cmpf oge, %86, %87 : vector<16x80xf32>
    %cst_53 = arith.constant 1.000000e-01 : f32
    %89 = vector.broadcast %cst_53 : f32 to vector<16x80xf32>
    %90 = arith.mulf %89, %86 : vector<16x80xf32>
    %91 = arith.select %88, %86, %90 : vector<16x80xi1>, vector<16x80xf32>
    %92 = vector.extract_strided_slice %91 {offsets = [0, 0], sizes = [4, 80], strides = [1, 1]} : vector<16x80xf32> to vector<4x80xf32>
    %c0_54 = arith.constant 0 : index
    %c0_55 = arith.constant 0 : index
    %c0_56 = arith.constant 0 : index
    %93 = vector.load %arg11[%c0_54, %c0_55, %c0_56] : memref<4x80x326xf32, #tpu.memory_space<vmem>>, vector<1x80x326xf32>
    %94 = vector.shape_cast %93 : vector<1x80x326xf32> to vector<80x326xf32>
    %cst_57 = arith.constant dense<0.000000e+00> : vector<4x326xf32>
    %95 = tpu.matmul %92, %94, %cst_57 {dimension_numbers = #tpu.dot_dimension_numbers<[1], [0], [0], [1], [0, 0, 1, 1], [], []>} : vector<4x80xf32>, vector<80x326xf32>, vector<4x326xf32> -> vector<4x326xf32>
    %96 = vector.extract_strided_slice %91 {offsets = [4, 0], sizes = [4, 80], strides = [1, 1]} : vector<16x80xf32> to vector<4x80xf32>
    %c1 = arith.constant 1 : index
    %c0_58 = arith.constant 0 : index
    %c0_59 = arith.constant 0 : index
    %97 = vector.load %arg11[%c1, %c0_58, %c0_59] : memref<4x80x326xf32, #tpu.memory_space<vmem>>, vector<1x80x326xf32>
    %98 = vector.shape_cast %97 : vector<1x80x326xf32> to vector<80x326xf32>
    %cst_60 = arith.constant dense<0.000000e+00> : vector<4x326xf32>
    %99 = tpu.matmul %96, %98, %cst_60 {dimension_numbers = #tpu.dot_dimension_numbers<[1], [0], [0], [1], [0, 0, 1, 1], [], []>} : vector<4x80xf32>, vector<80x326xf32>, vector<4x326xf32> -> vector<4x326xf32>
    %100 = arith.addf %95, %99 : vector<4x326xf32>
    %101 = vector.extract_strided_slice %91 {offsets = [8, 0], sizes = [4, 80], strides = [1, 1]} : vector<16x80xf32> to vector<4x80xf32>
    %c2 = arith.constant 2 : index
    %c0_61 = arith.constant 0 : index
    %c0_62 = arith.constant 0 : index
    %102 = vector.load %arg11[%c2, %c0_61, %c0_62] : memref<4x80x326xf32, #tpu.memory_space<vmem>>, vector<1x80x326xf32>
    %103 = vector.shape_cast %102 : vector<1x80x326xf32> to vector<80x326xf32>
    %cst_63 = arith.constant dense<0.000000e+00> : vector<4x326xf32>
    %104 = tpu.matmul %101, %103, %cst_63 {dimension_numbers = #tpu.dot_dimension_numbers<[1], [0], [0], [1], [0, 0, 1, 1], [], []>} : vector<4x80xf32>, vector<80x326xf32>, vector<4x326xf32> -> vector<4x326xf32>
    %105 = arith.addf %100, %104 : vector<4x326xf32>
    %106 = vector.extract_strided_slice %91 {offsets = [12, 0], sizes = [4, 80], strides = [1, 1]} : vector<16x80xf32> to vector<4x80xf32>
    %c3_64 = arith.constant 3 : index
    %c0_65 = arith.constant 0 : index
    %c0_66 = arith.constant 0 : index
    %107 = vector.load %arg11[%c3_64, %c0_65, %c0_66] : memref<4x80x326xf32, #tpu.memory_space<vmem>>, vector<1x80x326xf32>
    %108 = vector.shape_cast %107 : vector<1x80x326xf32> to vector<80x326xf32>
    %cst_67 = arith.constant dense<0.000000e+00> : vector<4x326xf32>
    %109 = tpu.matmul %106, %108, %cst_67 {dimension_numbers = #tpu.dot_dimension_numbers<[1], [0], [0], [1], [0, 0, 1, 1], [], []>} : vector<4x80xf32>, vector<80x326xf32>, vector<4x326xf32> -> vector<4x326xf32>
    %110 = arith.addf %105, %109 : vector<4x326xf32>
    %111 = vector.extract_strided_slice %110 {offsets = [0, 0], sizes = [4, 288], strides = [1, 1]} : vector<4x326xf32> to vector<4x288xf32>
    %c0_68 = arith.constant 0 : index
    %c0_69 = arith.constant 0 : index
    %112 = vector.load %arg13[%c0_68, %c0_69] : memref<36x288xf32, #tpu.memory_space<vmem>>, vector<4x288xf32>
    tpu.vector_store %arg13[%c0_68, %c0_69], %111 {strides = array<i32>} : memref<36x288xf32, #tpu.memory_space<vmem>>, vector<4x288xf32>,
    %113 = vector.extract_strided_slice %110 {offsets = [0, 1], sizes = [4, 288], strides = [1, 1]} : vector<4x326xf32> to vector<4x288xf32>
    %c4_70 = arith.constant 4 : index
    %c0_71 = arith.constant 0 : index
    %114 = vector.load %arg13[%c4_70, %c0_71] : memref<36x288xf32, #tpu.memory_space<vmem>>, vector<4x288xf32>
    tpu.vector_store %arg13[%c4_70, %c0_71], %113 {strides = array<i32>} : memref<36x288xf32, #tpu.memory_space<vmem>>, vector<4x288xf32>,
    %115 = vector.extract_strided_slice %110 {offsets = [0, 2], sizes = [4, 288], strides = [1, 1]} : vector<4x326xf32> to vector<4x288xf32>
    %c8_72 = arith.constant 8 : index
    %c0_73 = arith.constant 0 : index
    %116 = vector.load %arg13[%c8_72, %c0_73] : memref<36x288xf32, #tpu.memory_space<vmem>>, vector<4x288xf32>
    tpu.vector_store %arg13[%c8_72, %c0_73], %115 {strides = array<i32>} : memref<36x288xf32, #tpu.memory_space<vmem>>, vector<4x288xf32>,
    %117 = vector.extract_strided_slice %110 {offsets = [0, 18], sizes = [4, 288], strides = [1, 1]} : vector<4x326xf32> to vector<4x288xf32>
    %c12_74 = arith.constant 12 : index
    %c0_75 = arith.constant 0 : index
    %118 = vector.load %arg13[%c12_74, %c0_75] : memref<36x288xf32, #tpu.memory_space<vmem>>, vector<4x288xf32>
    tpu.vector_store %arg13[%c12_74, %c0_75], %117 {strides = array<i32>} : memref<36x288xf32, #tpu.memory_space<vmem>>, vector<4x288xf32>,
    %119 = vector.extract_strided_slice %110 {offsets = [0, 19], sizes = [4, 288], strides = [1, 1]} : vector<4x326xf32> to vector<4x288xf32>
    %c16_76 = arith.constant 16 : index
    %c0_77 = arith.constant 0 : index
    %120 = vector.load %arg13[%c16_76, %c0_77] : memref<36x288xf32, #tpu.memory_space<vmem>>, vector<4x288xf32>
    tpu.vector_store %arg13[%c16_76, %c0_77], %119 {strides = array<i32>} : memref<36x288xf32, #tpu.memory_space<vmem>>, vector<4x288xf32>,
    %121 = vector.extract_strided_slice %110 {offsets = [0, 20], sizes = [4, 288], strides = [1, 1]} : vector<4x326xf32> to vector<4x288xf32>
    %c20_78 = arith.constant 20 : index
    %c0_79 = arith.constant 0 : index
    %122 = vector.load %arg13[%c20_78, %c0_79] : memref<36x288xf32, #tpu.memory_space<vmem>>, vector<4x288xf32>
    tpu.vector_store %arg13[%c20_78, %c0_79], %121 {strides = array<i32>} : memref<36x288xf32, #tpu.memory_space<vmem>>, vector<4x288xf32>,
    %123 = vector.extract_strided_slice %110 {offsets = [0, 36], sizes = [4, 288], strides = [1, 1]} : vector<4x326xf32> to vector<4x288xf32>
    %c24_80 = arith.constant 24 : index
    %c0_81 = arith.constant 0 : index
    %124 = vector.load %arg13[%c24_80, %c0_81] : memref<36x288xf32, #tpu.memory_space<vmem>>, vector<4x288xf32>
    tpu.vector_store %arg13[%c24_80, %c0_81], %123 {strides = array<i32>} : memref<36x288xf32, #tpu.memory_space<vmem>>, vector<4x288xf32>,
    %125 = vector.extract_strided_slice %110 {offsets = [0, 37], sizes = [4, 288], strides = [1, 1]} : vector<4x326xf32> to vector<4x288xf32>
    %c28_82 = arith.constant 28 : index
    %c0_83 = arith.constant 0 : index
    %126 = vector.load %arg13[%c28_82, %c0_83] : memref<36x288xf32, #tpu.memory_space<vmem>>, vector<4x288xf32>
    tpu.vector_store %arg13[%c28_82, %c0_83], %125 {strides = array<i32>} : memref<36x288xf32, #tpu.memory_space<vmem>>, vector<4x288xf32>,
    %127 = vector.extract_strided_slice %110 {offsets = [0, 38], sizes = [4, 288], strides = [1, 1]} : vector<4x326xf32> to vector<4x288xf32>
    %c32_84 = arith.constant 32 : index
    %c0_85 = arith.constant 0 : index
    %128 = vector.load %arg13[%c32_84, %c0_85] : memref<36x288xf32, #tpu.memory_space<vmem>>, vector<4x288xf32>
    tpu.vector_store %arg13[%c32_84, %c0_85], %127 {strides = array<i32>} : memref<36x288xf32, #tpu.memory_space<vmem>>, vector<4x288xf32>,
    %c0_86 = arith.constant 0 : index
    %c0_87 = arith.constant 0 : index
    %129 = vector.load %arg13[%c0_86, %c0_87] : memref<36x288xf32, #tpu.memory_space<vmem>>, vector<36x288xf32>
    %c0_88 = arith.constant 0 : index
    %c0_89 = arith.constant 0 : index
    %130 = vector.load %arg6[%c0_88, %c0_89] : memref<3x36xf32, #tpu.memory_space<vmem>>, vector<3x36xf32>
    %cst_90 = arith.constant dense<0.000000e+00> : vector<3x288xf32>
    %131 = tpu.matmul %130, %129, %cst_90 {dimension_numbers = #tpu.dot_dimension_numbers<[1], [0], [0], [1], [0, 0, 1, 1], [], []>} : vector<3x36xf32>, vector<36x288xf32>, vector<3x288xf32> -> vector<3x288xf32>
    %132 = vector.extract_strided_slice %37 {offsets = [0, 0], sizes = [4, 288], strides = [1, 1]} : vector<4x326xf32> to vector<4x288xf32>
    %c0_91 = arith.constant 0 : index
    %c0_92 = arith.constant 0 : index
    %133 = vector.load %arg13[%c0_91, %c0_92] : memref<36x288xf32, #tpu.memory_space<vmem>>, vector<4x288xf32>
    tpu.vector_store %arg13[%c0_91, %c0_92], %132 {strides = array<i32>} : memref<36x288xf32, #tpu.memory_space<vmem>>, vector<4x288xf32>,
    %134 = vector.extract_strided_slice %37 {offsets = [0, 1], sizes = [4, 288], strides = [1, 1]} : vector<4x326xf32> to vector<4x288xf32>
    %c4_93 = arith.constant 4 : index
    %c0_94 = arith.constant 0 : index
    %135 = vector.load %arg13[%c4_93, %c0_94] : memref<36x288xf32, #tpu.memory_space<vmem>>, vector<4x288xf32>
    tpu.vector_store %arg13[%c4_93, %c0_94], %134 {strides = array<i32>} : memref<36x288xf32, #tpu.memory_space<vmem>>, vector<4x288xf32>,
    %136 = vector.extract_strided_slice %37 {offsets = [0, 2], sizes = [4, 288], strides = [1, 1]} : vector<4x326xf32> to vector<4x288xf32>
    %c8_95 = arith.constant 8 : index
    %c0_96 = arith.constant 0 : index
    %137 = vector.load %arg13[%c8_95, %c0_96] : memref<36x288xf32, #tpu.memory_space<vmem>>, vector<4x288xf32>
    tpu.vector_store %arg13[%c8_95, %c0_96], %136 {strides = array<i32>} : memref<36x288xf32, #tpu.memory_space<vmem>>, vector<4x288xf32>,
    %138 = vector.extract_strided_slice %37 {offsets = [0, 18], sizes = [4, 288], strides = [1, 1]} : vector<4x326xf32> to vector<4x288xf32>
    %c12_97 = arith.constant 12 : index
    %c0_98 = arith.constant 0 : index
    %139 = vector.load %arg13[%c12_97, %c0_98] : memref<36x288xf32, #tpu.memory_space<vmem>>, vector<4x288xf32>
    tpu.vector_store %arg13[%c12_97, %c0_98], %138 {strides = array<i32>} : memref<36x288xf32, #tpu.memory_space<vmem>>, vector<4x288xf32>,
    %140 = vector.extract_strided_slice %37 {offsets = [0, 19], sizes = [4, 288], strides = [1, 1]} : vector<4x326xf32> to vector<4x288xf32>
    %c16_99 = arith.constant 16 : index
    %c0_100 = arith.constant 0 : index
    %141 = vector.load %arg13[%c16_99, %c0_100] : memref<36x288xf32, #tpu.memory_space<vmem>>, vector<4x288xf32>
    tpu.vector_store %arg13[%c16_99, %c0_100], %140 {strides = array<i32>} : memref<36x288xf32, #tpu.memory_space<vmem>>, vector<4x288xf32>,
    %142 = vector.extract_strided_slice %37 {offsets = [0, 20], sizes = [4, 288], strides = [1, 1]} : vector<4x326xf32> to vector<4x288xf32>
    %c20_101 = arith.constant 20 : index
    %c0_102 = arith.constant 0 : index
    %143 = vector.load %arg13[%c20_101, %c0_102] : memref<36x288xf32, #tpu.memory_space<vmem>>, vector<4x288xf32>
    tpu.vector_store %arg13[%c20_101, %c0_102], %142 {strides = array<i32>} : memref<36x288xf32, #tpu.memory_space<vmem>>, vector<4x288xf32>,
    %144 = vector.extract_strided_slice %37 {offsets = [0, 36], sizes = [4, 288], strides = [1, 1]} : vector<4x326xf32> to vector<4x288xf32>
    %c24_103 = arith.constant 24 : index
    %c0_104 = arith.constant 0 : index
    %145 = vector.load %arg13[%c24_103, %c0_104] : memref<36x288xf32, #tpu.memory_space<vmem>>, vector<4x288xf32>
    tpu.vector_store %arg13[%c24_103, %c0_104], %144 {strides = array<i32>} : memref<36x288xf32, #tpu.memory_space<vmem>>, vector<4x288xf32>,
    %146 = vector.extract_strided_slice %37 {offsets = [0, 37], sizes = [4, 288], strides = [1, 1]} : vector<4x326xf32> to vector<4x288xf32>
    %c28_105 = arith.constant 28 : index
    %c0_106 = arith.constant 0 : index
    %147 = vector.load %arg13[%c28_105, %c0_106] : memref<36x288xf32, #tpu.memory_space<vmem>>, vector<4x288xf32>
    tpu.vector_store %arg13[%c28_105, %c0_106], %146 {strides = array<i32>} : memref<36x288xf32, #tpu.memory_space<vmem>>, vector<4x288xf32>,
    %148 = vector.extract_strided_slice %37 {offsets = [0, 38], sizes = [4, 288], strides = [1, 1]} : vector<4x326xf32> to vector<4x288xf32>
    %c32_107 = arith.constant 32 : index
    %c0_108 = arith.constant 0 : index
    %149 = vector.load %arg13[%c32_107, %c0_108] : memref<36x288xf32, #tpu.memory_space<vmem>>, vector<4x288xf32>
    tpu.vector_store %arg13[%c32_107, %c0_108], %148 {strides = array<i32>} : memref<36x288xf32, #tpu.memory_space<vmem>>, vector<4x288xf32>,
    %c0_109 = arith.constant 0 : index
    %c0_110 = arith.constant 0 : index
    %150 = vector.load %arg13[%c0_109, %c0_110] : memref<36x288xf32, #tpu.memory_space<vmem>>, vector<36x288xf32>
    %c0_111 = arith.constant 0 : index
    %c0_112 = arith.constant 0 : index
    %151 = vector.load %arg7[%c0_111, %c0_112] : memref<3x36xf32, #tpu.memory_space<vmem>>, vector<3x36xf32>
    %cst_113 = arith.constant dense<0.000000e+00> : vector<3x288xf32>
    %152 = tpu.matmul %151, %150, %cst_113 {dimension_numbers = #tpu.dot_dimension_numbers<[1], [0], [0], [1], [0, 0, 1, 1], [], []>} : vector<3x36xf32>, vector<36x288xf32>, vector<3x288xf32> -> vector<3x288xf32>
    %153 = arith.addf %131, %152 : vector<3x288xf32>
    %c0_114 = arith.constant 0 : index
    %c0_115 = arith.constant 0 : index
    %154 = vector.load %arg8[%c0_114, %c0_115] : memref<3x1xf32, #tpu.memory_space<vmem>>, vector<3x1xf32>
    %155 = vector.broadcast %154 : vector<3x1xf32> to vector<3x288xf32>
    %156 = arith.addf %153, %155 : vector<3x288xf32>
    %c0_116 = arith.constant 0 : index
    %c0_117 = arith.constant 0 : index
    %c0_118 = arith.constant 0 : index
    %157 = vector.load %arg12[%c0_116, %c0_117, %c0_118] : memref<1x3x288xf32, #tpu.memory_space<vmem>>, vector<1x3x288xf32>
    %158 = vector.shape_cast %157 : vector<1x3x288xf32> to vector<3x288xf32>
    %159 = vector.shape_cast %156 : vector<3x288xf32> to vector<1x3x288xf32>
    tpu.vector_store %arg12[%c0_116, %c0_117, %c0_118], %159 {strides = array<i32>} : memref<1x3x288xf32, #tpu.memory_space<vmem>>, vector<1x3x288xf32>,
    return
  }
  func.func @transform_0(%arg0: i32) -> (i32, i32, i32) {
    %c0_i32 = arith.constant 0 : i32
    %c0_i32_0 = arith.constant 0 : i32
    %c0_i32_1 = arith.constant 0 : i32
    return %arg0, %c0_i32, %c0_i32_0 : i32, i32, i32
  }
  func.func @transform_1(%arg0: i32) -> (i32, i32) {
    %c0_i32 = arith.constant 0 : i32
    %c0_i32_0 = arith.constant 0 : i32
    %c0_i32_1 = arith.constant 0 : i32
    return %c0_i32, %c0_i32_0 : i32, i32
  }
  func.func @transform_2(%arg0: i32) -> (i32, i32) {
    %c0_i32 = arith.constant 0 : i32
    %c0_i32_0 = arith.constant 0 : i32
    %c0_i32_1 = arith.constant 0 : i32
    return %c0_i32, %c0_i32_0 : i32, i32
  }
  func.func @transform_3(%arg0: i32) -> (i32, i32) {
    %c0_i32 = arith.constant 0 : i32
    %c0_i32_0 = arith.constant 0 : i32
    %c0_i32_1 = arith.constant 0 : i32
    return %c0_i32, %c0_i32_0 : i32, i32
  }
  func.func @transform_4(%arg0: i32) -> (i32, i32) {
    %c0_i32 = arith.constant 0 : i32
    %c0_i32_0 = arith.constant 0 : i32
    %c0_i32_1 = arith.constant 0 : i32
    return %c0_i32, %c0_i32_0 : i32, i32
  }
  func.func @transform_5(%arg0: i32) -> (i32, i32) {
    %c0_i32 = arith.constant 0 : i32
    %c0_i32_0 = arith.constant 0 : i32
    %c0_i32_1 = arith.constant 0 : i32
    return %c0_i32, %c0_i32_0 : i32, i32
  }
  func.func @transform_6(%arg0: i32) -> (i32, i32) {
    %c0_i32 = arith.constant 0 : i32
    %c0_i32_0 = arith.constant 0 : i32
    %c0_i32_1 = arith.constant 0 : i32
    return %c0_i32, %c0_i32_0 : i32, i32
  }
  func.func @transform_7(%arg0: i32) -> (i32, i32) {
    %c0_i32 = arith.constant 0 : i32
    %c0_i32_0 = arith.constant 0 : i32
    %c0_i32_1 = arith.constant 0 : i32
    return %c0_i32, %c0_i32_0 : i32, i32
  }
  func.func @transform_8(%arg0: i32) -> (i32, i32) {
    %c0_i32 = arith.constant 0 : i32
    %c0_i32_0 = arith.constant 0 : i32
    %c0_i32_1 = arith.constant 0 : i32
    return %c0_i32, %c0_i32_0 : i32, i32
  }
  func.func @transform_9(%arg0: i32) -> (i32, i32) {
    %c0_i32 = arith.constant 0 : i32
    %c0_i32_0 = arith.constant 0 : i32
    %c0_i32_1 = arith.constant 0 : i32
    return %c0_i32, %c0_i32_0 : i32, i32
  }
  func.func @transform_10(%arg0: i32) -> (i32, i32, i32) {
    %c0_i32 = arith.constant 0 : i32
    %c0_i32_0 = arith.constant 0 : i32
    %c0_i32_1 = arith.constant 0 : i32
    %c0_i32_2 = arith.constant 0 : i32
    return %c0_i32, %c0_i32_0, %c0_i32_1 : i32, i32, i32
  }
  func.func @transform_11(%arg0: i32) -> (i32, i32, i32) {
    %c0_i32 = arith.constant 0 : i32
    %c0_i32_0 = arith.constant 0 : i32
    %c0_i32_1 = arith.constant 0 : i32
    return %arg0, %c0_i32, %c0_i32_0 : i32, i32, i32
  }
}

</mosaic_0001>

<llo_original>
// kernel: fe_block_forward.1
$region0: #{fe_block_forward.1}
  #allocation0 [shape = 'u32[]', space=smem, size = 0x4, offset = 0x4, fixed_abs, tag = 'smem constant byte address 0x4 - core index']
  #allocation1 [shape = 'u32[144,128]{1,0:T(1,128)}', space=vmem, size = 0x12000, scoped, tag = 'internal scratch']
  #allocation2 [shape = 'f32[36,288]{1,0:T(8,128)}', space=vmem, size = 0xf000, scoped, tag = 'scratch operand']
  #allocation3 [shape = 'f32[4,326]{1,0:T(4,128)}', space=vmem, size = 0x1800, scoped, tag = 'scratch operand']
  %s0 = inlined_call_operand.vmem [shape: f32[2,3,326], index: 0, kind: input, shape index: {}]
  %s1 = inlined_call_operand.vmem [shape: f32[4,27], index: 1, kind: input, shape index: {}]
  %s2 = inlined_call_operand.vmem [shape: f32[4,1], index: 2, kind: input, shape index: {}]
  %s3 = inlined_call_operand.vmem [shape: f32[16,36], index: 3, kind: input, shape index: {}]
  %s4 = inlined_call_operand.vmem [shape: f32[16,1], index: 4, kind: input, shape index: {}]
  %s5 = inlined_call_operand.vmem [shape: f32[3,36], index: 5, kind: input, shape index: {}]
  %s6 = inlined_call_operand.vmem [shape: f32[3,36], index: 6, kind: input, shape index: {}]
  %s7 = inlined_call_operand.vmem [shape: f32[3,1], index: 7, kind: input, shape index: {}]
  %s8 = inlined_call_operand.vmem [shape: f32[1,326], index: 8, kind: input, shape index: {}]
  %s9 = inlined_call_operand.vmem [shape: f32[288,102], index: 9, kind: input, shape index: {}]
  %s10 = inlined_call_operand.vmem [shape: f32[4,80,326], index: 10, kind: input, shape index: {}]
  %s11 = inlined_call_operand.vmem [shape: f32[2,3,288], index: 11, kind: output, shape index: {}]
  %s12 = sld [smem:[#allocation0]]
  $region77: #{fe_block_forward.1} parent=0
    _
  %s14 = ssub.s32 1, %s12
  %s15 = scalar_select 0, %s14, %s12
  loop: start=0, step=1, limit=4
  $region2: #{fe_block_forward.1} parent=0 // loop_pre_header
    _
  $region3: #{fe_block_forward.1} parent=0 // loop_header
    %s17 = sphi 0, %s21
    %p18 = scmp.ge.s32.totalorder %s17, 4
    %s27 = sphi 0, %s29
    %s30 = sphi 0, %s27
    %s31 = sphi 0, %s30
    %s47 = sphi 0, %s31
    %s51 = sphi 0, %s51
    %s53 = sphi 0, %s51
    %s54 = sphi 0, %s53
    %s68 = sphi 0, %s54
    %s72 = sphi 0, %s72
    %s74 = sphi 0, %s72
    %s75 = sphi 0, %s74
    %s89 = sphi 0, %s75
    %s93 = sphi 0, %s93
    %s95 = sphi 0, %s93
    %s96 = sphi 0, %s95
    %s110 = sphi 0, %s96
    %s114 = sphi 0, %s114
    %s116 = sphi 0, %s114
    %s117 = sphi 0, %s116
    %s131 = sphi 0, %s117
    %s135 = sphi 0, %s135
    %s137 = sphi 0, %s135
    %s138 = sphi 0, %s137
    %s152 = sphi 0, %s138
    %s156 = sphi 0, %s156
    %s158 = sphi 0, %s156
    %s159 = sphi 0, %s158
    %s173 = sphi 0, %s159
    %s177 = sphi 0, %s177
    %s179 = sphi 0, %s177
    %s180 = sphi 0, %s179
    %s194 = sphi 0, %s180
    %s198 = sphi 0, %s198
    %s200 = sphi 0, %s198
    %s201 = sphi 0, %s200
    %s215 = sphi 0, %s201
    %s219 = sphi 0, %s219
    %s221 = sphi 0, %s219
    %s222 = sphi 0, %s221
    %s236 = sphi 0, %s222
    %s240 = sphi 0, %s240
    %s242 = sphi 0, %s240
    %s243 = sphi 0, %s242
    %s257 = sphi 0, %s243
    %s263 = sphi 0, %s265
    %s266 = sphi 0, %s263
    %s267 = sphi 0, %s266
    %s283 = sphi 0, %s267
  $region4: #{fe_block_forward.1} parent=0 // loop_header_branch
    %20 = sbr.rel (%p18) target = $region8
  $region5: #{fe_block_forward.1} parent=0 // loop_body
    %s22 = ssub.s32 %s17, 1
    %s23 = ssub.s32 %s17, 2
    %s24 = sadd.s32 %s17, 1
    %s25 = ssub.s32 %s17, %s24
    %p26 = scmp.eq.s32.totalorder %s25, 0
    %s28 = sadd.s32 %s27, 1
    %s29 = scalar_select %p26, %s27, %s28
    %p32 = pneg %p26
    %p33 = scmp.eq.s32.totalorder %s17, 1
    %p34 = por %p32, %p33
    %p35 = scmp.ne.s32.totalorder %s27, %s30
    %p36 = scmp.eq.s32.totalorder %s17, 0
    %p37 = por %p35, %p36
    %p38 = scmp.ne.s32.totalorder %s27, %s30
    %p39 = scmp.eq.s32.totalorder %s22, 1
    %p40 = por %p38, %p39
    %p41 = scmp.ne.s32.totalorder %s30, %s31
    %p42 = scmp.eq.s32.totalorder %s22, 0
    %p43 = por %p41, %p42
    %p44 = scmp.ne.s32.totalorder %s30, %s31
    %p45 = scmp.eq.s32.totalorder %s23, 1
    %p46 = por %p44, %p45
    %p48 = scmp.ne.s32.totalorder %s31, %s47
    %p49 = scmp.eq.s32.totalorder %s23, 0
    %p50 = por %p48, %p49
    %s52 = sadd.s32 %s51, 1
    %p55 = scmp.eq.s32.totalorder %s17, 1
    %p56 = scmp.ne.s32.totalorder %s51, %s53
    %p57 = scmp.eq.s32.totalorder %s17, 0
    %p58 = por %p56, %p57
    %p59 = scmp.ne.s32.totalorder %s51, %s53
    %p60 = scmp.eq.s32.totalorder %s22, 1
    %p61 = por %p59, %p60
    %p62 = scmp.ne.s32.totalorder %s53, %s54
    %p63 = scmp.eq.s32.totalorder %s22, 0
    %p64 = por %p62, %p63
    %p65 = scmp.ne.s32.totalorder %s53, %s54
    %p66 = scmp.eq.s32.totalorder %s23, 1
    %p67 = por %p65, %p66
    %p69 = scmp.ne.s32.totalorder %s54, %s68
    %p70 = scmp.eq.s32.totalorder %s23, 0
    %p71 = por %p69, %p70
    %s73 = sadd.s32 %s72, 1
    %p76 = scmp.eq.s32.totalorder %s17, 1
    %p77 = scmp.ne.s32.totalorder %s72, %s74
    %p78 = scmp.eq.s32.totalorder %s17, 0
    %p79 = por %p77, %p78
    %p80 = scmp.ne.s32.totalorder %s72, %s74
    %p81 = scmp.eq.s32.totalorder %s22, 1
    %p82 = por %p80, %p81
    %p83 = scmp.ne.s32.totalorder %s74, %s75
    %p84 = scmp.eq.s32.totalorder %s22, 0
    %p85 = por %p83, %p84
    %p86 = scmp.ne.s32.totalorder %s74, %s75
    %p87 = scmp.eq.s32.totalorder %s23, 1
    %p88 = por %p86, %p87
    %p90 = scmp.ne.s32.totalorder %s75, %s89
    %p91 = scmp.eq.s32.totalorder %s23, 0
    %p92 = por %p90, %p91
    %s94 = sadd.s32 %s93, 1
    %p97 = scmp.eq.s32.totalorder %s17, 1
    %p98 = scmp.ne.s32.totalorder %s93, %s95
    %p99 = scmp.eq.s32.totalorder %s17, 0
    %p100 = por %p98, %p99
    %p101 = scmp.ne.s32.totalorder %s93, %s95
    %p102 = scmp.eq.s32.totalorder %s22, 1
    %p103 = por %p101, %p102
    %p104 = scmp.ne.s32.totalorder %s95, %s96
    %p105 = scmp.eq.s32.totalorder %s22, 0
    %p106 = por %p104, %p105
    %p107 = scmp.ne.s32.totalorder %s95, %s96
    %p108 = scmp.eq.s32.totalorder %s23, 1
    %p109 = por %p107, %p108
    %p111 = scmp.ne.s32.totalorder %s96, %s110
    %p112 = scmp.eq.s32.totalorder %s23, 0
    %p113 = por %p111, %p112
    %s115 = sadd.s32 %s114, 1
    %p118 = scmp.eq.s32.totalorder %s17, 1
    %p119 = scmp.ne.s32.totalorder %s114, %s116
    %p120 = scmp.eq.s32.totalorder %s17, 0
    %p121 = por %p119, %p120
    %p122 = scmp.ne.s32.totalorder %s114, %s116
    %p123 = scmp.eq.s32.totalorder %s22, 1
    %p124 = por %p122, %p123
    %p125 = scmp.ne.s32.totalorder %s116, %s117
    %p126 = scmp.eq.s32.totalorder %s22, 0
    %p127 = por %p125, %p126
    %p128 = scmp.ne.s32.totalorder %s116, %s117
    %p129 = scmp.eq.s32.totalorder %s23, 1
    %p130 = por %p128, %p129
    %p132 = scmp.ne.s32.totalorder %s117, %s131
    %p133 = scmp.eq.s32.totalorder %s23, 0
    %p134 = por %p132, %p133
    %s136 = sadd.s32 %s135, 1
    %p139 = scmp.eq.s32.totalorder %s17, 1
    %p140 = scmp.ne.s32.totalorder %s135, %s137
    %p141 = scmp.eq.s32.totalorder %s17, 0
    %p142 = por %p140, %p141
    %p143 = scmp.ne.s32.totalorder %s135, %s137
    %p144 = scmp.eq.s32.totalorder %s22, 1
    %p145 = por %p143, %p144
    %p146 = scmp.ne.s32.totalorder %s137, %s138
    %p147 = scmp.eq.s32.totalorder %s22, 0
    %p148 = por %p146, %p147
    %p149 = scmp.ne.s32.totalorder %s137, %s138
    %p150 = scmp.eq.s32.totalorder %s23, 1
    %p151 = por %p149, %p150
    %p153 = scmp.ne.s32.totalorder %s138, %s152
    %p154 = scmp.eq.s32.totalorder %s23, 0
    %p155 = por %p153, %p154
    %s157 = sadd.s32 %s156, 1
    %p160 = scmp.eq.s32.totalorder %s17, 1
    %p161 = scmp.ne.s32.totalorder %s156, %s158
    %p162 = scmp.eq.s32.totalorder %s17, 0
    %p163 = por %p161, %p162
    %p164 = scmp.ne.s32.totalorder %s156, %s158
    %p165 = scmp.eq.s32.totalorder %s22, 1
    %p166 = por %p164, %p165
    %p167 = scmp.ne.s32.totalorder %s158, %s159
    %p168 = scmp.eq.s32.totalorder %s22, 0
    %p169 = por %p167, %p168
    %p170 = scmp.ne.s32.totalorder %s158, %s159
    %p171 = scmp.eq.s32.totalorder %s23, 1
    %p172 = por %p170, %p171
    %p174 = scmp.ne.s32.totalorder %s159, %s173
    %p175 = scmp.eq.s32.totalorder %s23, 0
    %p176 = por %p174, %p175
    %s178 = sadd.s32 %s177, 1
    %p181 = scmp.eq.s32.totalorder %s17, 1
    %p182 = scmp.ne.s32.totalorder %s177, %s179
    %p183 = scmp.eq.s32.totalorder %s17, 0
    %p184 = por %p182, %p183
    %p185 = scmp.ne.s32.totalorder %s177, %s179
    %p186 = scmp.eq.s32.totalorder %s22, 1
    %p187 = por %p185, %p186
    %p188 = scmp.ne.s32.totalorder %s179, %s180
    %p189 = scmp.eq.s32.totalorder %s22, 0
    %p190 = por %p188, %p189
    %p191 = scmp.ne.s32.totalorder %s179, %s180
    %p192 = scmp.eq.s32.totalorder %s23, 1
    %p193 = por %p191, %p192
    %p195 = scmp.ne.s32.totalorder %s180, %s194
    %p196 = scmp.eq.s32.totalorder %s23, 0
    %p197 = por %p195, %p196
    %s199 = sadd.s32 %s198, 1
    %p202 = scmp.eq.s32.totalorder %s17, 1
    %p203 = scmp.ne.s32.totalorder %s198, %s200
    %p204 = scmp.eq.s32.totalorder %s17, 0
    %p205 = por %p203, %p204
    %p206 = scmp.ne.s32.totalorder %s198, %s200
    %p207 = scmp.eq.s32.totalorder %s22, 1
    %p208 = por %p206, %p207
    %p209 = scmp.ne.s32.totalorder %s200, %s201
    %p210 = scmp.eq.s32.totalorder %s22, 0
    %p211 = por %p209, %p210
    %p212 = scmp.ne.s32.totalorder %s200, %s201
    %p213 = scmp.eq.s32.totalorder %s23, 1
    %p214 = por %p212, %p213
    %p216 = scmp.ne.s32.totalorder %s201, %s215
    %p217 = scmp.eq.s32.totalorder %s23, 0
    %p218 = por %p216, %p217
    %s220 = sadd.s32 %s219, 1
    %p223 = scmp.eq.s32.totalorder %s17, 1
    %p224 = scmp.ne.s32.totalorder %s219, %s221
    %p225 = scmp.eq.s32.totalorder %s17, 0
    %p226 = por %p224, %p225
    %p227 = scmp.ne.s32.totalorder %s219, %s221
    %p228 = scmp.eq.s32.totalorder %s22, 1
    %p229 = por %p227, %p228
    %p230 = scmp.ne.s32.totalorder %s221, %s222
    %p231 = scmp.eq.s32.totalorder %s22, 0
    %p232 = por %p230, %p231
    %p233 = scmp.ne.s32.totalorder %s221, %s222
    %p234 = scmp.eq.s32.totalorder %s23, 1
    %p235 = por %p233, %p234
    %p237 = scmp.ne.s32.totalorder %s222, %s236
    %p238 = scmp.eq.s32.totalorder %s23, 0
    %p239 = por %p237, %p238
    %s241 = sadd.s32 %s240, 1
    %p244 = scmp.eq.s32.totalorder %s17, 1
    %p245 = scmp.ne.s32.totalorder %s240, %s242
    %p246 = scmp.eq.s32.totalorder %s17, 0
    %p247 = por %p245, %p246
    %p248 = scmp.ne.s32.totalorder %s240, %s242
    %p249 = scmp.eq.s32.totalorder %s22, 1
    %p250 = por %p248, %p249
    %p251 = scmp.ne.s32.totalorder %s242, %s243
    %p252 = scmp.eq.s32.totalorder %s22, 0
    %p253 = por %p251, %p252
    %p254 = scmp.ne.s32.totalorder %s242, %s243
    %p255 = scmp.eq.s32.totalorder %s23, 1
    %p256 = por %p254, %p255
    %p258 = scmp.ne.s32.totalorder %s243, %s257
    %p259 = scmp.eq.s32.totalorder %s23, 0
    %p260 = por %p258, %p259
    %s261 = ssub.s32 %s17, %s24
    %p262 = scmp.eq.s32.totalorder %s261, 0
    %s264 = sadd.s32 %s263, 1
    %s265 = scalar_select %p262, %s263, %s264
    %p268 = pneg %p262
    %p269 = scmp.eq.s32.totalorder %s17, 1
    %p270 = por %p268, %p269
    %p271 = scmp.ne.s32.totalorder %s263, %s266
    %p272 = scmp.eq.s32.totalorder %s17, 0
    %p273 = por %p271, %p272
    %p274 = scmp.ne.s32.totalorder %s263, %s266
    %p275 = scmp.eq.s32.totalorder %s22, 1
    %p276 = por %p274, %p275
    %p277 = scmp.ne.s32.totalorder %s266, %s267
    %p278 = scmp.eq.s32.totalorder %s22, 0
    %p279 = por %p277, %p278
    %p280 = scmp.ne.s32.totalorder %s266, %s267
    %p281 = scmp.eq.s32.totalorder %s23, 1
    %p282 = por %p280, %p281
    %p284 = scmp.ne.s32.totalorder %s267, %s283
    %p285 = scmp.eq.s32.totalorder %s23, 0
    %p286 = por %p284, %p285
    %p287 = scmp.le.s32.totalorder 1, %s17
    %p288 = scmp.lt.s32.totalorder %s17, 3
    %p289 = pnand %p287, %p288
    %p290 = pneg %p289
    // Predicated region
    $region9: #{fe_block_forward.1} parent=5 // pred_check
      _
    $region10: #{fe_block_forward.1} parent=5 // pred_check_branch
      %292 = sbr.rel (%p289) target = $region12
    $region11: #{fe_block_forward.1} parent=5 // pred_region
      %s293 = ssub.s32 %s17, 1
      // Predicated region
      $region13: #{fe_block_forward.1} parent=11 // pred_check
        %p294 = pneg %p64
      $region14: #{fe_block_forward.1} parent=11 // pred_check_branch
        %296 = sbr.rel (%p294) target = $region16
      $region15: #{fe_block_forward.1} parent=11 // pred_region
        _
      $region16: #{fe_block_forward.1} parent=11 // pred_fallthru
        _
      // Predicated region
      $region17: #{fe_block_forward.1} parent=11 // pred_check
        %p297 = pneg %p85
      $region18: #{fe_block_forward.1} parent=11 // pred_check_branch
        %299 = sbr.rel (%p297) target = $region20
      $region19: #{fe_block_forward.1} parent=11 // pred_region
        _
      $region20: #{fe_block_forward.1} parent=11 // pred_fallthru
        _
      // Predicated region
      $region21: #{fe_block_forward.1} parent=11 // pred_check
        %p300 = pneg %p106
      $region22: #{fe_block_forward.1} parent=11 // pred_check_branch
        %302 = sbr.rel (%p300) target = $region24
      $region23: #{fe_block_forward.1} parent=11 // pred_region
        _
      $region24: #{fe_block_forward.1} parent=11 // pred_fallthru
        _
      // Predicated region
      $region25: #{fe_block_forward.1} parent=11 // pred_check
        %p303 = pneg %p127
      $region26: #{fe_block_forward.1} parent=11 // pred_check_branch
        %305 = sbr.rel (%p303) target = $region28
      $region27: #{fe_block_forward.1} parent=11 // pred_region
        _
      $region28: #{fe_block_forward.1} parent=11 // pred_fallthru
        _
      // Predicated region
      $region29: #{fe_block_forward.1} parent=11 // pred_check
        %p306 = pneg %p148
      $region30: #{fe_block_forward.1} parent=11 // pred_check_branch
        %308 = sbr.rel (%p306) target = $region32
      $region31: #{fe_block_forward.1} parent=11 // pred_region
        _
      $region32: #{fe_block_forward.1} parent=11 // pred_fallthru
        _
      // Predicated region
      $region33: #{fe_block_forward.1} parent=11 // pred_check
        %p309 = pneg %p169
      $region34: #{fe_block_forward.1} parent=11 // pred_check_branch
        %311 = sbr.rel (%p309) target = $region36
      $region35: #{fe_block_forward.1} parent=11 // pred_region
        _
      $region36: #{fe_block_forward.1} parent=11 // pred_fallthru
        _
      // Predicated region
      $region37: #{fe_block_forward.1} parent=11 // pred_check
        %p312 = pneg %p190
      $region38: #{fe_block_forward.1} parent=11 // pred_check_branch
        %314 = sbr.rel (%p312) target = $region40
      $region39: #{fe_block_forward.1} parent=11 // pred_region
        _
      $region40: #{fe_block_forward.1} parent=11 // pred_fallthru
        _
      // Predicated region
      $region41: #{fe_block_forward.1} parent=11 // pred_check
        %p315 = pneg %p211
      $region42: #{fe_block_forward.1} parent=11 // pred_check_branch
        %317 = sbr.rel (%p315) target = $region44
      $region43: #{fe_block_forward.1} parent=11 // pred_region
        _
      $region44: #{fe_block_forward.1} parent=11 // pred_fallthru
        _
      // Predicated region
      $region45: #{fe_block_forward.1} parent=11 // pred_check
        %p318 = pneg %p232
      $region46: #{fe_block_forward.1} parent=11 // pred_check_branch
        %320 = sbr.rel (%p318) target = $region48
      $region47: #{fe_block_forward.1} parent=11 // pred_region
        _
      $region48: #{fe_block_forward.1} parent=11 // pred_fallthru
        _
      // Predicated region
      $region49: #{fe_block_forward.1} parent=11 // pred_check
        %p321 = pneg %p253
      $region50: #{fe_block_forward.1} parent=11 // pred_check_branch
        %323 = sbr.rel (%p321) target = $region52
      $region51: #{fe_block_forward.1} parent=11 // pred_region
        _
      $region52: #{fe_block_forward.1} parent=11 // pred_fallthru
        _
    $region12: #{fe_block_forward.1} parent=5 // pred_fallthru
      _
    %p324 = scmp.lt.s32.totalorder %s17, 2
    // Predicated region
    $region53: #{fe_block_forward.1} parent=5 // pred_check
      %p325 = pneg %p324
    $region54: #{fe_block_forward.1} parent=5 // pred_check_branch
      %327 = sbr.rel (%p325) target = $region56
    $region55: #{fe_block_forward.1} parent=5 // pred_region
      // Predicated region
      $region57: #{fe_block_forward.1} parent=55 // pred_check
        %p328 = pneg %p37
      $region58: #{fe_block_forward.1} parent=55 // pred_check_branch
        %330 = sbr.rel (%p328) target = $region60
      $region59: #{fe_block_forward.1} parent=55 // pred_region
        %p331 = scmp.lt.s32.totalorder %s17, 1
        %s332 = scalar_select %p331, %s17, 1
        %s333 = smul.addr %s332, 3
        %s334 = smul.addr %s333, 4
        %s335 = scalar_lea.vmem %s0, %s334
      $region60: #{fe_block_forward.1} parent=55 // pred_fallthru
        _
    $region56: #{fe_block_forward.1} parent=5 // pred_fallthru
      _
    %p336 = scmp.le.s32.totalorder 1, %s17
    %p337 = scmp.lt.s32.totalorder %s17, 3
    %p338 = pnand %p336, %p337
    %p339 = pneg %p338
    // Predicated region
    $region61: #{fe_block_forward.1} parent=5 // pred_check
      _
    $region62: #{fe_block_forward.1} parent=5 // pred_check_branch
      %341 = sbr.rel (%p338) target = $region64
    $region63: #{fe_block_forward.1} parent=5 // pred_region
      %s342 = ssub.s32 %s17, 1
      %p343 = scmp.lt.s32.totalorder %s22, 1
      %s344 = scalar_select %p343, %s22, 1
      %s345 = smul.addr %s344, 3
      %s346 = smul.addr %s345, 4
      %s347 = scalar_lea.vmem %s0, %s346
      %p348 = pneg %p43
      %p349 = pneg %p40
      %p350 = pneg %p64
      %p351 = pneg %p61
      %p352 = pneg %p85
      %p353 = pneg %p82
      %p354 = pneg %p106
      %p355 = pneg %p103
      %p356 = pneg %p127
      %p357 = pneg %p124
      %p358 = pneg %p148
      %p359 = pneg %p145
      %p360 = pneg %p169
      %p361 = pneg %p166
      %p362 = pneg %p190
      %p363 = pneg %p187
      %p364 = pneg %p211
      %p365 = pneg %p208
      %p366 = pneg %p232
      %p367 = pneg %p229
      %p368 = pneg %p253
      %p369 = pneg %p250
      %p370 = pneg %p279
      %p371 = pneg %p276
      %p372 = scmp.lt.s32.totalorder %s22, 1
      %s373 = scalar_select %p372, %s22, 1
      %s374 = smul.addr %s373, 3
      %s375 = smul.addr %s374, 4
      %s376 = scalar_lea.vmem %s11, %s375
      %p377 = scmp.lt.s32.totalorder %s22, 1
      %s378 = scalar_select %p377, %s22, 1
      %s379 = smul.addr %s378, 3
      %s380 = smul.addr %s379, 4
      %s381 = scalar_lea.vmem %s0, %s380
      %p382 = scmp.lt.s32.totalorder %s22, 1
      %s383 = scalar_select %p382, %s22, 1
      %s384 = smul.addr %s383, 3
      %s385 = smul.addr %s384, 4
      %s386 = scalar_lea.vmem %s11, %s385
      %v387 = vld [vmem:[%s381] sm:$0x77]
      %v388 = vld [vmem:[%s381 + $0x8] sm:$0x7]
      %v391 = vcombine.high %v387, %v387
      %393 = vst [vmem:[#allocation2] sm:$0x7] %v387
      %394 = vst [vmem:[#allocation2 + $0x8] sm:$0x7] %v391
      %vm395 = vcmask 256000
      %396 = vst.msk [vmem:[#allocation2 + $0x10] sm:$0x7] %vm395, %v388
      %v397 = vrot.slane %v387, 5
      %v398 = vrot.slane %v391, 5
      %v399 = vrot.slane %v388, 5
      %400 = vrot.lane.b32.xlu0 %v397, 127
      %v401 = vpop.permute.xlu0 %400
      %402 = vrot.lane.b32.xlu0 %v398, 127
      %v403 = vpop.permute.xlu0 %402
      %404 = vrot.lane.b32.xlu0 %v399, 127
      %v405 = vpop.permute.xlu0 %404
      %vm406 = vcmask 1039360
      %v407 = vsel %vm406, %v401, %v403
      %v408 = vsel %vm406, %v403, %v405
      %412 = vst [vmem:[#allocation2] sm:$0x38] %v407
      %413 = vst [vmem:[#allocation2 + $0x8] sm:$0x38] %v408
      %vm414 = vcmask 259075
      %415 = vst.msk [vmem:[#allocation2 + $0x10] sm:$0x38] %vm414, %v405
      %v416 = vrot.slane %v387, 2
      %v417 = vrot.slane %v391, 2
      %v418 = vrot.slane %v388, 2
      %419 = vrot.lane.b32.xlu0 %v416, 126
      %v420 = vpop.permute.xlu0 %419
      %421 = vrot.lane.b32.xlu0 %v417, 126
      %v422 = vpop.permute.xlu0 %421
      %423 = vrot.lane.b32.xlu0 %v418, 126
      %v424 = vpop.permute.xlu0 %423
      %vm425 = vcmask 1031168
      %v426 = vsel %vm425, %v420, %v422
      %v427 = vsel %vm425, %v422, %v424
      %431 = vst [vmem:[#allocation2] sm:$0xc0] %v426
      %432 = vst [vmem:[#allocation2 + $0x8] sm:$0xc0] %v427
      %vm433 = vcmask 261126
      %434 = vst.msk [vmem:[#allocation2 + $0x10] sm:$0xc0] %vm433, %v424
      %435 = vst [vmem:[#allocation2 + $0x18] sm:$0x1] %v426
      %436 = vst [vmem:[#allocation2 + $0x20] sm:$0x1] %v427
      %vm437 = vcmask 253952
      %438 = vst.msk [vmem:[#allocation2 + $0x28] sm:$0x1] %vm437, %v424
      %v439 = vrot.slane %v387, 7
      %v440 = vrot.slane %v391, 7
      %v441 = vrot.slane %v388, 7
      %442 = vrot.lane.b32.xlu0 %v439, 110
      %v443 = vpop.permute.xlu0 %442
      %444 = vrot.lane.b32.xlu0 %v440, 110
      %v445 = vpop.permute.xlu0 %444
      %446 = vrot.lane.b32.xlu0 %v441, 110
      %v447 = vpop.permute.xlu0 %446
      %vm448 = vcmask 900096
      %v449 = vsel %vm448, %v443, %v445
      %v450 = vsel %vm448, %v445, %v447
      %454 = vst [vmem:[#allocation2 + $0x18] sm:$0xe] %v449
      %455 = vst [vmem:[#allocation2 + $0x20] sm:$0xe] %v450
      %vm456 = vcmask 257025
      %457 = vst.msk [vmem:[#allocation2 + $0x28] sm:$0xe] %vm456, %v447
      %v458 = vcombine.low %v387, %v387
      %v459 = vcombine.low %v388, %v388
      %460 = vrot.lane.b32.xlu0 %v458, 109
      %v461 = vpop.permute.xlu0 %460
      %462 = vrot.lane.b32.xlu0 %v387, 109
      %v463 = vpop.permute.xlu0 %462
      %464 = vrot.lane.b32.xlu0 %v459, 109
      %v465 = vpop.permute.xlu0 %464
      %vm466 = vcmask 891904
      %v467 = vsel %vm466, %v461, %v463
      %v468 = vsel %vm466, %v463, %v465
      %472 = vst [vmem:[#allocation2 + $0x18] sm:$0x70] %v467
      %473 = vst [vmem:[#allocation2 + $0x20] sm:$0x70] %v468
      %vm474 = vcmask 260100
      %475 = vst.msk [vmem:[#allocation2 + $0x28] sm:$0x70] %vm474, %v465
      %v476 = vrot.slane %v387, 1
      %v477 = vrot.slane %v391, 1
      %v478 = vrot.slane %v388, 1
      %479 = vrot.lane.b32.xlu0 %v476, 108
      %v480 = vpop.permute.xlu0 %479
      %481 = vrot.lane.b32.xlu0 %v477, 108
      %v482 = vpop.permute.xlu0 %481
      %483 = vrot.lane.b32.xlu0 %v478, 108
      %v484 = vpop.permute.xlu0 %483
      %vm485 = vcmask 883712
      %v486 = vsel %vm485, %v480, %v482
      %v487 = vsel %vm485, %v482, %v484
      %491 = vst [vmem:[#allocation2 + $0x18] sm:$0x80] %v486
      %492 = vst [vmem:[#allocation2 + $0x20] sm:$0x80] %v487
      %vm493 = vcmask 261127
      %494 = vst.msk [vmem:[#allocation2 + $0x28] sm:$0x80] %vm493, %v484
      %495 = vst [vmem:[#allocation2 + $0x30] sm:$0x3] %v486
      %496 = vst [vmem:[#allocation2 + $0x38] sm:$0x3] %v487
      %vm497 = vcmask 254976
      %498 = vst.msk [vmem:[#allocation2 + $0x40] sm:$0x3] %vm497, %v484
      %v499 = vrot.slane %v387, 6
      %v500 = vrot.slane %v391, 6
      %v501 = vrot.slane %v388, 6
      %502 = vrot.lane.b32.xlu0 %v499, 92
      %v503 = vpop.permute.xlu0 %502
      %504 = vrot.lane.b32.xlu0 %v500, 92
      %v505 = vpop.permute.xlu0 %504
      %506 = vrot.lane.b32.xlu0 %v501, 92
      %v507 = vpop.permute.xlu0 %506
      %vm508 = vcmask 752640
      %v509 = vsel %vm508, %v503, %v505
      %v510 = vsel %vm508, %v505, %v507
      %514 = vst [vmem:[#allocation2 + $0x30] sm:$0x1c] %v509
      %515 = vst [vmem:[#allocation2 + $0x38] sm:$0x1c] %v510
      %vm516 = vcmask 258050
      %517 = vst.msk [vmem:[#allocation2 + $0x40] sm:$0x1c] %vm516, %v507
      %v518 = vrot.slane %v387, 3
      %v519 = vrot.slane %v391, 3
      %v520 = vrot.slane %v388, 3
      %521 = vrot.lane.b32.xlu0 %v518, 91
      %v522 = vpop.permute.xlu0 %521
      %523 = vrot.lane.b32.xlu0 %v519, 91
      %v524 = vpop.permute.xlu0 %523
      %525 = vrot.lane.b32.xlu0 %v520, 91
      %v526 = vpop.permute.xlu0 %525
      %vm527 = vcmask 744448
      %v528 = vsel %vm527, %v522, %v524
      %v529 = vsel %vm527, %v524, %v526
      %533 = vst [vmem:[#allocation2 + $0x30] sm:$0xe0] %v528
      %534 = vst [vmem:[#allocation2 + $0x38] sm:$0xe0] %v529
      %vm535 = vcmask 261125
      %536 = vst.msk [vmem:[#allocation2 + $0x40] sm:$0xe0] %vm535, %v526
      %537 = vrot.lane.b32.xlu0 %v387, 90
      %v538 = vpop.permute.xlu0 %537
      %539 = vrot.lane.b32.xlu0 %v391, 90
      %v540 = vpop.permute.xlu0 %539
      %541 = vrot.lane.b32.xlu0 %v388, 90
      %v542 = vpop.permute.xlu0 %541
      %vm543 = vcmask 736256
      %v544 = vsel %vm543, %v538, %v540
      %v545 = vsel %vm543, %v540, %v542
      %549 = vst [vmem:[#allocation2 + $0x48] sm:$0x7] %v544
      %550 = vst [vmem:[#allocation2 + $0x50] sm:$0x7] %v545
      %551 = vst.msk [vmem:[#allocation2 + $0x58] sm:$0x7] %vm395, %v542
      %v552 = vld [vmem:[#allocation2] sm:$0xff]
      %v553 = vld [vmem:[#allocation2 + $0x8] sm:$0xff]
      %v554 = vld [vmem:[#allocation2 + $0x10] sm:$0xff]
      %v555 = vld [vmem:[#allocation2 + $0x18] sm:$0xff]
      %v556 = vld [vmem:[#allocation2 + $0x20] sm:$0xff]
      %v557 = vld [vmem:[#allocation2 + $0x28] sm:$0xff]
      %v558 = vld [vmem:[#allocation2 + $0x30] sm:$0xff]
      %v559 = vld [vmem:[#allocation2 + $0x38] sm:$0xff]
      %v560 = vld [vmem:[#allocation2 + $0x40] sm:$0xff]
      %v561 = vld [vmem:[#allocation2 + $0x48] sm:$0x7]
      %v562 = vld [vmem:[#allocation2 + $0x50] sm:$0x7]
      %v563 = vld [vmem:[#allocation2 + $0x58] sm:$0x7]
      %v564 = vld [vmem:[%s1] sm:$0xf]
      %v565 = vld [vmem:[%s2] sm:$0xf]
      %567 = vset.pattern.permute.xlu0 0
      %568 = vperm.xlu0 %567, %v565
      %v569 = vpop.permute.xlu0 %568
      %vm571 = vcmask 220160
      %v573 = vsel %vm571, %v564, 0
      %vm575 = vcmask 1042432
      %v577 = vsel %vm575, %v561, 0
      %v580 = vsel %vm575, %v562, 0
      %v583 = vsel %vm575, %v563, 0
      %585 = vmatprep.subr.mxu0 %v553
      %586 = vmatpush1.msra.mxu0 %v552
      %587 = vmatprep.subr.mxu0 %v556
      %588 = vmatpush1.msra.mxu0 %v555
      %589 = vmatprep.subr.mxu0 %v559
      %590 = vmatpush1.msra.mxu0 %v558
      %591 = vmatprep.subr.mxu0 %v580
      %592 = vmatpush1.msra.mxu0 %v577
      %593 = vmatprep.subr.mxu0 0.0
      %594 = vmatpush1.msra.mxu0 0.0
      %595 = vmatprep.subr.mxu0 0.0
      %596 = vmatpush1.msra.mxu0 0.0
      %597 = vmatprep.subr.mxu0 0.0
      %598 = vmatpush1.msra.mxu0 0.0
      %599 = vmatprep.subr.mxu0 0.0
      %600 = vmatpush1.msra.mxu0 0.0
      %601 = vmatprep.subr.mxu0 0.0
      %602 = vmatpush1.msra.mxu0 0.0
      %603 = vmatprep.subr.mxu0 0.0
      %604 = vmatpush1.msra.mxu0 0.0
      %605 = vmatprep.subr.mxu0 0.0
      %606 = vmatpush1.msra.mxu0 0.0
      %607 = vmatprep.subr.mxu0 0.0
      %608 = vmatpush1.msra.mxu0 0.0
      %609 = vmatprep.subr.mxu0 0.0
      %610 = vmatpush1.msra.mxu0 0.0
      %611 = vmatprep.subr.mxu0 0.0
      %612 = vmatpush1.msra.mxu0 0.0
      %613 = vmatprep.subr.mxu0 0.0
      %614 = vmatpush1.msra.mxu0 0.0
      %615 = vmatprep.subr.mxu0 0.0
      %616 = vmatpush1.msra.mxu0 0.0
      %617 = vmatprep.subr.mxu0 0.0
      %618 = vmatpush1.msra.mxu0 0.0
      %619 = vmatprep.subr.mxu0 0.0
      %620 = vmatpush1.msra.mxu0 0.0
      %621 = vmatprep.subr.mxu0 0.0
      %622 = vmatpush1.msra.mxu0 0.0
      %623 = vmatprep.subr.mxu0 0.0
      %624 = vmatpush1.msra.mxu0 0.0
      %625 = vmatprep.subr.mxu0 0.0
      %626 = vmatpush1.msra.mxu0 0.0
      %627 = vmatprep.subr.mxu0 0.0
      %628 = vmatpush1.msra.mxu0 0.0
      %629 = vmatprep.subr.mxu0 0.0
      %630 = vmatpush1.msra.mxu0 0.0
      %631 = vmatprep.subr.mxu0 0.0
      %632 = vmatpush1.msra.mxu0 0.0
      %633 = vmatprep.subr.mxu0 0.0
      %634 = vmatpush1.msra.mxu0 0.0
      %635 = vmatprep.subr.mxu0 0.0
      %636 = vmatpush1.msra.mxu0 0.0
      %637 = vmatprep.subr.mxu0 0.0
      %638 = vmatpush1.msra.mxu0 0.0
      %639 = vmatprep.subr.mxu0 0.0
      %640 = vmatpush1.msra.mxu0 0.0
      %641 = vmatprep.subr.mxu0 0.0
      %642 = vmatpush1.msra.mxu0 0.0
      %643 = vmatprep.subr.mxu0 0.0
      %644 = vmatpush1.msra.mxu0 0.0
      %645 = vmatprep.subr.mxu0 0.0
      %646 = vmatpush1.msra.mxu0 0.0
      %647 = vmatprep.subr.mxu0 0.0
      %648 = vmatpush1.msra.mxu0 0.0
      %649 = vmatprep.mubr.f32.mxu0 0.0
      %650 = vmatmul.mubr.f32.gmra.mrb[0].mxu0 %v573
      %v651 = vpop.f32.mrb[0].mxu0
      %v652 = vadd.f32 %v569, %v651
      %v653 = vpop.f32.mrb[0].mxu0
      %v654 = vadd.f32 %v569, %v653
      %655 = vdwg.mxu0
      %656 = vmatprep.subr.mxu0 0.0
      %657 = vmatpush1.msra.mxu0 %v554
      %658 = vmatprep.subr.mxu0 0.0
      %659 = vmatpush1.msra.mxu0 %v557
      %660 = vmatprep.subr.mxu0 0.0
      %661 = vmatpush1.msra.mxu0 %v560
      %662 = vmatprep.subr.mxu0 0.0
      %663 = vmatpush1.msra.mxu0 %v583
      %664 = vmatprep.subr.mxu0 0.0
      %665 = vmatpush1.msra.mxu0 0.0
      %666 = vmatprep.subr.mxu0 0.0
      %667 = vmatpush1.msra.mxu0 0.0
      %668 = vmatprep.subr.mxu0 0.0
      %669 = vmatpush1.msra.mxu0 0.0
      %670 = vmatprep.subr.mxu0 0.0
      %671 = vmatpush1.msra.mxu0 0.0
      %672 = vmatprep.subr.mxu0 0.0
      %673 = vmatpush1.msra.mxu0 0.0
      %674 = vmatprep.subr.mxu0 0.0
      %675 = vmatpush1.msra.mxu0 0.0
      %676 = vmatprep.subr.mxu0 0.0
      %677 = vmatpush1.msra.mxu0 0.0
      %678 = vmatprep.subr.mxu0 0.0
      %679 = vmatpush1.msra.mxu0 0.0
      %680 = vmatprep.subr.mxu0 0.0
      %681 = vmatpush1.msra.mxu0 0.0
      %682 = vmatprep.subr.mxu0 0.0
      %683 = vmatpush1.msra.mxu0 0.0
      %684 = vmatprep.subr.mxu0 0.0
      %685 = vmatpush1.msra.mxu0 0.0
      %686 = vmatprep.subr.mxu0 0.0
      %687 = vmatpush1.msra.mxu0 0.0
      %688 = vmatprep.subr.mxu0 0.0
      %689 = vmatpush1.msra.mxu0 0.0
      %690 = vmatprep.subr.mxu0 0.0
      %691 = vmatpush1.msra.mxu0 0.0
      %692 = vmatprep.subr.mxu0 0.0
      %693 = vmatpush1.msra.mxu0 0.0
      %694 = vmatprep.subr.mxu0 0.0
      %695 = vmatpush1.msra.mxu0 0.0
      %696 = vmatprep.subr.mxu0 0.0
      %697 = vmatpush1.msra.mxu0 0.0
      %698 = vmatprep.subr.mxu0 0.0
      %699 = vmatpush1.msra.mxu0 0.0
      %700 = vmatprep.subr.mxu0 0.0
      %701 = vmatpush1.msra.mxu0 0.0
      %702 = vmatprep.subr.mxu0 0.0
      %703 = vmatpush1.msra.mxu0 0.0
      %704 = vmatprep.subr.mxu0 0.0
      %705 = vmatpush1.msra.mxu0 0.0
      %706 = vmatprep.subr.mxu0 0.0
      %707 = vmatpush1.msra.mxu0 0.0
      %708 = vmatprep.subr.mxu0 0.0
      %709 = vmatpush1.msra.mxu0 0.0
      %710 = vmatprep.subr.mxu0 0.0
      %711 = vmatpush1.msra.mxu0 0.0
      %712 = vmatprep.subr.mxu0 0.0
      %713 = vmatpush1.msra.mxu0 0.0
      %714 = vmatprep.subr.mxu0 0.0
      %715 = vmatpush1.msra.mxu0 0.0
      %716 = vmatprep.subr.mxu0 0.0
      %717 = vmatpush1.msra.mxu0 0.0
      %718 = vmatprep.subr.mxu0 0.0
      %719 = vmatpush1.msra.mxu0 0.0
      %720 = vmatprep.mubr.f32.mxu0 0.0
      %721 = vmatmul.mubr.f32.gmra.mrb[0].mxu0 %v573
      %v722 = vpop.f32.mrb[0].mxu0
      %v723 = vadd.f32 %v569, %v722
      %v724 = vpop.f32.mrb[0].mxu0
      %725 = vdwg.mxu0
      %vm726 = vcmp.ge.f32.partialorder %v652, 0.0
      %vm727 = vcmp.ge.f32.partialorder %v654, 0.0
      %vm728 = vcmp.ge.f32.partialorder %v723, 0.0
      %v729 = vmul.f32 %v652, 0.1
      %v730 = vmul.f32 %v654, 0.1
      %v731 = vmul.f32 %v723, 0.1
      %v732 = vsel %vm726, %v652, %v729
      %v733 = vsel %vm727, %v654, %v730
      %v734 = vsel %vm728, %v723, %v731
      %735 = vst [vmem:[#allocation3] sm:$0xff] 0.0
      %vm736 = vcmask 568320
      %737 = vst.msk [vmem:[#allocation3 + $0x8] sm:$0xf] %vm736, 0.0
      %v741 = vcombine.low %v732, %v733
      %742 = vrot.lane.b32.xlu0 %v741, 19
      %v743 = vpop.permute.xlu0 %742
      %744 = vrot.lane.b32.xlu0 %v734, 19
      %v745 = vpop.permute.xlu0 %744
      %v746 = vrot.slane %v743, 4
      %vm747 = vcmask 154624
      %v748 = vsel %vm747, %v746, %v743
      %v749 = vsel %vm747, %v746, %v745
      %vm752 = vcmask 1043608
      %vm753 = vcmask 1047556
      %vm754 = vmor %vm753, %vm752
      %755 = vst.msk [vmem:[#allocation3] sm:$0xff] %vm754, %v748
      %vm756 = vcmask 412672
      %757 = vst.msk [vmem:[#allocation3 + $0x8] sm:$0xf] %vm756, %v749
      %v758 = vld [vmem:[%s8] sm:$0x7]
      %v759 = vld [vmem:[#allocation3] sm:$0xff]
      %v760 = vld [vmem:[#allocation3 + $0x8] sm:$0xf]
      %v762 = vlaneseq
      %v763 = vshrl.u32 %v762, 7
      %v764 = vsub.s32 0, %v763
      %v765 = vrot.slane %v758, %v764
      %v766 = vlaneseq
      %v767 = vshrl.u32 %v766, 7
      %v768 = vsub.s32 1, %v767
      %v769 = vrot.slane %v758, %v768
      %v770 = vlaneseq
      %v771 = vshrl.u32 %v770, 7
      %v772 = vsub.s32 2, %v771
      %v773 = vrot.slane %v758, %v772
      %v775 = vcombine.low %v765, %v769
      %v777 = vmul.f32 %v759, %v775
      %v778 = vmul.f32 %v760, %v773
      %v779 = vsub.f32 %v758, 1.0
      %v780 = vmul.f32 %v779, 1e+30
      %v782 = vlaneseq
      %v783 = vshrl.u32 %v782, 7
      %v784 = vsub.s32 0, %v783
      %v785 = vrot.slane %v780, %v784
      %v786 = vlaneseq
      %v787 = vshrl.u32 %v786, 7
      %v788 = vsub.s32 1, %v787
      %v789 = vrot.slane %v780, %v788
      %v790 = vlaneseq
      %v791 = vshrl.u32 %v790, 7
      %v792 = vsub.s32 2, %v791
      %v793 = vrot.slane %v780, %v792
      %v795 = vcombine.low %v785, %v789
      %v797 = vadd.f32 %v777, %v795
      %v798 = vadd.f32 %v778, %v793
      %801 = vrot.lane.b32.xlu0 %v797, 127
      %v802 = vpop.permute.xlu0 %801
      %803 = vrot.lane.b32.xlu0 %v798, 127
      %v804 = vpop.permute.xlu0 %803
      %v805 = vrot.slane %v802, 4
      %v806 = vrot.slane %v804, 4
      %vm807 = vcmask 1043456
      %v808 = vsel %vm807, %v805, %v806
      %v809 = vsel %vm406, %v802, %v808
      %v812 = vmax.f32 %v797, %v809
      %v813 = vmax.f32 %v798, %v804
      %814 = vrot.lane.b32.xlu0 %v797, 126
      %v815 = vpop.permute.xlu0 %814
      %816 = vrot.lane.b32.xlu0 %v798, 126
      %v817 = vpop.permute.xlu0 %816
      %v818 = vrot.slane %v815, 4
      %v819 = vrot.slane %v817, 4
      %v820 = vsel %vm807, %v818, %v819
      %v821 = vsel %vm425, %v815, %v820
      %v824 = vmax.f32 %v812, %v821
      %v825 = vmax.f32 %v813, %v817
      %826 = vrot.lane.b32.xlu0 %v797, 110
      %v827 = vpop.permute.xlu0 %826
      %828 = vrot.lane.b32.xlu0 %v798, 110
      %v829 = vpop.permute.xlu0 %828
      %v830 = vrot.slane %v827, 4
      %v831 = vrot.slane %v829, 4
      %v832 = vsel %vm807, %v830, %v831
      %v833 = vsel %vm448, %v827, %v832
      %v836 = vmax.f32 %v824, %v833
      %v837 = vmax.f32 %v825, %v829
      %838 = vrot.lane.b32.xlu0 %v797, 109
      %v839 = vpop.permute.xlu0 %838
      %840 = vrot.lane.b32.xlu0 %v798, 109
      %v841 = vpop.permute.xlu0 %840
      %v842 = vrot.slane %v839, 4
      %v843 = vrot.slane %v841, 4
      %v844 = vsel %vm807, %v842, %v843
      %v845 = vsel %vm466, %v839, %v844
      %v848 = vmax.f32 %v836, %v845
      %v849 = vmax.f32 %v837, %v841
      %850 = vrot.lane.b32.xlu0 %v797, 108
      %v851 = vpop.permute.xlu0 %850
      %852 = vrot.lane.b32.xlu0 %v798, 108
      %v853 = vpop.permute.xlu0 %852
      %v854 = vrot.slane %v851, 4
      %v855 = vrot.slane %v853, 4
      %v856 = vsel %vm807, %v854, %v855
      %v857 = vsel %vm485, %v851, %v856
      %v860 = vmax.f32 %v848, %v857
      %v861 = vmax.f32 %v849, %v853
      %862 = vrot.lane.b32.xlu0 %v797, 92
      %v863 = vpop.permute.xlu0 %862
      %864 = vrot.lane.b32.xlu0 %v798, 92
      %v865 = vpop.permute.xlu0 %864
      %v866 = vrot.slane %v863, 4
      %v867 = vrot.slane %v865, 4
      %v868 = vsel %vm807, %v866, %v867
      %v869 = vsel %vm508, %v863, %v868
      %v872 = vmax.f32 %v860, %v869
      %v873 = vmax.f32 %v861, %v865
      %874 = vrot.lane.b32.xlu0 %v797, 91
      %v875 = vpop.permute.xlu0 %874
      %876 = vrot.lane.b32.xlu0 %v798, 91
      %v877 = vpop.permute.xlu0 %876
      %v878 = vrot.slane %v875, 4
      %v879 = vrot.slane %v877, 4
      %v880 = vsel %vm807, %v878, %v879
      %v881 = vsel %vm527, %v875, %v880
      %v884 = vmax.f32 %v872, %v881
      %v885 = vmax.f32 %v873, %v877
      %886 = vrot.lane.b32.xlu0 %v797, 90
      %v887 = vpop.permute.xlu0 %886
      %888 = vrot.lane.b32.xlu0 %v798, 90
      %v889 = vpop.permute.xlu0 %888
      %v890 = vrot.slane %v887, 4
      %v891 = vrot.slane %v889, 4
      %v892 = vsel %vm807, %v890, %v891
      %v893 = vsel %vm543, %v887, %v892
      %v896 = vmax.f32 %v884, %v893
      %v897 = vmax.f32 %v885, %v889
      %v898 = vld [vmem:[%s9] sm:$0xff]
      %v899 = vld [vmem:[%s9 + $0x8] sm:$0xff]
      %v900 = vld [vmem:[%s9 + $0x10] sm:$0xff]
      %v901 = vld [vmem:[%s9 + $0x18] sm:$0xff]
      %v902 = vld [vmem:[%s9 + $0x20] sm:$0xff]
      %v903 = vld [vmem:[%s9 + $0x28] sm:$0xff]
      %v904 = vld [vmem:[%s9 + $0x30] sm:$0xff]
      %v905 = vld [vmem:[%s9 + $0x38] sm:$0xff]
      %v906 = vld [vmem:[%s9 + $0x40] sm:$0xff]
      %v907 = vld [vmem:[%s9 + $0x48] sm:$0xff]
      %v908 = vld [vmem:[%s9 + $0x50] sm:$0xff]
      %v909 = vld [vmem:[%s9 + $0x58] sm:$0xff]
      %v910 = vld [vmem:[%s9 + $0x60] sm:$0xff]
      %v911 = vld [vmem:[%s9 + $0x68] sm:$0xff]
      %v912 = vld [vmem:[%s9 + $0x70] sm:$0xff]
      %v913 = vld [vmem:[%s9 + $0x78] sm:$0xff]
      %v914 = vld [vmem:[%s9 + $0x80] sm:$0xff]
      %v915 = vld [vmem:[%s9 + $0x88] sm:$0xff]
      %v916 = vld [vmem:[%s9 + $0x90] sm:$0xff]
      %v917 = vld [vmem:[%s9 + $0x98] sm:$0xff]
      %v918 = vld [vmem:[%s9 + $0xa0] sm:$0xff]
      %v919 = vld [vmem:[%s9 + $0xa8] sm:$0xff]
      %v920 = vld [vmem:[%s9 + $0xb0] sm:$0xff]
      %v921 = vld [vmem:[%s9 + $0xb8] sm:$0xff]
      %v922 = vld [vmem:[%s9 + $0xc0] sm:$0xff]
      %v923 = vld [vmem:[%s9 + $0xc8] sm:$0xff]
      %v924 = vld [vmem:[%s9 + $0xd0] sm:$0xff]
      %v925 = vld [vmem:[%s9 + $0xd8] sm:$0xff]
      %v926 = vld [vmem:[%s9 + $0xe0] sm:$0xff]
      %v927 = vld [vmem:[%s9 + $0xe8] sm:$0xff]
      %v928 = vld [vmem:[%s9 + $0xf0] sm:$0xff]
      %v929 = vld [vmem:[%s9 + $0xf8] sm:$0xff]
      %v930 = vld [vmem:[%s9 + $0x100] sm:$0xff]
      %v931 = vld [vmem:[%s9 + $0x108] sm:$0xff]
      %v932 = vld [vmem:[%s9 + $0x110] sm:$0xff]
      %v933 = vld [vmem:[%s9 + $0x118] sm:$0xff]
      %v936 = vcombine.high %v896, %v896
      %vm938 = vcmask 261120
      %v939 = vsel %vm938, %v897, 0
      %941 = vmatprep.subr.mxu0 0.0
      %942 = vmatpush1.msra.mxu0 %v898
      %943 = vmatprep.subr.mxu0 0.0
      %944 = vmatpush1.msra.mxu0 %v899
      %945 = vmatprep.subr.mxu0 0.0
      %946 = vmatpush1.msra.mxu0 %v900
      %947 = vmatprep.subr.mxu0 0.0
      %948 = vmatpush1.msra.mxu0 %v901
      %949 = vmatprep.subr.mxu0 0.0
      %950 = vmatpush1.msra.mxu0 %v902
      %951 = vmatprep.subr.mxu0 0.0
      %952 = vmatpush1.msra.mxu0 %v903
      %953 = vmatprep.subr.mxu0 0.0
      %954 = vmatpush1.msra.mxu0 %v904
      %955 = vmatprep.subr.mxu0 0.0
      %956 = vmatpush1.msra.mxu0 %v905
      %957 = vmatprep.subr.mxu0 0.0
      %958 = vmatpush1.msra.mxu0 %v906
      %959 = vmatprep.subr.mxu0 0.0
      %960 = vmatpush1.msra.mxu0 %v907
      %961 = vmatprep.subr.mxu0 0.0
      %962 = vmatpush1.msra.mxu0 %v908
      %963 = vmatprep.subr.mxu0 0.0
      %964 = vmatpush1.msra.mxu0 %v909
      %965 = vmatprep.subr.mxu0 0.0
      %966 = vmatpush1.msra.mxu0 %v910
      %967 = vmatprep.subr.mxu0 0.0
      %968 = vmatpush1.msra.mxu0 %v911
      %969 = vmatprep.subr.mxu0 0.0
      %970 = vmatpush1.msra.mxu0 %v912
      %971 = vmatprep.subr.mxu0 0.0
      %972 = vmatpush1.msra.mxu0 %v913
      %973 = vmatprep.subr.mxu0 0.0
      %974 = vmatpush1.msra.mxu0 %v914
      %975 = vmatprep.subr.mxu0 0.0
      %976 = vmatpush1.msra.mxu0 %v915
      %977 = vmatprep.subr.mxu0 0.0
      %978 = vmatpush1.msra.mxu0 %v916
      %979 = vmatprep.subr.mxu0 0.0
      %980 = vmatpush1.msra.mxu0 %v917
      %981 = vmatprep.subr.mxu0 0.0
      %982 = vmatpush1.msra.mxu0 %v918
      %983 = vmatprep.subr.mxu0 0.0
      %984 = vmatpush1.msra.mxu0 %v919
      %985 = vmatprep.subr.mxu0 0.0
      %986 = vmatpush1.msra.mxu0 %v920
      %987 = vmatprep.subr.mxu0 0.0
      %988 = vmatpush1.msra.mxu0 %v921
      %989 = vmatprep.subr.mxu0 0.0
      %990 = vmatpush1.msra.mxu0 %v922
      %991 = vmatprep.subr.mxu0 0.0
      %992 = vmatpush1.msra.mxu0 %v923
      %993 = vmatprep.subr.mxu0 0.0
      %994 = vmatpush1.msra.mxu0 %v924
      %995 = vmatprep.subr.mxu0 0.0
      %996 = vmatpush1.msra.mxu0 %v925
      %997 = vmatprep.subr.mxu0 0.0
      %998 = vmatpush1.msra.mxu0 %v926
      %999 = vmatprep.subr.mxu0 0.0
      %1000 = vmatpush1.msra.mxu0 %v927
      %1001 = vmatprep.subr.mxu0 0.0
      %1002 = vmatpush1.msra.mxu0 %v928
      %1003 = vmatprep.subr.mxu0 0.0
      %1004 = vmatpush1.msra.mxu0 %v929
      %1005 = vmatprep.mubr.f32.mxu0 %v936
      %1006 = vmatmul.mubr.f32.gmra.mrb[0].mxu0 %v896
      %v1007 = vpop.f32.mrb[0].mxu0
      %v1008 = vadd.f32 0.0, %v1007
      %v1009 = vpop.f32.mrb[0].mxu0
      %1010 = vdwg.mxu0
      %1011 = vmatprep.subr.mxu0 0.0
      %1012 = vmatpush1.msra.mxu0 %v930
      %1013 = vmatprep.subr.mxu0 0.0
      %1014 = vmatpush1.msra.mxu0 %v931
      %1015 = vmatprep.subr.mxu0 0.0
      %1016 = vmatpush1.msra.mxu0 %v932
      %1017 = vmatprep.subr.mxu0 0.0
      %1018 = vmatpush1.msra.mxu0 %v933
      %1019 = vmatprep.subr.mxu0 0.0
      %1020 = vmatpush1.msra.mxu0 0.0
      %1021 = vmatprep.subr.mxu0 0.0
      %1022 = vmatpush1.msra.mxu0 0.0
      %1023 = vmatprep.subr.mxu0 0.0
      %1024 = vmatpush1.msra.mxu0 0.0
      %1025 = vmatprep.subr.mxu0 0.0
      %1026 = vmatpush1.msra.mxu0 0.0
      %1027 = vmatprep.subr.mxu0 0.0
      %1028 = vmatpush1.msra.mxu0 0.0
      %1029 = vmatprep.subr.mxu0 0.0
      %1030 = vmatpush1.msra.mxu0 0.0
      %1031 = vmatprep.subr.mxu0 0.0
      %1032 = vmatpush1.msra.mxu0 0.0
      %1033 = vmatprep.subr.mxu0 0.0
      %1034 = vmatpush1.msra.mxu0 0.0
      %1035 = vmatprep.subr.mxu0 0.0
      %1036 = vmatpush1.msra.mxu0 0.0
      %1037 = vmatprep.subr.mxu0 0.0
      %1038 = vmatpush1.msra.mxu0 0.0
      %1039 = vmatprep.subr.mxu0 0.0
      %1040 = vmatpush1.msra.mxu0 0.0
      %1041 = vmatprep.subr.mxu0 0.0
      %1042 = vmatpush1.msra.mxu0 0.0
      %1043 = vmatprep.subr.mxu0 0.0
      %1044 = vmatpush1.msra.mxu0 0.0
      %1045 = vmatprep.subr.mxu0 0.0
      %1046 = vmatpush1.msra.mxu0 0.0
      %1047 = vmatprep.subr.mxu0 0.0
      %1048 = vmatpush1.msra.mxu0 0.0
      %1049 = vmatprep.subr.mxu0 0.0
      %1050 = vmatpush1.msra.mxu0 0.0
      %1051 = vmatprep.subr.mxu0 0.0
      %1052 = vmatpush1.msra.mxu0 0.0
      %1053 = vmatprep.subr.mxu0 0.0
      %1054 = vmatpush1.msra.mxu0 0.0
      %1055 = vmatprep.subr.mxu0 0.0
      %1056 = vmatpush1.msra.mxu0 0.0
      %1057 = vmatprep.subr.mxu0 0.0
      %1058 = vmatpush1.msra.mxu0 0.0
      %1059 = vmatprep.subr.mxu0 0.0
      %1060 = vmatpush1.msra.mxu0 0.0
      %1061 = vmatprep.subr.mxu0 0.0
      %1062 = vmatpush1.msra.mxu0 0.0
      %1063 = vmatprep.subr.mxu0 0.0
      %1064 = vmatpush1.msra.mxu0 0.0
      %1065 = vmatprep.subr.mxu0 0.0
      %1066 = vmatpush1.msra.mxu0 0.0
      %1067 = vmatprep.subr.mxu0 0.0
      %1068 = vmatpush1.msra.mxu0 0.0
      %1069 = vmatprep.subr.mxu0 0.0
      %1070 = vmatpush1.msra.mxu0 0.0
      %1071 = vmatprep.subr.mxu0 0.0
      %1072 = vmatpush1.msra.mxu0 0.0
      %1073 = vmatprep.subr.mxu0 0.0
      %1074 = vmatpush1.msra.mxu0 0.0
      %1075 = vmatprep.mubr.f32.mxu0 0.0
      %1076 = vmatmul.mubr.f32.gmra.mrb[0].mxu0 %v939
      %v1077 = vpop.f32.mrb[0].mxu0
      %v1078 = vadd.f32 %v1008, %v1077
      %v1079 = vpop.f32.mrb[0].mxu0
      %1080 = vdwg.mxu0
      %vm1081 = vcmask 650240
      %1082 = vst.msk [vmem:[#allocation2] sm:$0xf] %vm1081, %v1078
      %v1084 = vrot.slane %v1078, 4
      %1085 = vrot.lane.b32.xlu0 %v1084, 127
      %v1086 = vpop.permute.xlu0 %1085
      %vm1088 = vcmask 654340
      %1089 = vst.msk [vmem:[#allocation2] sm:$0xf0] %vm1088, %v1086
      %1090 = vrot.lane.b32.xlu0 %v1078, 126
      %v1091 = vpop.permute.xlu0 %1090
      %1093 = vst.msk [vmem:[#allocation2 + $0x18] sm:$0xf] %vm1081, %v1091
      %1094 = vrot.lane.b32.xlu0 %v1084, 118
      %v1095 = vpop.permute.xlu0 %1094
      %1097 = vst.msk [vmem:[#allocation2 + $0x18] sm:$0xf0] %vm1088, %v1095
      %1098 = vrot.lane.b32.xlu0 %v1078, 117
      %v1099 = vpop.permute.xlu0 %1098
      %1101 = vst.msk [vmem:[#allocation2 + $0x30] sm:$0xf] %vm1081, %v1099
      %1102 = vrot.lane.b32.xlu0 %v1084, 116
      %v1103 = vpop.permute.xlu0 %1102
      %1105 = vst.msk [vmem:[#allocation2 + $0x30] sm:$0xf0] %vm1088, %v1103
      %1106 = vrot.lane.b32.xlu0 %v1078, 108
      %v1107 = vpop.permute.xlu0 %1106
      %1109 = vst.msk [vmem:[#allocation2 + $0x48] sm:$0xf] %vm1081, %v1107
      %1110 = vrot.lane.b32.xlu0 %v1084, 107
      %v1111 = vpop.permute.xlu0 %1110
      %1113 = vst.msk [vmem:[#allocation2 + $0x48] sm:$0xf0] %vm1088, %v1111
      %1114 = vrot.lane.b32.xlu0 %v1078, 106
      %v1115 = vpop.permute.xlu0 %1114
      %1117 = vst.msk [vmem:[#allocation2 + $0x60] sm:$0xf] %vm1081, %v1115
      %v1118 = vld [vmem:[#allocation2] sm:$0xff]
      %v1119 = vld [vmem:[#allocation2 + $0x18] sm:$0xff]
      %v1120 = vld [vmem:[#allocation2 + $0x30] sm:$0xff]
      %v1121 = vld [vmem:[#allocation2 + $0x48] sm:$0xff]
      %v1122 = vld [vmem:[#allocation2 + $0x60] sm:$0xf]
      %v1123 = vld [vmem:[%s3] sm:$0xff]
      %v1124 = vld [vmem:[%s3 + $0x8] sm:$0xff]
      %v1125 = vld [vmem:[%s4] sm:$0xff]
      %v1126 = vld [vmem:[%s4 + $0x8] sm:$0xff]
      %1128 = vset.pattern.permute.xlu0 0
      %1129 = vperm.xlu0 %1128, %v1125
      %v1130 = vpop.permute.xlu0 %1129
      %1133 = vset.pattern.permute.xlu0 0
      %1134 = vperm.xlu0 %1133, %v1126
      %v1135 = vpop.permute.xlu0 %1134
      %vm1137 = vcmask 293888
      %v1139 = vsel %vm1137, %v1123, 0
      %v1142 = vsel %vm1137, %v1124, 0
      %v1145 = vsel %vm807, %v1122, 0
      %1147 = vmatprep.subr.mxu0 0.0
      %1148 = vmatpush1.msra.mxu0 %v1118
      %1149 = vmatprep.subr.mxu0 0.0
      %1150 = vmatpush1.msra.mxu0 %v1119
      %1151 = vmatprep.subr.mxu0 0.0
      %1152 = vmatpush1.msra.mxu0 %v1120
      %1153 = vmatprep.subr.mxu0 0.0
      %1154 = vmatpush1.msra.mxu0 %v1121
      %1155 = vmatprep.subr.mxu0 0.0
      %1156 = vmatpush1.msra.mxu0 %v1145
      %1157 = vmatprep.subr.mxu0 0.0
      %1158 = vmatpush1.msra.mxu0 0.0
      %1159 = vmatprep.subr.mxu0 0.0
      %1160 = vmatpush1.msra.mxu0 0.0
      %1161 = vmatprep.subr.mxu0 0.0
      %1162 = vmatpush1.msra.mxu0 0.0
      %1163 = vmatprep.subr.mxu0 0.0
      %1164 = vmatpush1.msra.mxu0 0.0
      %1165 = vmatprep.subr.mxu0 0.0
      %1166 = vmatpush1.msra.mxu0 0.0
      %1167 = vmatprep.subr.mxu0 0.0
      %1168 = vmatpush1.msra.mxu0 0.0
      %1169 = vmatprep.subr.mxu0 0.0
      %1170 = vmatpush1.msra.mxu0 0.0
      %1171 = vmatprep.subr.mxu0 0.0
      %1172 = vmatpush1.msra.mxu0 0.0
      %1173 = vmatprep.subr.mxu0 0.0
      %1174 = vmatpush1.msra.mxu0 0.0
      %1175 = vmatprep.subr.mxu0 0.0
      %1176 = vmatpush1.msra.mxu0 0.0
      %1177 = vmatprep.subr.mxu0 0.0
      %1178 = vmatpush1.msra.mxu0 0.0
      %1179 = vmatprep.subr.mxu0 0.0
      %1180 = vmatpush1.msra.mxu0 0.0
      %1181 = vmatprep.subr.mxu0 0.0
      %1182 = vmatpush1.msra.mxu0 0.0
      %1183 = vmatprep.subr.mxu0 0.0
      %1184 = vmatpush1.msra.mxu0 0.0
      %1185 = vmatprep.subr.mxu0 0.0
      %1186 = vmatpush1.msra.mxu0 0.0
      %1187 = vmatprep.subr.mxu0 0.0
      %1188 = vmatpush1.msra.mxu0 0.0
      %1189 = vmatprep.subr.mxu0 0.0
      %1190 = vmatpush1.msra.mxu0 0.0
      %1191 = vmatprep.subr.mxu0 0.0
      %1192 = vmatpush1.msra.mxu0 0.0
      %1193 = vmatprep.subr.mxu0 0.0
      %1194 = vmatpush1.msra.mxu0 0.0
      %1195 = vmatprep.subr.mxu0 0.0
      %1196 = vmatpush1.msra.mxu0 0.0
      %1197 = vmatprep.subr.mxu0 0.0
      %1198 = vmatpush1.msra.mxu0 0.0
      %1199 = vmatprep.subr.mxu0 0.0
      %1200 = vmatpush1.msra.mxu0 0.0
      %1201 = vmatprep.subr.mxu0 0.0
      %1202 = vmatpush1.msra.mxu0 0.0
      %1203 = vmatprep.subr.mxu0 0.0
      %1204 = vmatpush1.msra.mxu0 0.0
      %1205 = vmatprep.subr.mxu0 0.0
      %1206 = vmatpush1.msra.mxu0 0.0
      %1207 = vmatprep.subr.mxu0 0.0
      %1208 = vmatpush1.msra.mxu0 0.0
      %1209 = vmatprep.subr.mxu0 0.0
      %1210 = vmatpush1.msra.mxu0 0.0
      %1211 = vmatprep.mubr.f32.mxu0 0.0
      %1212 = vmatmul.mubr.f32.gmra.mrb[0].mxu0 %v1139
      %v1213 = vpop.f32.mrb[0].mxu0
      %v1214 = vadd.f32 %v1130, %v1213
      %v1215 = vpop.f32.mrb[0].mxu0
      %1216 = vmatprep.mubr.f32.mxu0 0.0
      %1217 = vmatmul.mubr.f32.gmra.mrb[0].mxu0 %v1142
      %v1218 = vpop.f32.mrb[0].mxu0
      %v1219 = vadd.f32 %v1135, %v1218
      %v1220 = vpop.f32.mrb[0].mxu0
      %1221 = vdwg.mxu0
      %vm1222 = vcmp.ge.f32.partialorder %v1214, 0.0
      %vm1223 = vcmp.ge.f32.partialorder %v1219, 0.0
      %v1224 = vmul.f32 %v1214, 0.1
      %v1225 = vmul.f32 %v1219, 0.1
      %v1226 = vsel %vm1222, %v1214, %v1224
      %v1227 = vsel %vm1223, %v1219, %v1225
      %v1228 = vld [vmem:[%s10] sm:$0xff]
      %v1229 = vld [vmem:[%s10 + $0x8] sm:$0xff]
      %v1230 = vld [vmem:[%s10 + $0x10] sm:$0xff]
      %v1231 = vld [vmem:[%s10 + $0x18] sm:$0xff]
      %v1232 = vld [vmem:[%s10 + $0x20] sm:$0xff]
      %v1233 = vld [vmem:[%s10 + $0x28] sm:$0xff]
      %v1234 = vld [vmem:[%s10 + $0x30] sm:$0xff]
      %v1235 = vld [vmem:[%s10 + $0x38] sm:$0xff]
      %v1236 = vld [vmem:[%s10 + $0x40] sm:$0xff]
      %v1237 = vld [vmem:[%s10 + $0x48] sm:$0xff]
      %v1238 = vld [vmem:[%s10 + $0x50] sm:$0xff]
      %v1239 = vld [vmem:[%s10 + $0x58] sm:$0xff]
      %v1240 = vld [vmem:[%s10 + $0x60] sm:$0xff]
      %v1241 = vld [vmem:[%s10 + $0x68] sm:$0xff]
      %v1242 = vld [vmem:[%s10 + $0x70] sm:$0xff]
      %v1243 = vld [vmem:[%s10 + $0x78] sm:$0xff]
      %v1244 = vld [vmem:[%s10 + $0x80] sm:$0xff]
      %v1245 = vld [vmem:[%s10 + $0x88] sm:$0xff]
      %v1246 = vld [vmem:[%s10 + $0x90] sm:$0xff]
      %v1247 = vld [vmem:[%s10 + $0x98] sm:$0xff]
      %v1248 = vld [vmem:[%s10 + $0xa0] sm:$0xff]
      %v1249 = vld [vmem:[%s10 + $0xa8] sm:$0xff]
      %v1250 = vld [vmem:[%s10 + $0xb0] sm:$0xff]
      %v1251 = vld [vmem:[%s10 + $0xb8] sm:$0xff]
      %v1252 = vld [vmem:[%s10 + $0xc0] sm:$0xff]
      %v1253 = vld [vmem:[%s10 + $0xc8] sm:$0xff]
      %v1254 = vld [vmem:[%s10 + $0xd0] sm:$0xff]
      %v1255 = vld [vmem:[%s10 + $0xd8] sm:$0xff]
      %v1256 = vld [vmem:[%s10 + $0xe0] sm:$0xff]
      %v1257 = vld [vmem:[%s10 + $0xe8] sm:$0xff]
      %s1258 = scalar_lea.vmem %s10, 240
      %v1259 = vld [vmem:[%s1258] sm:$0xff]
      %v1260 = vld [vmem:[%s1258 + $0x8] sm:$0xff]
      %v1261 = vld [vmem:[%s1258 + $0x10] sm:$0xff]
      %v1262 = vld [vmem:[%s1258 + $0x18] sm:$0xff]
      %v1263 = vld [vmem:[%s1258 + $0x20] sm:$0xff]
      %v1264 = vld [vmem:[%s1258 + $0x28] sm:$0xff]
      %v1265 = vld [vmem:[%s1258 + $0x30] sm:$0xff]
      %v1266 = vld [vmem:[%s1258 + $0x38] sm:$0xff]
      %v1267 = vld [vmem:[%s1258 + $0x40] sm:$0xff]
      %v1268 = vld [vmem:[%s1258 + $0x48] sm:$0xff]
      %v1269 = vld [vmem:[%s1258 + $0x50] sm:$0xff]
      %v1270 = vld [vmem:[%s1258 + $0x58] sm:$0xff]
      %v1271 = vld [vmem:[%s1258 + $0x60] sm:$0xff]
      %v1272 = vld [vmem:[%s1258 + $0x68] sm:$0xff]
      %v1273 = vld [vmem:[%s1258 + $0x70] sm:$0xff]
      %v1274 = vld [vmem:[%s1258 + $0x78] sm:$0xff]
      %v1275 = vld [vmem:[%s1258 + $0x80] sm:$0xff]
      %v1276 = vld [vmem:[%s1258 + $0x88] sm:$0xff]
      %v1277 = vld [vmem:[%s1258 + $0x90] sm:$0xff]
      %v1278 = vld [vmem:[%s1258 + $0x98] sm:$0xff]
      %v1279 = vld [vmem:[%s1258 + $0xa0] sm:$0xff]
      %v1280 = vld [vmem:[%s1258 + $0xa8] sm:$0xff]
      %v1281 = vld [vmem:[%s1258 + $0xb0] sm:$0xff]
      %v1282 = vld [vmem:[%s1258 + $0xb8] sm:$0xff]
      %v1283 = vld [vmem:[%s1258 + $0xc0] sm:$0xff]
      %v1284 = vld [vmem:[%s1258 + $0xc8] sm:$0xff]
      %v1285 = vld [vmem:[%s1258 + $0xd0] sm:$0xff]
      %v1286 = vld [vmem:[%s1258 + $0xd8] sm:$0xff]
      %v1287 = vld [vmem:[%s1258 + $0xe0] sm:$0xff]
      %v1288 = vld [vmem:[%s1258 + $0xe8] sm:$0xff]
      %v1290 = vrot.slane %v1226, 4
      %vm1291 = vcmask 654336
      %v1292 = vsel %vm1291, %v1290, 0
      %1294 = vmatprep.subr.mxu0 %v1260
      %1295 = vmatpush1.msra.mxu0 %v1259
      %1296 = vmatprep.subr.mxu0 %v1263
      %1297 = vmatpush1.msra.mxu0 %v1262
      %1298 = vmatprep.subr.mxu0 %v1266
      %1299 = vmatpush1.msra.mxu0 %v1265
      %1300 = vmatprep.subr.mxu0 %v1269
      %1301 = vmatpush1.msra.mxu0 %v1268
      %1302 = vmatprep.subr.mxu0 %v1272
      %1303 = vmatpush1.msra.mxu0 %v1271
      %1304 = vmatprep.subr.mxu0 %v1275
      %1305 = vmatpush1.msra.mxu0 %v1274
      %1306 = vmatprep.subr.mxu0 %v1278
      %1307 = vmatpush1.msra.mxu0 %v1277
      %1308 = vmatprep.subr.mxu0 %v1281
      %1309 = vmatpush1.msra.mxu0 %v1280
      %1310 = vmatprep.subr.mxu0 %v1284
      %1311 = vmatpush1.msra.mxu0 %v1283
      %1312 = vmatprep.subr.mxu0 %v1287
      %1313 = vmatpush1.msra.mxu0 %v1286
      %1314 = vmatprep.subr.mxu0 0.0
      %1315 = vmatpush1.msra.mxu0 0.0
      %1316 = vmatprep.subr.mxu0 0.0
      %1317 = vmatpush1.msra.mxu0 0.0
      %1318 = vmatprep.subr.mxu0 0.0
      %1319 = vmatpush1.msra.mxu0 0.0
      %1320 = vmatprep.subr.mxu0 0.0
      %1321 = vmatpush1.msra.mxu0 0.0
      %1322 = vmatprep.subr.mxu0 0.0
      %1323 = vmatpush1.msra.mxu0 0.0
      %1324 = vmatprep.subr.mxu0 0.0
      %1325 = vmatpush1.msra.mxu0 0.0
      %1326 = vmatprep.subr.mxu0 0.0
      %1327 = vmatpush1.msra.mxu0 0.0
      %1328 = vmatprep.subr.mxu0 0.0
      %1329 = vmatpush1.msra.mxu0 0.0
      %1330 = vmatprep.subr.mxu0 0.0
      %1331 = vmatpush1.msra.mxu0 0.0
      %1332 = vmatprep.subr.mxu0 0.0
      %1333 = vmatpush1.msra.mxu0 0.0
      %1334 = vmatprep.subr.mxu0 0.0
      %1335 = vmatpush1.msra.mxu0 0.0
      %1336 = vmatprep.subr.mxu0 0.0
      %1337 = vmatpush1.msra.mxu0 0.0
      %1338 = vmatprep.subr.mxu0 0.0
      %1339 = vmatpush1.msra.mxu0 0.0
      %1340 = vmatprep.subr.mxu0 0.0
      %1341 = vmatpush1.msra.mxu0 0.0
      %1342 = vmatprep.subr.mxu0 0.0
      %1343 = vmatpush1.msra.mxu0 0.0
      %1344 = vmatprep.subr.mxu0 0.0
      %1345 = vmatpush1.msra.mxu0 0.0
      %1346 = vmatprep.subr.mxu0 0.0
      %1347 = vmatpush1.msra.mxu0 0.0
      %1348 = vmatprep.subr.mxu0 0.0
      %1349 = vmatpush1.msra.mxu0 0.0
      %1350 = vmatprep.subr.mxu0 0.0
      %1351 = vmatpush1.msra.mxu0 0.0
      %1352 = vmatprep.subr.mxu0 0.0
      %1353 = vmatpush1.msra.mxu0 0.0
      %1354 = vmatprep.subr.mxu0 0.0
      %1355 = vmatpush1.msra.mxu0 0.0
      %1356 = vmatprep.subr.mxu0 0.0
      %1357 = vmatpush1.msra.mxu0 0.0
      %1358 = vmatprep.mubr.f32.mxu0 0.0
      %1359 = vmatmul.mubr.f32.gmra.mrb[0].mxu0 %v1292
      %v1360 = vpop.f32.mrb[0].mxu0
      %v1361 = vadd.f32 0.0, %v1360
      %v1362 = vpop.f32.mrb[0].mxu0
      %v1363 = vadd.f32 0.0, %v1362
      %1364 = vdwg.mxu0
      %1365 = vmatprep.subr.mxu0 0.0
      %1366 = vmatpush1.msra.mxu0 %v1261
      %1367 = vmatprep.subr.mxu0 0.0
      %1368 = vmatpush1.msra.mxu0 %v1264
      %1369 = vmatprep.subr.mxu0 0.0
      %1370 = vmatpush1.msra.mxu0 %v1267
      %1371 = vmatprep.subr.mxu0 0.0
      %1372 = vmatpush1.msra.mxu0 %v1270
      %1373 = vmatprep.subr.mxu0 0.0
      %1374 = vmatpush1.msra.mxu0 %v1273
      %1375 = vmatprep.subr.mxu0 0.0
      %1376 = vmatpush1.msra.mxu0 %v1276
      %1377 = vmatprep.subr.mxu0 0.0
      %1378 = vmatpush1.msra.mxu0 %v1279
      %1379 = vmatprep.subr.mxu0 0.0
      %1380 = vmatpush1.msra.mxu0 %v1282
      %1381 = vmatprep.subr.mxu0 0.0
      %1382 = vmatpush1.msra.mxu0 %v1285
      %1383 = vmatprep.subr.mxu0 0.0
      %1384 = vmatpush1.msra.mxu0 %v1288
      %1385 = vmatprep.subr.mxu0 0.0
      %1386 = vmatpush1.msra.mxu0 0.0
      %1387 = vmatprep.subr.mxu0 0.0
      %1388 = vmatpush1.msra.mxu0 0.0
      %1389 = vmatprep.subr.mxu0 0.0
      %1390 = vmatpush1.msra.mxu0 0.0
      %1391 = vmatprep.subr.mxu0 0.0
      %1392 = vmatpush1.msra.mxu0 0.0
      %1393 = vmatprep.subr.mxu0 0.0
      %1394 = vmatpush1.msra.mxu0 0.0
      %1395 = vmatprep.subr.mxu0 0.0
      %1396 = vmatpush1.msra.mxu0 0.0
      %1397 = vmatprep.subr.mxu0 0.0
      %1398 = vmatpush1.msra.mxu0 0.0
      %1399 = vmatprep.subr.mxu0 0.0
      %1400 = vmatpush1.msra.mxu0 0.0
      %1401 = vmatprep.subr.mxu0 0.0
      %1402 = vmatpush1.msra.mxu0 0.0
      %1403 = vmatprep.subr.mxu0 0.0
      %1404 = vmatpush1.msra.mxu0 0.0
      %1405 = vmatprep.subr.mxu0 0.0
      %1406 = vmatpush1.msra.mxu0 0.0
      %1407 = vmatprep.subr.mxu0 0.0
      %1408 = vmatpush1.msra.mxu0 0.0
      %1409 = vmatprep.subr.mxu0 0.0
      %1410 = vmatpush1.msra.mxu0 0.0
      %1411 = vmatprep.subr.mxu0 0.0
      %1412 = vmatpush1.msra.mxu0 0.0
      %1413 = vmatprep.subr.mxu0 0.0
      %1414 = vmatpush1.msra.mxu0 0.0
      %1415 = vmatprep.subr.mxu0 0.0
      %1416 = vmatpush1.msra.mxu0 0.0
      %1417 = vmatprep.subr.mxu0 0.0
      %1418 = vmatpush1.msra.mxu0 0.0
      %1419 = vmatprep.subr.mxu0 0.0
      %1420 = vmatpush1.msra.mxu0 0.0
      %1421 = vmatprep.subr.mxu0 0.0
      %1422 = vmatpush1.msra.mxu0 0.0
      %1423 = vmatprep.subr.mxu0 0.0
      %1424 = vmatpush1.msra.mxu0 0.0
      %1425 = vmatprep.subr.mxu0 0.0
      %1426 = vmatpush1.msra.mxu0 0.0
      %1427 = vmatprep.subr.mxu0 0.0
      %1428 = vmatpush1.msra.mxu0 0.0
      %1429 = vmatprep.mubr.f32.mxu0 0.0
      %1430 = vmatmul.mubr.f32.gmra.mrb[0].mxu0 %v1292
      %v1431 = vpop.f32.mrb[0].mxu0
      %v1432 = vadd.f32 0.0, %v1431
      %v1433 = vpop.f32.mrb[0].mxu0
      %1434 = vdwg.mxu0
      %v1435 = vsel %vm1291, %v1226, 0
      %1437 = vmatprep.subr.mxu0 %v1229
      %1438 = vmatpush1.msra.mxu0 %v1228
      %1439 = vmatprep.subr.mxu0 %v1232
      %1440 = vmatpush1.msra.mxu0 %v1231
      %1441 = vmatprep.subr.mxu0 %v1235
      %1442 = vmatpush1.msra.mxu0 %v1234
      %1443 = vmatprep.subr.mxu0 %v1238
      %1444 = vmatpush1.msra.mxu0 %v1237
      %1445 = vmatprep.subr.mxu0 %v1241
      %1446 = vmatpush1.msra.mxu0 %v1240
      %1447 = vmatprep.subr.mxu0 %v1244
      %1448 = vmatpush1.msra.mxu0 %v1243
      %1449 = vmatprep.subr.mxu0 %v1247
      %1450 = vmatpush1.msra.mxu0 %v1246
      %1451 = vmatprep.subr.mxu0 %v1250
      %1452 = vmatpush1.msra.mxu0 %v1249
      %1453 = vmatprep.subr.mxu0 %v1253
      %1454 = vmatpush1.msra.mxu0 %v1252
      %1455 = vmatprep.subr.mxu0 %v1256
      %1456 = vmatpush1.msra.mxu0 %v1255
      %1457 = vmatprep.subr.mxu0 0.0
      %1458 = vmatpush1.msra.mxu0 0.0
      %1459 = vmatprep.subr.mxu0 0.0
      %1460 = vmatpush1.msra.mxu0 0.0
      %1461 = vmatprep.subr.mxu0 0.0
      %1462 = vmatpush1.msra.mxu0 0.0
      %1463 = vmatprep.subr.mxu0 0.0
      %1464 = vmatpush1.msra.mxu0 0.0
      %1465 = vmatprep.subr.mxu0 0.0
      %1466 = vmatpush1.msra.mxu0 0.0
      %1467 = vmatprep.subr.mxu0 0.0
      %1468 = vmatpush1.msra.mxu0 0.0
      %1469 = vmatprep.subr.mxu0 0.0
      %1470 = vmatpush1.msra.mxu0 0.0
      %1471 = vmatprep.subr.mxu0 0.0
      %1472 = vmatpush1.msra.mxu0 0.0
      %1473 = vmatprep.subr.mxu0 0.0
      %1474 = vmatpush1.msra.mxu0 0.0
      %1475 = vmatprep.subr.mxu0 0.0
      %1476 = vmatpush1.msra.mxu0 0.0
      %1477 = vmatprep.subr.mxu0 0.0
      %1478 = vmatpush1.msra.mxu0 0.0
      %1479 = vmatprep.subr.mxu0 0.0
      %1480 = vmatpush1.msra.mxu0 0.0
      %1481 = vmatprep.subr.mxu0 0.0
      %1482 = vmatpush1.msra.mxu0 0.0
      %1483 = vmatprep.subr.mxu0 0.0
      %1484 = vmatpush1.msra.mxu0 0.0
      %1485 = vmatprep.subr.mxu0 0.0
      %1486 = vmatpush1.msra.mxu0 0.0
      %1487 = vmatprep.subr.mxu0 0.0
      %1488 = vmatpush1.msra.mxu0 0.0
      %1489 = vmatprep.subr.mxu0 0.0
      %1490 = vmatpush1.msra.mxu0 0.0
      %1491 = vmatprep.subr.mxu0 0.0
      %1492 = vmatpush1.msra.mxu0 0.0
      %1493 = vmatprep.subr.mxu0 0.0
      %1494 = vmatpush1.msra.mxu0 0.0
      %1495 = vmatprep.subr.mxu0 0.0
      %1496 = vmatpush1.msra.mxu0 0.0
      %1497 = vmatprep.subr.mxu0 0.0
      %1498 = vmatpush1.msra.mxu0 0.0
      %1499 = vmatprep.subr.mxu0 0.0
      %1500 = vmatpush1.msra.mxu0 0.0
      %1501 = vmatprep.mubr.f32.mxu0 0.0
      %1502 = vmatmul.mubr.f32.gmra.mrb[0].mxu0 %v1435
      %v1503 = vpop.f32.mrb[0].mxu0
      %v1504 = vadd.f32 %v1361, %v1503
      %v1505 = vpop.f32.mrb[0].mxu0
      %v1506 = vadd.f32 %v1363, %v1505
      %1507 = vdwg.mxu0
      %1508 = vmatprep.subr.mxu0 0.0
      %1509 = vmatpush1.msra.mxu0 %v1230
      %1510 = vmatprep.subr.mxu0 0.0
      %1511 = vmatpush1.msra.mxu0 %v1233
      %1512 = vmatprep.subr.mxu0 0.0
      %1513 = vmatpush1.msra.mxu0 %v1236
      %1514 = vmatprep.subr.mxu0 0.0
      %1515 = vmatpush1.msra.mxu0 %v1239
      %1516 = vmatprep.subr.mxu0 0.0
      %1517 = vmatpush1.msra.mxu0 %v1242
      %1518 = vmatprep.subr.mxu0 0.0
      %1519 = vmatpush1.msra.mxu0 %v1245
      %1520 = vmatprep.subr.mxu0 0.0
      %1521 = vmatpush1.msra.mxu0 %v1248
      %1522 = vmatprep.subr.mxu0 0.0
      %1523 = vmatpush1.msra.mxu0 %v1251
      %1524 = vmatprep.subr.mxu0 0.0
      %1525 = vmatpush1.msra.mxu0 %v1254
      %1526 = vmatprep.subr.mxu0 0.0
      %1527 = vmatpush1.msra.mxu0 %v1257
      %1528 = vmatprep.subr.mxu0 0.0
      %1529 = vmatpush1.msra.mxu0 0.0
      %1530 = vmatprep.subr.mxu0 0.0
      %1531 = vmatpush1.msra.mxu0 0.0
      %1532 = vmatprep.subr.mxu0 0.0
      %1533 = vmatpush1.msra.mxu0 0.0
      %1534 = vmatprep.subr.mxu0 0.0
      %1535 = vmatpush1.msra.mxu0 0.0
      %1536 = vmatprep.subr.mxu0 0.0
      %1537 = vmatpush1.msra.mxu0 0.0
      %1538 = vmatprep.subr.mxu0 0.0
      %1539 = vmatpush1.msra.mxu0 0.0
      %1540 = vmatprep.subr.mxu0 0.0
      %1541 = vmatpush1.msra.mxu0 0.0
      %1542 = vmatprep.subr.mxu0 0.0
      %1543 = vmatpush1.msra.mxu0 0.0
      %1544 = vmatprep.subr.mxu0 0.0
      %1545 = vmatpush1.msra.mxu0 0.0
      %1546 = vmatprep.subr.mxu0 0.0
      %1547 = vmatpush1.msra.mxu0 0.0
      %1548 = vmatprep.subr.mxu0 0.0
      %1549 = vmatpush1.msra.mxu0 0.0
      %1550 = vmatprep.subr.mxu0 0.0
      %1551 = vmatpush1.msra.mxu0 0.0
      %1552 = vmatprep.subr.mxu0 0.0
      %1553 = vmatpush1.msra.mxu0 0.0
      %1554 = vmatprep.subr.mxu0 0.0
      %1555 = vmatpush1.msra.mxu0 0.0
      %1556 = vmatprep.subr.mxu0 0.0
      %1557 = vmatpush1.msra.mxu0 0.0
      %1558 = vmatprep.subr.mxu0 0.0
      %1559 = vmatpush1.msra.mxu0 0.0
      %1560 = vmatprep.subr.mxu0 0.0
      %1561 = vmatpush1.msra.mxu0 0.0
      %1562 = vmatprep.subr.mxu0 0.0
      %1563 = vmatpush1.msra.mxu0 0.0
      %1564 = vmatprep.subr.mxu0 0.0
      %1565 = vmatpush1.msra.mxu0 0.0
      %1566 = vmatprep.subr.mxu0 0.0
      %1567 = vmatpush1.msra.mxu0 0.0
      %1568 = vmatprep.subr.mxu0 0.0
      %1569 = vmatpush1.msra.mxu0 0.0
      %1570 = vmatprep.subr.mxu0 0.0
      %1571 = vmatpush1.msra.mxu0 0.0
      %1572 = vmatprep.mubr.f32.mxu0 0.0
      %1573 = vmatmul.mubr.f32.gmra.mrb[0].mxu0 %v1435
      %v1574 = vpop.f32.mrb[0].mxu0
      %v1575 = vadd.f32 %v1432, %v1574
      %v1576 = vpop.f32.mrb[0].mxu0
      %1577 = vdwg.mxu0
      %s1578 = scalar_lea.vmem %s10, 480
      %v1579 = vld [vmem:[%s1578] sm:$0xff]
      %v1580 = vld [vmem:[%s1578 + $0x8] sm:$0xff]
      %v1581 = vld [vmem:[%s1578 + $0x10] sm:$0xff]
      %v1582 = vld [vmem:[%s1578 + $0x18] sm:$0xff]
      %v1583 = vld [vmem:[%s1578 + $0x20] sm:$0xff]
      %v1584 = vld [vmem:[%s1578 + $0x28] sm:$0xff]
      %v1585 = vld [vmem:[%s1578 + $0x30] sm:$0xff]
      %v1586 = vld [vmem:[%s1578 + $0x38] sm:$0xff]
      %v1587 = vld [vmem:[%s1578 + $0x40] sm:$0xff]
      %v1588 = vld [vmem:[%s1578 + $0x48] sm:$0xff]
      %v1589 = vld [vmem:[%s1578 + $0x50] sm:$0xff]
      %v1590 = vld [vmem:[%s1578 + $0x58] sm:$0xff]
      %v1591 = vld [vmem:[%s1578 + $0x60] sm:$0xff]
      %v1592 = vld [vmem:[%s1578 + $0x68] sm:$0xff]
      %v1593 = vld [vmem:[%s1578 + $0x70] sm:$0xff]
      %v1594 = vld [vmem:[%s1578 + $0x78] sm:$0xff]
      %v1595 = vld [vmem:[%s1578 + $0x80] sm:$0xff]
      %v1596 = vld [vmem:[%s1578 + $0x88] sm:$0xff]
      %v1597 = vld [vmem:[%s1578 + $0x90] sm:$0xff]
      %v1598 = vld [vmem:[%s1578 + $0x98] sm:$0xff]
      %v1599 = vld [vmem:[%s1578 + $0xa0] sm:$0xff]
      %v1600 = vld [vmem:[%s1578 + $0xa8] sm:$0xff]
      %v1601 = vld [vmem:[%s1578 + $0xb0] sm:$0xff]
      %v1602 = vld [vmem:[%s1578 + $0xb8] sm:$0xff]
      %v1603 = vld [vmem:[%s1578 + $0xc0] sm:$0xff]
      %v1604 = vld [vmem:[%s1578 + $0xc8] sm:$0xff]
      %v1605 = vld [vmem:[%s1578 + $0xd0] sm:$0xff]
      %v1606 = vld [vmem:[%s1578 + $0xd8] sm:$0xff]
      %v1607 = vld [vmem:[%s1578 + $0xe0] sm:$0xff]
      %v1608 = vld [vmem:[%s1578 + $0xe8] sm:$0xff]
      %v1610 = vsel %vm1291, %v1227, 0
      %1612 = vmatprep.subr.mxu0 %v1580
      %1613 = vmatpush1.msra.mxu0 %v1579
      %1614 = vmatprep.subr.mxu0 %v1583
      %1615 = vmatpush1.msra.mxu0 %v1582
      %1616 = vmatprep.subr.mxu0 %v1586
      %1617 = vmatpush1.msra.mxu0 %v1585
      %1618 = vmatprep.subr.mxu0 %v1589
      %1619 = vmatpush1.msra.mxu0 %v1588
      %1620 = vmatprep.subr.mxu0 %v1592
      %1621 = vmatpush1.msra.mxu0 %v1591
      %1622 = vmatprep.subr.mxu0 %v1595
      %1623 = vmatpush1.msra.mxu0 %v1594
      %1624 = vmatprep.subr.mxu0 %v1598
      %1625 = vmatpush1.msra.mxu0 %v1597
      %1626 = vmatprep.subr.mxu0 %v1601
      %1627 = vmatpush1.msra.mxu0 %v1600
      %1628 = vmatprep.subr.mxu0 %v1604
      %1629 = vmatpush1.msra.mxu0 %v1603
      %1630 = vmatprep.subr.mxu0 %v1607
      %1631 = vmatpush1.msra.mxu0 %v1606
      %1632 = vmatprep.subr.mxu0 0.0
      %1633 = vmatpush1.msra.mxu0 0.0
      %1634 = vmatprep.subr.mxu0 0.0
      %1635 = vmatpush1.msra.mxu0 0.0
      %1636 = vmatprep.subr.mxu0 0.0
      %1637 = vmatpush1.msra.mxu0 0.0
      %1638 = vmatprep.subr.mxu0 0.0
      %1639 = vmatpush1.msra.mxu0 0.0
      %1640 = vmatprep.subr.mxu0 0.0
      %1641 = vmatpush1.msra.mxu0 0.0
      %1642 = vmatprep.subr.mxu0 0.0
      %1643 = vmatpush1.msra.mxu0 0.0
      %1644 = vmatprep.subr.mxu0 0.0
      %1645 = vmatpush1.msra.mxu0 0.0
      %1646 = vmatprep.subr.mxu0 0.0
      %1647 = vmatpush1.msra.mxu0 0.0
      %1648 = vmatprep.subr.mxu0 0.0
      %1649 = vmatpush1.msra.mxu0 0.0
      %1650 = vmatprep.subr.mxu0 0.0
      %1651 = vmatpush1.msra.mxu0 0.0
      %1652 = vmatprep.subr.mxu0 0.0
      %1653 = vmatpush1.msra.mxu0 0.0
      %1654 = vmatprep.subr.mxu0 0.0
      %1655 = vmatpush1.msra.mxu0 0.0
      %1656 = vmatprep.subr.mxu0 0.0
      %1657 = vmatpush1.msra.mxu0 0.0
      %1658 = vmatprep.subr.mxu0 0.0
      %1659 = vmatpush1.msra.mxu0 0.0
      %1660 = vmatprep.subr.mxu0 0.0
      %1661 = vmatpush1.msra.mxu0 0.0
      %1662 = vmatprep.subr.mxu0 0.0
      %1663 = vmatpush1.msra.mxu0 0.0
      %1664 = vmatprep.subr.mxu0 0.0
      %1665 = vmatpush1.msra.mxu0 0.0
      %1666 = vmatprep.subr.mxu0 0.0
      %1667 = vmatpush1.msra.mxu0 0.0
      %1668 = vmatprep.subr.mxu0 0.0
      %1669 = vmatpush1.msra.mxu0 0.0
      %1670 = vmatprep.subr.mxu0 0.0
      %1671 = vmatpush1.msra.mxu0 0.0
      %1672 = vmatprep.subr.mxu0 0.0
      %1673 = vmatpush1.msra.mxu0 0.0
      %1674 = vmatprep.subr.mxu0 0.0
      %1675 = vmatpush1.msra.mxu0 0.0
      %1676 = vmatprep.mubr.f32.mxu0 0.0
      %1677 = vmatmul.mubr.f32.gmra.mrb[0].mxu0 %v1610
      %v1678 = vpop.f32.mrb[0].mxu0
      %v1679 = vadd.f32 0.0, %v1678
      %v1680 = vpop.f32.mrb[0].mxu0
      %v1681 = vadd.f32 0.0, %v1680
      %1682 = vdwg.mxu0
      %1683 = vmatprep.subr.mxu0 0.0
      %1684 = vmatpush1.msra.mxu0 %v1581
      %1685 = vmatprep.subr.mxu0 0.0
      %1686 = vmatpush1.msra.mxu0 %v1584
      %1687 = vmatprep.subr.mxu0 0.0
      %1688 = vmatpush1.msra.mxu0 %v1587
      %1689 = vmatprep.subr.mxu0 0.0
      %1690 = vmatpush1.msra.mxu0 %v1590
      %1691 = vmatprep.subr.mxu0 0.0
      %1692 = vmatpush1.msra.mxu0 %v1593
      %1693 = vmatprep.subr.mxu0 0.0
      %1694 = vmatpush1.msra.mxu0 %v1596
      %1695 = vmatprep.subr.mxu0 0.0
      %1696 = vmatpush1.msra.mxu0 %v1599
      %1697 = vmatprep.subr.mxu0 0.0
      %1698 = vmatpush1.msra.mxu0 %v1602
      %1699 = vmatprep.subr.mxu0 0.0
      %1700 = vmatpush1.msra.mxu0 %v1605
      %1701 = vmatprep.subr.mxu0 0.0
      %1702 = vmatpush1.msra.mxu0 %v1608
      %1703 = vmatprep.subr.mxu0 0.0
      %1704 = vmatpush1.msra.mxu0 0.0
      %1705 = vmatprep.subr.mxu0 0.0
      %1706 = vmatpush1.msra.mxu0 0.0
      %1707 = vmatprep.subr.mxu0 0.0
      %1708 = vmatpush1.msra.mxu0 0.0
      %1709 = vmatprep.subr.mxu0 0.0
      %1710 = vmatpush1.msra.mxu0 0.0
      %1711 = vmatprep.subr.mxu0 0.0
      %1712 = vmatpush1.msra.mxu0 0.0
      %1713 = vmatprep.subr.mxu0 0.0
      %1714 = vmatpush1.msra.mxu0 0.0
      %1715 = vmatprep.subr.mxu0 0.0
      %1716 = vmatpush1.msra.mxu0 0.0
      %1717 = vmatprep.subr.mxu0 0.0
      %1718 = vmatpush1.msra.mxu0 0.0
      %1719 = vmatprep.subr.mxu0 0.0
      %1720 = vmatpush1.msra.mxu0 0.0
      %1721 = vmatprep.subr.mxu0 0.0
      %1722 = vmatpush1.msra.mxu0 0.0
      %1723 = vmatprep.subr.mxu0 0.0
      %1724 = vmatpush1.msra.mxu0 0.0
      %1725 = vmatprep.subr.mxu0 0.0
      %1726 = vmatpush1.msra.mxu0 0.0
      %1727 = vmatprep.subr.mxu0 0.0
      %1728 = vmatpush1.msra.mxu0 0.0
      %1729 = vmatprep.subr.mxu0 0.0
      %1730 = vmatpush1.msra.mxu0 0.0
      %1731 = vmatprep.subr.mxu0 0.0
      %1732 = vmatpush1.msra.mxu0 0.0
      %1733 = vmatprep.subr.mxu0 0.0
      %1734 = vmatpush1.msra.mxu0 0.0
      %1735 = vmatprep.subr.mxu0 0.0
      %1736 = vmatpush1.msra.mxu0 0.0
      %1737 = vmatprep.subr.mxu0 0.0
      %1738 = vmatpush1.msra.mxu0 0.0
      %1739 = vmatprep.subr.mxu0 0.0
      %1740 = vmatpush1.msra.mxu0 0.0
      %1741 = vmatprep.subr.mxu0 0.0
      %1742 = vmatpush1.msra.mxu0 0.0
      %1743 = vmatprep.subr.mxu0 0.0
      %1744 = vmatpush1.msra.mxu0 0.0
      %1745 = vmatprep.subr.mxu0 0.0
      %1746 = vmatpush1.msra.mxu0 0.0
      %1747 = vmatprep.mubr.f32.mxu0 0.0
      %1748 = vmatmul.mubr.f32.gmra.mrb[0].mxu0 %v1610
      %v1749 = vpop.f32.mrb[0].mxu0
      %v1750 = vadd.f32 0.0, %v1749
      %v1751 = vpop.f32.mrb[0].mxu0
      %1752 = vdwg.mxu0
      %v1753 = vadd.f32 %v1504, %v1679
      %v1754 = vadd.f32 %v1506, %v1681
      %v1755 = vadd.f32 %v1575, %v1750
      %s1756 = scalar_lea.vmem %s10, 720
      %v1757 = vld [vmem:[%s1756] sm:$0xff]
      %v1758 = vld [vmem:[%s1756 + $0x8] sm:$0xff]
      %v1759 = vld [vmem:[%s1756 + $0x10] sm:$0xff]
      %v1760 = vld [vmem:[%s1756 + $0x18] sm:$0xff]
      %v1761 = vld [vmem:[%s1756 + $0x20] sm:$0xff]
      %v1762 = vld [vmem:[%s1756 + $0x28] sm:$0xff]
      %v1763 = vld [vmem:[%s1756 + $0x30] sm:$0xff]
      %v1764 = vld [vmem:[%s1756 + $0x38] sm:$0xff]
      %v1765 = vld [vmem:[%s1756 + $0x40] sm:$0xff]
      %v1766 = vld [vmem:[%s1756 + $0x48] sm:$0xff]
      %v1767 = vld [vmem:[%s1756 + $0x50] sm:$0xff]
      %v1768 = vld [vmem:[%s1756 + $0x58] sm:$0xff]
      %v1769 = vld [vmem:[%s1756 + $0x60] sm:$0xff]
      %v1770 = vld [vmem:[%s1756 + $0x68] sm:$0xff]
      %v1771 = vld [vmem:[%s1756 + $0x70] sm:$0xff]
      %v1772 = vld [vmem:[%s1756 + $0x78] sm:$0xff]
      %v1773 = vld [vmem:[%s1756 + $0x80] sm:$0xff]
      %v1774 = vld [vmem:[%s1756 + $0x88] sm:$0xff]
      %v1775 = vld [vmem:[%s1756 + $0x90] sm:$0xff]
      %v1776 = vld [vmem:[%s1756 + $0x98] sm:$0xff]
      %v1777 = vld [vmem:[%s1756 + $0xa0] sm:$0xff]
      %v1778 = vld [vmem:[%s1756 + $0xa8] sm:$0xff]
      %v1779 = vld [vmem:[%s1756 + $0xb0] sm:$0xff]
      %v1780 = vld [vmem:[%s1756 + $0xb8] sm:$0xff]
      %v1781 = vld [vmem:[%s1756 + $0xc0] sm:$0xff]
      %v1782 = vld [vmem:[%s1756 + $0xc8] sm:$0xff]
      %v1783 = vld [vmem:[%s1756 + $0xd0] sm:$0xff]
      %v1784 = vld [vmem:[%s1756 + $0xd8] sm:$0xff]
      %v1785 = vld [vmem:[%s1756 + $0xe0] sm:$0xff]
      %v1786 = vld [vmem:[%s1756 + $0xe8] sm:$0xff]
      %v1787 = vrot.slane %v1227, 4
      %v1788 = vsel %vm1291, %v1787, 0
      %1790 = vmatprep.subr.mxu0 %v1758
      %1791 = vmatpush1.msra.mxu0 %v1757
      %1792 = vmatprep.subr.mxu0 %v1761
      %1793 = vmatpush1.msra.mxu0 %v1760
      %1794 = vmatprep.subr.mxu0 %v1764
      %1795 = vmatpush1.msra.mxu0 %v1763
      %1796 = vmatprep.subr.mxu0 %v1767
      %1797 = vmatpush1.msra.mxu0 %v1766
      %1798 = vmatprep.subr.mxu0 %v1770
      %1799 = vmatpush1.msra.mxu0 %v1769
      %1800 = vmatprep.subr.mxu0 %v1773
      %1801 = vmatpush1.msra.mxu0 %v1772
      %1802 = vmatprep.subr.mxu0 %v1776
      %1803 = vmatpush1.msra.mxu0 %v1775
      %1804 = vmatprep.subr.mxu0 %v1779
      %1805 = vmatpush1.msra.mxu0 %v1778
      %1806 = vmatprep.subr.mxu0 %v1782
      %1807 = vmatpush1.msra.mxu0 %v1781
      %1808 = vmatprep.subr.mxu0 %v1785
      %1809 = vmatpush1.msra.mxu0 %v1784
      %1810 = vmatprep.subr.mxu0 0.0
      %1811 = vmatpush1.msra.mxu0 0.0
      %1812 = vmatprep.subr.mxu0 0.0
      %1813 = vmatpush1.msra.mxu0 0.0
      %1814 = vmatprep.subr.mxu0 0.0
      %1815 = vmatpush1.msra.mxu0 0.0
      %1816 = vmatprep.subr.mxu0 0.0
      %1817 = vmatpush1.msra.mxu0 0.0
      %1818 = vmatprep.subr.mxu0 0.0
      %1819 = vmatpush1.msra.mxu0 0.0
      %1820 = vmatprep.subr.mxu0 0.0
      %1821 = vmatpush1.msra.mxu0 0.0
      %1822 = vmatprep.subr.mxu0 0.0
      %1823 = vmatpush1.msra.mxu0 0.0
      %1824 = vmatprep.subr.mxu0 0.0
      %1825 = vmatpush1.msra.mxu0 0.0
      %1826 = vmatprep.subr.mxu0 0.0
      %1827 = vmatpush1.msra.mxu0 0.0
      %1828 = vmatprep.subr.mxu0 0.0
      %1829 = vmatpush1.msra.mxu0 0.0
      %1830 = vmatprep.subr.mxu0 0.0
      %1831 = vmatpush1.msra.mxu0 0.0
      %1832 = vmatprep.subr.mxu0 0.0
      %1833 = vmatpush1.msra.mxu0 0.0
      %1834 = vmatprep.subr.mxu0 0.0
      %1835 = vmatpush1.msra.mxu0 0.0
      %1836 = vmatprep.subr.mxu0 0.0
      %1837 = vmatpush1.msra.mxu0 0.0
      %1838 = vmatprep.subr.mxu0 0.0
      %1839 = vmatpush1.msra.mxu0 0.0
      %1840 = vmatprep.subr.mxu0 0.0
      %1841 = vmatpush1.msra.mxu0 0.0
      %1842 = vmatprep.subr.mxu0 0.0
      %1843 = vmatpush1.msra.mxu0 0.0
      %1844 = vmatprep.subr.mxu0 0.0
      %1845 = vmatpush1.msra.mxu0 0.0
      %1846 = vmatprep.subr.mxu0 0.0
      %1847 = vmatpush1.msra.mxu0 0.0
      %1848 = vmatprep.subr.mxu0 0.0
      %1849 = vmatpush1.msra.mxu0 0.0
      %1850 = vmatprep.subr.mxu0 0.0
      %1851 = vmatpush1.msra.mxu0 0.0
      %1852 = vmatprep.subr.mxu0 0.0
      %1853 = vmatpush1.msra.mxu0 0.0
      %1854 = vmatprep.mubr.f32.mxu0 0.0
      %1855 = vmatmul.mubr.f32.gmra.mrb[0].mxu0 %v1788
      %v1856 = vpop.f32.mrb[0].mxu0
      %v1857 = vadd.f32 0.0, %v1856
      %v1858 = vpop.f32.mrb[0].mxu0
      %v1859 = vadd.f32 0.0, %v1858
      %1860 = vdwg.mxu0
      %1861 = vmatprep.subr.mxu0 0.0
      %1862 = vmatpush1.msra.mxu0 %v1759
      %1863 = vmatprep.subr.mxu0 0.0
      %1864 = vmatpush1.msra.mxu0 %v1762
      %1865 = vmatprep.subr.mxu0 0.0
      %1866 = vmatpush1.msra.mxu0 %v1765
      %1867 = vmatprep.subr.mxu0 0.0
      %1868 = vmatpush1.msra.mxu0 %v1768
      %1869 = vmatprep.subr.mxu0 0.0
      %1870 = vmatpush1.msra.mxu0 %v1771
      %1871 = vmatprep.subr.mxu0 0.0
      %1872 = vmatpush1.msra.mxu0 %v1774
      %1873 = vmatprep.subr.mxu0 0.0
      %1874 = vmatpush1.msra.mxu0 %v1777
      %1875 = vmatprep.subr.mxu0 0.0
      %1876 = vmatpush1.msra.mxu0 %v1780
      %1877 = vmatprep.subr.mxu0 0.0
      %1878 = vmatpush1.msra.mxu0 %v1783
      %1879 = vmatprep.subr.mxu0 0.0
      %1880 = vmatpush1.msra.mxu0 %v1786
      %1881 = vmatprep.subr.mxu0 0.0
      %1882 = vmatpush1.msra.mxu0 0.0
      %1883 = vmatprep.subr.mxu0 0.0
      %1884 = vmatpush1.msra.mxu0 0.0
      %1885 = vmatprep.subr.mxu0 0.0
      %1886 = vmatpush1.msra.mxu0 0.0
      %1887 = vmatprep.subr.mxu0 0.0
      %1888 = vmatpush1.msra.mxu0 0.0
      %1889 = vmatprep.subr.mxu0 0.0
      %1890 = vmatpush1.msra.mxu0 0.0
      %1891 = vmatprep.subr.mxu0 0.0
      %1892 = vmatpush1.msra.mxu0 0.0
      %1893 = vmatprep.subr.mxu0 0.0
      %1894 = vmatpush1.msra.mxu0 0.0
      %1895 = vmatprep.subr.mxu0 0.0
      %1896 = vmatpush1.msra.mxu0 0.0
      %1897 = vmatprep.subr.mxu0 0.0
      %1898 = vmatpush1.msra.mxu0 0.0
      %1899 = vmatprep.subr.mxu0 0.0
      %1900 = vmatpush1.msra.mxu0 0.0
      %1901 = vmatprep.subr.mxu0 0.0
      %1902 = vmatpush1.msra.mxu0 0.0
      %1903 = vmatprep.subr.mxu0 0.0
      %1904 = vmatpush1.msra.mxu0 0.0
      %1905 = vmatprep.subr.mxu0 0.0
      %1906 = vmatpush1.msra.mxu0 0.0
      %1907 = vmatprep.subr.mxu0 0.0
      %1908 = vmatpush1.msra.mxu0 0.0
      %1909 = vmatprep.subr.mxu0 0.0
      %1910 = vmatpush1.msra.mxu0 0.0
      %1911 = vmatprep.subr.mxu0 0.0
      %1912 = vmatpush1.msra.mxu0 0.0
      %1913 = vmatprep.subr.mxu0 0.0
      %1914 = vmatpush1.msra.mxu0 0.0
      %1915 = vmatprep.subr.mxu0 0.0
      %1916 = vmatpush1.msra.mxu0 0.0
      %1917 = vmatprep.subr.mxu0 0.0
      %1918 = vmatpush1.msra.mxu0 0.0
      %1919 = vmatprep.subr.mxu0 0.0
      %1920 = vmatpush1.msra.mxu0 0.0
      %1921 = vmatprep.subr.mxu0 0.0
      %1922 = vmatpush1.msra.mxu0 0.0
      %1923 = vmatprep.subr.mxu0 0.0
      %1924 = vmatpush1.msra.mxu0 0.0
      %1925 = vmatprep.mubr.f32.mxu0 0.0
      %1926 = vmatmul.mubr.f32.gmra.mrb[0].mxu0 %v1788
      %v1927 = vpop.f32.mrb[0].mxu0
      %v1928 = vadd.f32 0.0, %v1927
      %v1929 = vpop.f32.mrb[0].mxu0
      %1930 = vdwg.mxu0
      %v1931 = vadd.f32 %v1753, %v1857
      %v1932 = vadd.f32 %v1754, %v1859
      %v1933 = vadd.f32 %v1755, %v1928
      %1934 = vst [vmem:[#allocation2] sm:$0xf] %v1931
      %1935 = vst [vmem:[#allocation2 + $0x8] sm:$0xf] %v1932
      %vm1936 = vcmask 257024
      %1937 = vst.msk [vmem:[#allocation2 + $0x10] sm:$0xf] %vm1936, %v1933
      %v1941 = vrot.slane %v1931, 4
      %v1942 = vrot.slane %v1932, 4
      %v1943 = vrot.slane %v1933, 4
      %1944 = vrot.lane.b32.xlu0 %v1941, 127
      %v1945 = vpop.permute.xlu0 %1944
      %1946 = vrot.lane.b32.xlu0 %v1942, 127
      %v1947 = vpop.permute.xlu0 %1946
      %1948 = vrot.lane.b32.xlu0 %v1943, 127
      %v1949 = vpop.permute.xlu0 %1948
      %v1950 = vsel %vm406, %v1945, %v1947
      %v1951 = vsel %vm406, %v1947, %v1949
      %1955 = vst [vmem:[#allocation2] sm:$0xf0] %v1950
      %1956 = vst [vmem:[#allocation2 + $0x8] sm:$0xf0] %v1951
      %vm1957 = vcmask 261124
      %1958 = vst.msk [vmem:[#allocation2 + $0x10] sm:$0xf0] %vm1957, %v1949
      %1959 = vrot.lane.b32.xlu0 %v1931, 126
      %v1960 = vpop.permute.xlu0 %1959
      %1961 = vrot.lane.b32.xlu0 %v1932, 126
      %v1962 = vpop.permute.xlu0 %1961
      %1963 = vrot.lane.b32.xlu0 %v1933, 126
      %v1964 = vpop.permute.xlu0 %1963
      %v1965 = vsel %vm425, %v1960, %v1962
      %v1966 = vsel %vm425, %v1962, %v1964
      %1970 = vst [vmem:[#allocation2 + $0x18] sm:$0xf] %v1965
      %1971 = vst [vmem:[#allocation2 + $0x20] sm:$0xf] %v1966
      %1972 = vst.msk [vmem:[#allocation2 + $0x28] sm:$0xf] %vm1936, %v1964
      %1973 = vrot.lane.b32.xlu0 %v1941, 110
      %v1974 = vpop.permute.xlu0 %1973
      %1975 = vrot.lane.b32.xlu0 %v1942, 110
      %v1976 = vpop.permute.xlu0 %1975
      %1977 = vrot.lane.b32.xlu0 %v1943, 110
      %v1978 = vpop.permute.xlu0 %1977
      %v1979 = vsel %vm448, %v1974, %v1976
      %v1980 = vsel %vm448, %v1976, %v1978
      %1984 = vst [vmem:[#allocation2 + $0x18] sm:$0xf0] %v1979
      %1985 = vst [vmem:[#allocation2 + $0x20] sm:$0xf0] %v1980
      %1986 = vst.msk [vmem:[#allocation2 + $0x28] sm:$0xf0] %vm1957, %v1978
      %1987 = vrot.lane.b32.xlu0 %v1931, 109
      %v1988 = vpop.permute.xlu0 %1987
      %1989 = vrot.lane.b32.xlu0 %v1932, 109
      %v1990 = vpop.permute.xlu0 %1989
      %1991 = vrot.lane.b32.xlu0 %v1933, 109
      %v1992 = vpop.permute.xlu0 %1991
      %v1993 = vsel %vm466, %v1988, %v1990
      %v1994 = vsel %vm466, %v1990, %v1992
      %1998 = vst [vmem:[#allocation2 + $0x30] sm:$0xf] %v1993
      %1999 = vst [vmem:[#allocation2 + $0x38] sm:$0xf] %v1994
      %2000 = vst.msk [vmem:[#allocation2 + $0x40] sm:$0xf] %vm1936, %v1992
      %2001 = vrot.lane.b32.xlu0 %v1941, 108
      %v2002 = vpop.permute.xlu0 %2001
      %2003 = vrot.lane.b32.xlu0 %v1942, 108
      %v2004 = vpop.permute.xlu0 %2003
      %2005 = vrot.lane.b32.xlu0 %v1943, 108
      %v2006 = vpop.permute.xlu0 %2005
      %v2007 = vsel %vm485, %v2002, %v2004
      %v2008 = vsel %vm485, %v2004, %v2006
      %2012 = vst [vmem:[#allocation2 + $0x30] sm:$0xf0] %v2007
      %2013 = vst [vmem:[#allocation2 + $0x38] sm:$0xf0] %v2008
      %2014 = vst.msk [vmem:[#allocation2 + $0x40] sm:$0xf0] %vm1957, %v2006
      %2015 = vrot.lane.b32.xlu0 %v1931, 92
      %v2016 = vpop.permute.xlu0 %2015
      %2017 = vrot.lane.b32.xlu0 %v1932, 92
      %v2018 = vpop.permute.xlu0 %2017
      %2019 = vrot.lane.b32.xlu0 %v1933, 92
      %v2020 = vpop.permute.xlu0 %2019
      %v2021 = vsel %vm508, %v2016, %v2018
      %v2022 = vsel %vm508, %v2018, %v2020
      %2026 = vst [vmem:[#allocation2 + $0x48] sm:$0xf] %v2021
      %2027 = vst [vmem:[#allocation2 + $0x50] sm:$0xf] %v2022
      %2028 = vst.msk [vmem:[#allocation2 + $0x58] sm:$0xf] %vm1936, %v2020
      %2029 = vrot.lane.b32.xlu0 %v1941, 91
      %v2030 = vpop.permute.xlu0 %2029
      %2031 = vrot.lane.b32.xlu0 %v1942, 91
      %v2032 = vpop.permute.xlu0 %2031
      %2033 = vrot.lane.b32.xlu0 %v1943, 91
      %v2034 = vpop.permute.xlu0 %2033
      %v2035 = vsel %vm527, %v2030, %v2032
      %v2036 = vsel %vm527, %v2032, %v2034
      %2040 = vst [vmem:[#allocation2 + $0x48] sm:$0xf0] %v2035
      %2041 = vst [vmem:[#allocation2 + $0x50] sm:$0xf0] %v2036
      %2042 = vst.msk [vmem:[#allocation2 + $0x58] sm:$0xf0] %vm1957, %v2034
      %2043 = vrot.lane.b32.xlu0 %v1931, 90
      %v2044 = vpop.permute.xlu0 %2043
      %2045 = vrot.lane.b32.xlu0 %v1932, 90
      %v2046 = vpop.permute.xlu0 %2045
      %2047 = vrot.lane.b32.xlu0 %v1933, 90
      %v2048 = vpop.permute.xlu0 %2047
      %v2049 = vsel %vm543, %v2044, %v2046
      %v2050 = vsel %vm543, %v2046, %v2048
      %2054 = vst [vmem:[#allocation2 + $0x60] sm:$0xf] %v2049
      %2055 = vst [vmem:[#allocation2 + $0x68] sm:$0xf] %v2050
      %2056 = vst.msk [vmem:[#allocation2 + $0x70] sm:$0xf] %vm1936, %v2048
      %v2057 = vld [vmem:[#allocation2] sm:$0xff]
      %v2058 = vld [vmem:[#allocation2 + $0x8] sm:$0xff]
      %v2059 = vld [vmem:[#allocation2 + $0x10] sm:$0xff]
      %v2060 = vld [vmem:[#allocation2 + $0x18] sm:$0xff]
      %v2061 = vld [vmem:[#allocation2 + $0x20] sm:$0xff]
      %v2062 = vld [vmem:[#allocation2 + $0x28] sm:$0xff]
      %v2063 = vld [vmem:[#allocation2 + $0x30] sm:$0xff]
      %v2064 = vld [vmem:[#allocation2 + $0x38] sm:$0xff]
      %v2065 = vld [vmem:[#allocation2 + $0x40] sm:$0xff]
      %v2066 = vld [vmem:[#allocation2 + $0x48] sm:$0xff]
      %v2067 = vld [vmem:[#allocation2 + $0x50] sm:$0xff]
      %v2068 = vld [vmem:[#allocation2 + $0x58] sm:$0xff]
      %v2069 = vld [vmem:[#allocation2 + $0x60] sm:$0xf]
      %v2070 = vld [vmem:[#allocation2 + $0x68] sm:$0xf]
      %v2071 = vld [vmem:[#allocation2 + $0x70] sm:$0xf]
      %v2072 = vld [vmem:[%s5] sm:$0x7]
      %v2075 = vcombine.high %v777, %v777
      %2077 = vst [vmem:[#allocation2] sm:$0xf] %v777
      %2078 = vst [vmem:[#allocation2 + $0x8] sm:$0xf] %v2075
      %2079 = vst.msk [vmem:[#allocation2 + $0x10] sm:$0xf] %vm1936, %v778
      %v2080 = vcombine.low %v777, %v777
      %v2081 = vcombine.low %v778, %v778
      %2082 = vrot.lane.b32.xlu0 %v2080, 127
      %v2083 = vpop.permute.xlu0 %2082
      %2084 = vrot.lane.b32.xlu0 %v777, 127
      %v2085 = vpop.permute.xlu0 %2084
      %2086 = vrot.lane.b32.xlu0 %v2081, 127
      %v2087 = vpop.permute.xlu0 %2086
      %v2088 = vsel %vm406, %v2083, %v2085
      %v2089 = vsel %vm406, %v2085, %v2087
      %2093 = vst [vmem:[#allocation2] sm:$0xf0] %v2088
      %2094 = vst [vmem:[#allocation2 + $0x8] sm:$0xf0] %v2089
      %2095 = vst.msk [vmem:[#allocation2 + $0x10] sm:$0xf0] %vm1957, %v2087
      %2096 = vrot.lane.b32.xlu0 %v777, 126
      %v2097 = vpop.permute.xlu0 %2096
      %2098 = vrot.lane.b32.xlu0 %v2075, 126
      %v2099 = vpop.permute.xlu0 %2098
      %2100 = vrot.lane.b32.xlu0 %v778, 126
      %v2101 = vpop.permute.xlu0 %2100
      %v2102 = vsel %vm425, %v2097, %v2099
      %v2103 = vsel %vm425, %v2099, %v2101
      %2107 = vst [vmem:[#allocation2 + $0x18] sm:$0xf] %v2102
      %2108 = vst [vmem:[#allocation2 + $0x20] sm:$0xf] %v2103
      %2109 = vst.msk [vmem:[#allocation2 + $0x28] sm:$0xf] %vm1936, %v2101
      %2110 = vrot.lane.b32.xlu0 %v2080, 110
      %v2111 = vpop.permute.xlu0 %2110
      %2112 = vrot.lane.b32.xlu0 %v777, 110
      %v2113 = vpop.permute.xlu0 %2112
      %2114 = vrot.lane.b32.xlu0 %v2081, 110
      %v2115 = vpop.permute.xlu0 %2114
      %v2116 = vsel %vm448, %v2111, %v2113
      %v2117 = vsel %vm448, %v2113, %v2115
      %2121 = vst [vmem:[#allocation2 + $0x18] sm:$0xf0] %v2116
      %2122 = vst [vmem:[#allocation2 + $0x20] sm:$0xf0] %v2117
      %2123 = vst.msk [vmem:[#allocation2 + $0x28] sm:$0xf0] %vm1957, %v2115
      %2124 = vrot.lane.b32.xlu0 %v777, 109
      %v2125 = vpop.permute.xlu0 %2124
      %2126 = vrot.lane.b32.xlu0 %v2075, 109
      %v2127 = vpop.permute.xlu0 %2126
      %2128 = vrot.lane.b32.xlu0 %v778, 109
      %v2129 = vpop.permute.xlu0 %2128
      %v2130 = vsel %vm466, %v2125, %v2127
      %v2131 = vsel %vm466, %v2127, %v2129
      %2135 = vst [vmem:[#allocation2 + $0x30] sm:$0xf] %v2130
      %2136 = vst [vmem:[#allocation2 + $0x38] sm:$0xf] %v2131
      %2137 = vst.msk [vmem:[#allocation2 + $0x40] sm:$0xf] %vm1936, %v2129
      %2138 = vrot.lane.b32.xlu0 %v2080, 108
      %v2139 = vpop.permute.xlu0 %2138
      %2140 = vrot.lane.b32.xlu0 %v777, 108
      %v2141 = vpop.permute.xlu0 %2140
      %2142 = vrot.lane.b32.xlu0 %v2081, 108
      %v2143 = vpop.permute.xlu0 %2142
      %v2144 = vsel %vm485, %v2139, %v2141
      %v2145 = vsel %vm485, %v2141, %v2143
      %2149 = vst [vmem:[#allocation2 + $0x30] sm:$0xf0] %v2144
      %2150 = vst [vmem:[#allocation2 + $0x38] sm:$0xf0] %v2145
      %2151 = vst.msk [vmem:[#allocation2 + $0x40] sm:$0xf0] %vm1957, %v2143
      %2152 = vrot.lane.b32.xlu0 %v777, 92
      %v2153 = vpop.permute.xlu0 %2152
      %2154 = vrot.lane.b32.xlu0 %v2075, 92
      %v2155 = vpop.permute.xlu0 %2154
      %2156 = vrot.lane.b32.xlu0 %v778, 92
      %v2157 = vpop.permute.xlu0 %2156
      %v2158 = vsel %vm508, %v2153, %v2155
      %v2159 = vsel %vm508, %v2155, %v2157
      %2163 = vst [vmem:[#allocation2 + $0x48] sm:$0xf] %v2158
      %2164 = vst [vmem:[#allocation2 + $0x50] sm:$0xf] %v2159
      %2165 = vst.msk [vmem:[#allocation2 + $0x58] sm:$0xf] %vm1936, %v2157
      %2166 = vrot.lane.b32.xlu0 %v2080, 91
      %v2167 = vpop.permute.xlu0 %2166
      %2168 = vrot.lane.b32.xlu0 %v777, 91
      %v2169 = vpop.permute.xlu0 %2168
      %2170 = vrot.lane.b32.xlu0 %v2081, 91
      %v2171 = vpop.permute.xlu0 %2170
      %v2172 = vsel %vm527, %v2167, %v2169
      %v2173 = vsel %vm527, %v2169, %v2171
      %2177 = vst [vmem:[#allocation2 + $0x48] sm:$0xf0] %v2172
      %2178 = vst [vmem:[#allocation2 + $0x50] sm:$0xf0] %v2173
      %2179 = vst.msk [vmem:[#allocation2 + $0x58] sm:$0xf0] %vm1957, %v2171
      %2180 = vrot.lane.b32.xlu0 %v777, 90
      %v2181 = vpop.permute.xlu0 %2180
      %2182 = vrot.lane.b32.xlu0 %v2075, 90
      %v2183 = vpop.permute.xlu0 %2182
      %2184 = vrot.lane.b32.xlu0 %v778, 90
      %v2185 = vpop.permute.xlu0 %2184
      %v2186 = vsel %vm543, %v2181, %v2183
      %v2187 = vsel %vm543, %v2183, %v2185
      %2191 = vst [vmem:[#allocation2 + $0x60] sm:$0xf] %v2186
      %2192 = vst [vmem:[#allocation2 + $0x68] sm:$0xf] %v2187
      %2193 = vst.msk [vmem:[#allocation2 + $0x70] sm:$0xf] %vm1936, %v2185
      %v2194 = vld [vmem:[#allocation2] sm:$0xff]
      %v2195 = vld [vmem:[#allocation2 + $0x8] sm:$0xff]
      %v2196 = vld [vmem:[#allocation2 + $0x10] sm:$0xff]
      %v2197 = vld [vmem:[#allocation2 + $0x18] sm:$0xff]
      %v2198 = vld [vmem:[#allocation2 + $0x20] sm:$0xff]
      %v2199 = vld [vmem:[#allocation2 + $0x28] sm:$0xff]
      %v2200 = vld [vmem:[#allocation2 + $0x30] sm:$0xff]
      %v2201 = vld [vmem:[#allocation2 + $0x38] sm:$0xff]
      %v2202 = vld [vmem:[#allocation2 + $0x40] sm:$0xff]
      %v2203 = vld [vmem:[#allocation2 + $0x48] sm:$0xff]
      %v2204 = vld [vmem:[#allocation2 + $0x50] sm:$0xff]
      %v2205 = vld [vmem:[#allocation2 + $0x58] sm:$0xff]
      %v2206 = vld [vmem:[#allocation2 + $0x60] sm:$0xf]
      %v2207 = vld [vmem:[#allocation2 + $0x68] sm:$0xf]
      %v2208 = vld [vmem:[#allocation2 + $0x70] sm:$0xf]
      %v2209 = vld [vmem:[%s6] sm:$0x7]
      %v2211 = vsel %vm1137, %v2209, 0
      %v2214 = vsel %vm807, %v2206, 0
      %v2217 = vsel %vm807, %v2207, 0
      %v2220 = vsel %vm807, %v2208, 0
      %2222 = vmatprep.subr.mxu0 %v2195
      %2223 = vmatpush1.msra.mxu0 %v2194
      %2224 = vmatprep.subr.mxu0 %v2198
      %2225 = vmatpush1.msra.mxu0 %v2197
      %2226 = vmatprep.subr.mxu0 %v2201
      %2227 = vmatpush1.msra.mxu0 %v2200
      %2228 = vmatprep.subr.mxu0 %v2204
      %2229 = vmatpush1.msra.mxu0 %v2203
      %2230 = vmatprep.subr.mxu0 %v2217
      %2231 = vmatpush1.msra.mxu0 %v2214
      %2232 = vmatprep.subr.mxu0 0.0
      %2233 = vmatpush1.msra.mxu0 0.0
      %2234 = vmatprep.subr.mxu0 0.0
      %2235 = vmatpush1.msra.mxu0 0.0
      %2236 = vmatprep.subr.mxu0 0.0
      %2237 = vmatpush1.msra.mxu0 0.0
      %2238 = vmatprep.subr.mxu0 0.0
      %2239 = vmatpush1.msra.mxu0 0.0
      %2240 = vmatprep.subr.mxu0 0.0
      %2241 = vmatpush1.msra.mxu0 0.0
      %2242 = vmatprep.subr.mxu0 0.0
      %2243 = vmatpush1.msra.mxu0 0.0
      %2244 = vmatprep.subr.mxu0 0.0
      %2245 = vmatpush1.msra.mxu0 0.0
      %2246 = vmatprep.subr.mxu0 0.0
      %2247 = vmatpush1.msra.mxu0 0.0
      %2248 = vmatprep.subr.mxu0 0.0
      %2249 = vmatpush1.msra.mxu0 0.0
      %2250 = vmatprep.subr.mxu0 0.0
      %2251 = vmatpush1.msra.mxu0 0.0
      %2252 = vmatprep.subr.mxu0 0.0
      %2253 = vmatpush1.msra.mxu0 0.0
      %2254 = vmatprep.subr.mxu0 0.0
      %2255 = vmatpush1.msra.mxu0 0.0
      %2256 = vmatprep.subr.mxu0 0.0
      %2257 = vmatpush1.msra.mxu0 0.0
      %2258 = vmatprep.subr.mxu0 0.0
      %2259 = vmatpush1.msra.mxu0 0.0
      %2260 = vmatprep.subr.mxu0 0.0
      %2261 = vmatpush1.msra.mxu0 0.0
      %2262 = vmatprep.subr.mxu0 0.0
      %2263 = vmatpush1.msra.mxu0 0.0
      %2264 = vmatprep.subr.mxu0 0.0
      %2265 = vmatpush1.msra.mxu0 0.0
      %2266 = vmatprep.subr.mxu0 0.0
      %2267 = vmatpush1.msra.mxu0 0.0
      %2268 = vmatprep.subr.mxu0 0.0
      %2269 = vmatpush1.msra.mxu0 0.0
      %2270 = vmatprep.subr.mxu0 0.0
      %2271 = vmatpush1.msra.mxu0 0.0
      %2272 = vmatprep.subr.mxu0 0.0
      %2273 = vmatpush1.msra.mxu0 0.0
      %2274 = vmatprep.subr.mxu0 0.0
      %2275 = vmatpush1.msra.mxu0 0.0
      %2276 = vmatprep.subr.mxu0 0.0
      %2277 = vmatpush1.msra.mxu0 0.0
      %2278 = vmatprep.subr.mxu0 0.0
      %2279 = vmatpush1.msra.mxu0 0.0
      %2280 = vmatprep.subr.mxu0 0.0
      %2281 = vmatpush1.msra.mxu0 0.0
      %2282 = vmatprep.subr.mxu0 0.0
      %2283 = vmatpush1.msra.mxu0 0.0
      %2284 = vmatprep.subr.mxu0 0.0
      %2285 = vmatpush1.msra.mxu0 0.0
      %2286 = vmatprep.mubr.f32.mxu0 0.0
      %2287 = vmatmul.mubr.f32.gmra.mrb[0].mxu0 %v2211
      %v2288 = vpop.f32.mrb[0].mxu0
      %v2289 = vadd.f32 0.0, %v2288
      %v2290 = vpop.f32.mrb[0].mxu0
      %v2291 = vadd.f32 0.0, %v2290
      %2292 = vdwg.mxu0
      %2293 = vmatprep.subr.mxu0 0.0
      %2294 = vmatpush1.msra.mxu0 %v2196
      %2295 = vmatprep.subr.mxu0 0.0
      %2296 = vmatpush1.msra.mxu0 %v2199
      %2297 = vmatprep.subr.mxu0 0.0
      %2298 = vmatpush1.msra.mxu0 %v2202
      %2299 = vmatprep.subr.mxu0 0.0
      %2300 = vmatpush1.msra.mxu0 %v2205
      %2301 = vmatprep.subr.mxu0 0.0
      %2302 = vmatpush1.msra.mxu0 %v2220
      %2303 = vmatprep.subr.mxu0 0.0
      %2304 = vmatpush1.msra.mxu0 0.0
      %2305 = vmatprep.subr.mxu0 0.0
      %2306 = vmatpush1.msra.mxu0 0.0
      %2307 = vmatprep.subr.mxu0 0.0
      %2308 = vmatpush1.msra.mxu0 0.0
      %2309 = vmatprep.subr.mxu0 0.0
      %2310 = vmatpush1.msra.mxu0 0.0
      %2311 = vmatprep.subr.mxu0 0.0
      %2312 = vmatpush1.msra.mxu0 0.0
      %2313 = vmatprep.subr.mxu0 0.0
      %2314 = vmatpush1.msra.mxu0 0.0
      %2315 = vmatprep.subr.mxu0 0.0
      %2316 = vmatpush1.msra.mxu0 0.0
      %2317 = vmatprep.subr.mxu0 0.0
      %2318 = vmatpush1.msra.mxu0 0.0
      %2319 = vmatprep.subr.mxu0 0.0
      %2320 = vmatpush1.msra.mxu0 0.0
      %2321 = vmatprep.subr.mxu0 0.0
      %2322 = vmatpush1.msra.mxu0 0.0
      %2323 = vmatprep.subr.mxu0 0.0
      %2324 = vmatpush1.msra.mxu0 0.0
      %2325 = vmatprep.subr.mxu0 0.0
      %2326 = vmatpush1.msra.mxu0 0.0
      %2327 = vmatprep.subr.mxu0 0.0
      %2328 = vmatpush1.msra.mxu0 0.0
      %2329 = vmatprep.subr.mxu0 0.0
      %2330 = vmatpush1.msra.mxu0 0.0
      %2331 = vmatprep.subr.mxu0 0.0
      %2332 = vmatpush1.msra.mxu0 0.0
      %2333 = vmatprep.subr.mxu0 0.0
      %2334 = vmatpush1.msra.mxu0 0.0
      %2335 = vmatprep.subr.mxu0 0.0
      %2336 = vmatpush1.msra.mxu0 0.0
      %2337 = vmatprep.subr.mxu0 0.0
      %2338 = vmatpush1.msra.mxu0 0.0
      %2339 = vmatprep.subr.mxu0 0.0
      %2340 = vmatpush1.msra.mxu0 0.0
      %2341 = vmatprep.subr.mxu0 0.0
      %2342 = vmatpush1.msra.mxu0 0.0
      %2343 = vmatprep.subr.mxu0 0.0
      %2344 = vmatpush1.msra.mxu0 0.0
      %2345 = vmatprep.subr.mxu0 0.0
      %2346 = vmatpush1.msra.mxu0 0.0
      %2347 = vmatprep.subr.mxu0 0.0
      %2348 = vmatpush1.msra.mxu0 0.0
      %2349 = vmatprep.subr.mxu0 0.0
      %2350 = vmatpush1.msra.mxu0 0.0
      %2351 = vmatprep.subr.mxu0 0.0
      %2352 = vmatpush1.msra.mxu0 0.0
      %2353 = vmatprep.subr.mxu0 0.0
      %2354 = vmatpush1.msra.mxu0 0.0
      %2355 = vmatprep.subr.mxu0 0.0
      %2356 = vmatpush1.msra.mxu0 0.0
      %2357 = vmatprep.mubr.f32.mxu0 0.0
      %2358 = vmatmul.mubr.f32.gmra.mrb[0].mxu0 %v2211
      %v2359 = vpop.f32.mrb[0].mxu0
      %v2360 = vadd.f32 0.0, %v2359
      %v2361 = vpop.f32.mrb[0].mxu0
      %2362 = vdwg.mxu0
      %v2364 = vsel %vm1137, %v2072, 0
      %v2367 = vsel %vm807, %v2069, 0
      %v2370 = vsel %vm807, %v2070, 0
      %v2373 = vsel %vm807, %v2071, 0
      %2375 = vmatprep.subr.mxu0 %v2058
      %2376 = vmatpush1.msra.mxu0 %v2057
      %2377 = vmatprep.subr.mxu0 %v2061
      %2378 = vmatpush1.msra.mxu0 %v2060
      %2379 = vmatprep.subr.mxu0 %v2064
      %2380 = vmatpush1.msra.mxu0 %v2063
      %2381 = vmatprep.subr.mxu0 %v2067
      %2382 = vmatpush1.msra.mxu0 %v2066
      %2383 = vmatprep.subr.mxu0 %v2370
      %2384 = vmatpush1.msra.mxu0 %v2367
      %2385 = vmatprep.subr.mxu0 0.0
      %2386 = vmatpush1.msra.mxu0 0.0
      %2387 = vmatprep.subr.mxu0 0.0
      %2388 = vmatpush1.msra.mxu0 0.0
      %2389 = vmatprep.subr.mxu0 0.0
      %2390 = vmatpush1.msra.mxu0 0.0
      %2391 = vmatprep.subr.mxu0 0.0
      %2392 = vmatpush1.msra.mxu0 0.0
      %2393 = vmatprep.subr.mxu0 0.0
      %2394 = vmatpush1.msra.mxu0 0.0
      %2395 = vmatprep.subr.mxu0 0.0
      %2396 = vmatpush1.msra.mxu0 0.0
      %2397 = vmatprep.subr.mxu0 0.0
      %2398 = vmatpush1.msra.mxu0 0.0
      %2399 = vmatprep.subr.mxu0 0.0
      %2400 = vmatpush1.msra.mxu0 0.0
      %2401 = vmatprep.subr.mxu0 0.0
      %2402 = vmatpush1.msra.mxu0 0.0
      %2403 = vmatprep.subr.mxu0 0.0
      %2404 = vmatpush1.msra.mxu0 0.0
      %2405 = vmatprep.subr.mxu0 0.0
      %2406 = vmatpush1.msra.mxu0 0.0
      %2407 = vmatprep.subr.mxu0 0.0
      %2408 = vmatpush1.msra.mxu0 0.0
      %2409 = vmatprep.subr.mxu0 0.0
      %2410 = vmatpush1.msra.mxu0 0.0
      %2411 = vmatprep.subr.mxu0 0.0
      %2412 = vmatpush1.msra.mxu0 0.0
      %2413 = vmatprep.subr.mxu0 0.0
      %2414 = vmatpush1.msra.mxu0 0.0
      %2415 = vmatprep.subr.mxu0 0.0
      %2416 = vmatpush1.msra.mxu0 0.0
      %2417 = vmatprep.subr.mxu0 0.0
      %2418 = vmatpush1.msra.mxu0 0.0
      %2419 = vmatprep.subr.mxu0 0.0
      %2420 = vmatpush1.msra.mxu0 0.0
      %2421 = vmatprep.subr.mxu0 0.0
      %2422 = vmatpush1.msra.mxu0 0.0
      %2423 = vmatprep.subr.mxu0 0.0
      %2424 = vmatpush1.msra.mxu0 0.0
      %2425 = vmatprep.subr.mxu0 0.0
      %2426 = vmatpush1.msra.mxu0 0.0
      %2427 = vmatprep.subr.mxu0 0.0
      %2428 = vmatpush1.msra.mxu0 0.0
      %2429 = vmatprep.subr.mxu0 0.0
      %2430 = vmatpush1.msra.mxu0 0.0
      %2431 = vmatprep.subr.mxu0 0.0
      %2432 = vmatpush1.msra.mxu0 0.0
      %2433 = vmatprep.subr.mxu0 0.0
      %2434 = vmatpush1.msra.mxu0 0.0
      %2435 = vmatprep.subr.mxu0 0.0
      %2436 = vmatpush1.msra.mxu0 0.0
      %2437 = vmatprep.subr.mxu0 0.0
      %2438 = vmatpush1.msra.mxu0 0.0
      %2439 = vmatprep.mubr.f32.mxu0 0.0
      %2440 = vmatmul.mubr.f32.gmra.mrb[0].mxu0 %v2364
      %v2441 = vpop.f32.mrb[0].mxu0
      %v2442 = vadd.f32 %v2289, %v2441
      %v2443 = vpop.f32.mrb[0].mxu0
      %v2444 = vadd.f32 %v2291, %v2443
      %2445 = vdwg.mxu0
      %2446 = vmatprep.subr.mxu0 0.0
      %2447 = vmatpush1.msra.mxu0 %v2059
      %2448 = vmatprep.subr.mxu0 0.0
      %2449 = vmatpush1.msra.mxu0 %v2062
      %2450 = vmatprep.subr.mxu0 0.0
      %2451 = vmatpush1.msra.mxu0 %v2065
      %2452 = vmatprep.subr.mxu0 0.0
      %2453 = vmatpush1.msra.mxu0 %v2068
      %2454 = vmatprep.subr.mxu0 0.0
      %2455 = vmatpush1.msra.mxu0 %v2373
      %2456 = vmatprep.subr.mxu0 0.0
      %2457 = vmatpush1.msra.mxu0 0.0
      %2458 = vmatprep.subr.mxu0 0.0
      %2459 = vmatpush1.msra.mxu0 0.0
      %2460 = vmatprep.subr.mxu0 0.0
      %2461 = vmatpush1.msra.mxu0 0.0
      %2462 = vmatprep.subr.mxu0 0.0
      %2463 = vmatpush1.msra.mxu0 0.0
      %2464 = vmatprep.subr.mxu0 0.0
      %2465 = vmatpush1.msra.mxu0 0.0
      %2466 = vmatprep.subr.mxu0 0.0
      %2467 = vmatpush1.msra.mxu0 0.0
      %2468 = vmatprep.subr.mxu0 0.0
      %2469 = vmatpush1.msra.mxu0 0.0
      %2470 = vmatprep.subr.mxu0 0.0
      %2471 = vmatpush1.msra.mxu0 0.0
      %2472 = vmatprep.subr.mxu0 0.0
      %2473 = vmatpush1.msra.mxu0 0.0
      %2474 = vmatprep.subr.mxu0 0.0
      %2475 = vmatpush1.msra.mxu0 0.0
      %2476 = vmatprep.subr.mxu0 0.0
      %2477 = vmatpush1.msra.mxu0 0.0
      %2478 = vmatprep.subr.mxu0 0.0
      %2479 = vmatpush1.msra.mxu0 0.0
      %2480 = vmatprep.subr.mxu0 0.0
      %2481 = vmatpush1.msra.mxu0 0.0
      %2482 = vmatprep.subr.mxu0 0.0
      %2483 = vmatpush1.msra.mxu0 0.0
      %2484 = vmatprep.subr.mxu0 0.0
      %2485 = vmatpush1.msra.mxu0 0.0
      %2486 = vmatprep.subr.mxu0 0.0
      %2487 = vmatpush1.msra.mxu0 0.0
      %2488 = vmatprep.subr.mxu0 0.0
      %2489 = vmatpush1.msra.mxu0 0.0
      %2490 = vmatprep.subr.mxu0 0.0
      %2491 = vmatpush1.msra.mxu0 0.0
      %2492 = vmatprep.subr.mxu0 0.0
      %2493 = vmatpush1.msra.mxu0 0.0
      %2494 = vmatprep.subr.mxu0 0.0
      %2495 = vmatpush1.msra.mxu0 0.0
      %2496 = vmatprep.subr.mxu0 0.0
      %2497 = vmatpush1.msra.mxu0 0.0
      %2498 = vmatprep.subr.mxu0 0.0
      %2499 = vmatpush1.msra.mxu0 0.0
      %2500 = vmatprep.subr.mxu0 0.0
      %2501 = vmatpush1.msra.mxu0 0.0
      %2502 = vmatprep.subr.mxu0 0.0
      %2503 = vmatpush1.msra.mxu0 0.0
      %2504 = vmatprep.subr.mxu0 0.0
      %2505 = vmatpush1.msra.mxu0 0.0
      %2506 = vmatprep.subr.mxu0 0.0
      %2507 = vmatpush1.msra.mxu0 0.0
      %2508 = vmatprep.subr.mxu0 0.0
      %2509 = vmatpush1.msra.mxu0 0.0
      %2510 = vmatprep.mubr.f32.mxu0 0.0
      %2511 = vmatmul.mubr.f32.gmra.mrb[0].mxu0 %v2364
      %v2512 = vpop.f32.mrb[0].mxu0
      %v2513 = vadd.f32 %v2360, %v2512
      %v2514 = vpop.f32.mrb[0].mxu0
      %2515 = vdwg.mxu0
      %v2516 = vld [vmem:[%s7] sm:$0x7]
      %2518 = vset.pattern.permute.xlu0 0
      %2519 = vperm.xlu0 %2518, %v2516
      %v2520 = vpop.permute.xlu0 %2519
      %v2522 = vadd.f32 %v2442, %v2520
      %v2523 = vadd.f32 %v2444, %v2520
      %v2524 = vadd.f32 %v2513, %v2520
      %v2527 = vcombine.low %v2522, %v2523
      %2529 = vst [vmem:[%s386] sm:$0x77] %v2527
      %2530 = vst.msk [vmem:[%s386 + $0x8] sm:$0x7] %vm395, %v2524
      %p2531 = scmp.lt.s32.totalorder %s22, 1
      %s2532 = scalar_select %p2531, %s22, 1
      %s2533 = smul.addr %s2532, 3
      %s2534 = smul.addr %s2533, 4
      %s2535 = scalar_lea.vmem %s11, %s2534
      // Predicated region
      $region65: #{fe_block_forward.1} parent=63 // pred_check
        %p2536 = pneg %p276
      $region66: #{fe_block_forward.1} parent=63 // pred_check_branch
        %2538 = sbr.rel (%p2536) target = $region68
      $region67: #{fe_block_forward.1} parent=63 // pred_region
        _
      $region68: #{fe_block_forward.1} parent=63 // pred_fallthru
        _
    $region64: #{fe_block_forward.1} parent=5 // pred_fallthru
      _
    %p2539 = scmp.le.s32.totalorder 2, %s17
    // Predicated region
    $region69: #{fe_block_forward.1} parent=5 // pred_check
      %p2540 = pneg %p2539
    $region70: #{fe_block_forward.1} parent=5 // pred_check_branch
      %2542 = sbr.rel (%p2540) target = $region72
    $region71: #{fe_block_forward.1} parent=5 // pred_region
      %s2543 = ssub.s32 %s17, 2
      // Predicated region
      $region73: #{fe_block_forward.1} parent=71 // pred_check
        %p2544 = pneg %p282
      $region74: #{fe_block_forward.1} parent=71 // pred_check_branch
        %2546 = sbr.rel (%p2544) target = $region76
      $region75: #{fe_block_forward.1} parent=71 // pred_region
        %p2547 = scmp.lt.s32.totalorder %s23, 1
        %s2548 = scalar_select %p2547, %s23, 1
        %s2549 = smul.addr %s2548, 3
        %s2550 = smul.addr %s2549, 4
        %s2551 = scalar_lea.vmem %s11, %s2550
      $region76: #{fe_block_forward.1} parent=71 // pred_fallthru
        _
    $region72: #{fe_block_forward.1} parent=5 // pred_fallthru
      _
  $region6: #{fe_block_forward.1} parent=0 // loop_footer
    %s21 = sadd.s32 1, %s17
  $region7: #{fe_block_forward.1} parent=0 // loop_footer_branch
    %16 = sbr.rel target = $region3
  $region8: #{fe_block_forward.1} parent=0 // loop_exit
    _

</llo_original>
